<compile_context>
chip_gen: v7x
topology: tpu7x:2x2x1
jax: 0.10.0
libtpu: 0.0.40
codegen_flags: <defaults>
</compile_context>

<pallas_src>
import functools
import math

import jax
import jax.numpy as jnp
from jax import lax
from jax.experimental import pallas as pl
from jax.experimental.pallas import tpu as pltpu

# ---------------- small, ViT-H/14-shaped-but-tiny configuration --------------
N_CLASSES = 1
PATCH_SIZE = 4          # stands in for 14
EMBED_DIM = 32          # stands in for 1280
NUM_HEADS = 4           # stands in for 16
MLP_DIM = 64            # stands in for 5120
NUM_LAYERS = 2          # stands in for 32
POS_GRID = 8            # stands in for the 37x37 pretrained pos-embed grid
DEC_CHANNELS = [EMBED_DIM, 32, 16, 16, 8, 8]  # stands in for 1280,512,256,128,64,32
LN_EPS = 1e-6

# MXU operand / HBM activation dtype (f32 accumulation everywhere).
MXU_DTYPE = jnp.bfloat16
_SUB = 16               # sublane rounding for bf16 tiles ([16,128] vreg packing)


def _round_up(v, m):
    return (v + m - 1) // m * m


def _row_tile(M):
    # Mem-/overhead-bound matmuls: big tiles; >=2 grid steps only once M is
    # large enough that the second step is worth its ~0.35us overhead.
    if M <= 256:
        return _round_up(M, _SUB)
    if M <= 2048:
        return _round_up(-(-M // 2), _SUB)
    return 1024


# ======================= in-kernel helper math (traced) ======================

def _ln_norm(x, eps):
    # mean/rsqrt part of LayerNorm only; gamma/beta are folded into the
    # following matmul's weight/bias at init time.
    mu = jnp.mean(x, axis=-1, keepdims=True)
    xc = x - mu
    var = jnp.mean(xc * xc, axis=-1, keepdims=True)
    return xc * lax.rsqrt(var + eps)


def _erf(x):
    # Abramowitz & Stegun 7.1.26 rational approximation (|err| <= 1.5e-7);
    # only uses ops (exp, div, select) that lower cleanly inside Mosaic.
    pc = 0.3275911
    a1, a2, a3, a4, a5 = (0.254829592, -0.284496736, 1.421413741,
                          -1.453152027, 1.061405429)
    ax = jnp.abs(x)
    t = 1.0 / (1.0 + pc * ax)
    poly = ((((a5 * t + a4) * t + a3) * t + a2) * t + a1) * t
    y = 1.0 - poly * jnp.exp(-ax * ax)
    return jnp.where(x >= 0.0, y, -y)


def _gelu_exact(x):
    return 0.5 * x * (1.0 + _erf(x * (1.0 / math.sqrt(2.0))))


# ============================ Pallas kernels =================================

def _encoder_stack_kernel(x_ref, wqkv_ref, bqkv_ref, wout_ref, bout_ref,
                          wfc1_ref, bfc1_ref, wfc2_ref, bfc2_ref,
                          fing_ref, finb_ref, o_ref, res_ref,
                          *, nh, seq_len, eps):
    """All NUM_LAYERS torchvision EncoderBlocks for one batch element.

    grid = (B, L).  The f32 residual stream lives in `res_ref` (VMEM scratch)
    across the 'arbitrary' layer axis, so tokens never round-trip HBM between
    layers.  LN1/LN2 gamma/beta and the 1/sqrt(dh) score scale are pre-folded
    into wqkv/bqkv and wfc1/bfc1; the final encoder LayerNorm runs on the last
    layer only.
    """
    l = pl.program_id(1)

    @pl.when(l == 0)
    def _():
        res_ref[...] = x_ref[0].astype(jnp.float32)

    x = res_ref[...]                               # (Sp, D) f32 residual stream
    Sp, D = x.shape
    dh = D // nh

    # ---- LN1 (stats only) + fused QKV projection ----------------------------
    h = _ln_norm(x, eps)
    qkv = jnp.dot(h.astype(MXU_DTYPE), wqkv_ref[0],
                  preferred_element_type=jnp.float32) + bqkv_ref[0]   # (Sp, 3D)

    # ---- all-head masked attention ------------------------------------------
    # Heads are contiguous column slices of `qkv`; per-head outputs are packed
    # into contiguous columns of one (Sp, D) buffer so the output projection is
    # a single (Sp,D)x(D,D) MXU pass.  The -1e30 mask constant is only safe
    # because scores accumulate in f32 (preferred_element_type).
    kmask = lax.broadcasted_iota(jnp.int32, (Sp, Sp), 1) < seq_len
    heads = []
    for hd in range(nh):
        q = qkv[:, hd * dh:(hd + 1) * dh]          # already scaled by 1/sqrt(dh)
        k = qkv[:, D + hd * dh:D + (hd + 1) * dh]
        v = qkv[:, 2 * D + hd * dh:2 * D + (hd + 1) * dh]
        s = lax.dot_general(q.astype(MXU_DTYPE), k.astype(MXU_DTYPE),
                            (((1,), (1,)), ((), ())),
                            preferred_element_type=jnp.float32)       # (Sp, Sp)
        s = jnp.where(kmask, s, jnp.float32(-1e30))
        m = jnp.max(s, axis=-1, keepdims=True)
        p = jnp.exp(s - m)
        inv_l = pl.reciprocal(jnp.sum(p, axis=-1, keepdims=True), approx=True)
        o = jnp.dot(p.astype(MXU_DTYPE), v.astype(MXU_DTYPE),
                    preferred_element_type=jnp.float32) * inv_l
        heads.append(o)
    attn = jnp.concatenate(heads, axis=1)          # (Sp, D)
    attn = jnp.dot(attn.astype(MXU_DTYPE), wout_ref[0],
                   preferred_element_type=jnp.float32) + bout_ref[0]
    x = x + attn

    # ---- LN2 (stats only) + fc1 + exact GELU + fc2 ---------------------------
    h = _ln_norm(x, eps)
    h = jnp.dot(h.astype(MXU_DTYPE), wfc1_ref[0],
                preferred_element_type=jnp.float32) + bfc1_ref[0]
    h = _gelu_exact(h)
    h = jnp.dot(h.astype(MXU_DTYPE), wfc2_ref[0],
                preferred_element_type=jnp.float32) + bfc2_ref[0]
    x = x + h
    res_ref[...] = x

    @pl.when(l == pl.num_programs(1) - 1)
    def _():
        y = _ln_norm(x, eps) * fing_ref[...] + finb_ref[...]          # encoder.ln
        o_ref[0] = y.astype(o_ref.dtype)


def _matmul_bias_kernel(x_ref, w_ref, b_ref, o_ref, *, act):
    y = jnp.dot(x_ref[...].astype(MXU_DTYPE), w_ref[...].astype(MXU_DTYPE),
                preferred_element_type=jnp.float32) + b_ref[...]
    if act == "relu":
        y = jnp.maximum(y, 0.0)
    o_ref[...] = y.astype(o_ref.dtype)


def _dec_pair_kernel(x_ref, w1_ref, b1_ref, w2_ref, b2_ref, o_ref, *, c1):
    # Two fused ConvTranspose2d(k=2,s=2)+ReLU stages.  Stage-1 columns are
    # ordered (di1, dj1, c1); because k=s=2 has no overlap, each c1-column
    # group is exactly one input pixel of stage 2, so stage 2 runs per group
    # in-kernel (no HBM round trip, lane-dense 16*c2-wide output).
    y = jnp.dot(x_ref[...].astype(MXU_DTYPE), w1_ref[...],
                preferred_element_type=jnp.float32) + b1_ref[...]
    y = jnp.maximum(y, 0.0)
    outs = []
    for g in range(4):
        z = jnp.dot(y[:, g * c1:(g + 1) * c1].astype(MXU_DTYPE), w2_ref[...],
                    preferred_element_type=jnp.float32) + b2_ref[...]
        outs.append(jnp.maximum(z, 0.0))
    o_ref[...] = jnp.concatenate(outs, axis=1).astype(o_ref.dtype)


def _dec_final_kernel(x_ref, w1_ref, b1_ref, w2_ref, b2t_ref, o_ref):
    # Last ConvTranspose2d stage + ReLU + final 1x1 conv (block-diagonal
    # selection matmul).  Result is emitted TRANSPOSED, (4*n_classes, tm), so
    # the store is lane-dense instead of a 4/128-lane masked vst.
    y = jnp.dot(x_ref[...].astype(MXU_DTYPE), w1_ref[...],
                preferred_element_type=jnp.float32) + b1_ref[...]
    y = jnp.maximum(y, 0.0)
    zt = lax.dot_general(w2_ref[...], y.astype(MXU_DTYPE),
                         (((0,), (1,)), ((), ())),
                         preferred_element_type=jnp.float32)          # (4*ncls, tm)
    o_ref[...] = (zt + b2t_ref[...]).astype(o_ref.dtype)


# ============================ kernel wrappers ================================

def matmul_bias(x, w, b, act=None, out_dtype=None):
    """act(x @ w + b): rows tiled over the grid, weight fully resident."""
    M, K = x.shape
    N = w.shape[1]
    out_dtype = out_dtype or x.dtype
    tm = _row_tile(M)
    Mp = _round_up(M, tm)
    xp = x if Mp == M else jnp.pad(x, ((0, Mp - M), (0, 0)))
    out = pl.pallas_call(
        functools.partial(_matmul_bias_kernel, act=act),
        out_shape=jax.ShapeDtypeStruct((Mp, N), out_dtype),
        grid=(Mp // tm,),
        in_specs=[pl.BlockSpec((tm, K), lambda i: (i, 0)),
                  pl.BlockSpec((K, N), lambda i: (0, 0)),
                  pl.BlockSpec((1, N), lambda i: (0, 0))],
        out_specs=pl.BlockSpec((tm, N), lambda i: (i, 0)),
        compiler_params=pltpu.CompilerParams(dimension_semantics=("parallel",)),
    )(xp, w, b)
    return out if Mp == M else out[:M]


def dec_pair(x, w1, b1, w2, b2, out_dtype):
    """Two fused decoder stages; output columns ordered (di1,dj1,di2,dj2,c2)."""
    M, K = x.shape
    c1 = w1.shape[1] // 4
    N = 4 * w2.shape[1]            # = 16 * c2
    tm = _row_tile(M)
    Mp = _round_up(M, tm)
    xp = x if Mp == M else jnp.pad(x, ((0, Mp - M), (0, 0)))
    out = pl.pallas_call(
        functools.partial(_dec_pair_kernel, c1=c1),
        out_shape=jax.ShapeDtypeStruct((Mp, N), out_dtype),
        grid=(Mp // tm,),
        in_specs=[pl.BlockSpec((tm, K), lambda i: (i, 0)),
                  pl.BlockSpec(w1.shape, lambda i: (0, 0)),
                  pl.BlockSpec(b1.shape, lambda i: (0, 0)),
                  pl.BlockSpec(w2.shape, lambda i: (0, 0)),
                  pl.BlockSpec(b2.shape, lambda i: (0, 0))],
        out_specs=pl.BlockSpec((tm, N), lambda i: (i, 0)),
        compiler_params=pltpu.CompilerParams(dimension_semantics=("parallel",)),
    )(xp, w1, b1, w2, b2)
    return out if Mp == M else out[:M]


def dec_final(x, w1, b1, w2, b2t):
    """relu(x@w1+b1) @ w2 + b2, emitted transposed (lane dim = rows)."""
    M, K = x.shape
    N2 = w2.shape[1]                              # 4 * n_classes
    tm = min(1024, _round_up(M, 128))             # lane dim of transposed output
    Mp = _round_up(M, tm)
    xp = x if Mp == M else jnp.pad(x, ((0, Mp - M), (0, 0)))
    out = pl.pallas_call(
        _dec_final_kernel,
        out_shape=jax.ShapeDtypeStruct((N2, Mp), jnp.float32),
        grid=(Mp // tm,),
        in_specs=[pl.BlockSpec((tm, K), lambda i: (i, 0)),
                  pl.BlockSpec(w1.shape, lambda i: (0, 0)),
                  pl.BlockSpec(b1.shape, lambda i: (0, 0)),
                  pl.BlockSpec(w2.shape, lambda i: (0, 0)),
                  pl.BlockSpec(b2t.shape, lambda i: (0, 0))],
        out_specs=pl.BlockSpec((N2, tm), lambda i: (0, i)),
        compiler_params=pltpu.CompilerParams(dimension_semantics=("parallel",)),
    )(xp, w1, b1, w2, b2t)
    return out if Mp == M else out[:, :M]


def encoder_stack(x, enc, fin_g, fin_b, *, seq_len):
    """All encoder layers in one pallas_call: grid (B, L), tokens VMEM-resident."""
    B, Sp, D = x.shape
    L = enc["wqkv"].shape[0]
    names = ["wqkv", "bqkv", "wout", "bout", "wfc1", "bfc1", "wfc2", "bfc2"]
    weights = [enc[n] for n in names]
    # NOTE: at real ViT-H dims + v7x (64 MiB VMEM) these per-layer weight blocks
    # should be single-buffered (pl.Buffered(1)) or K-tiled; at toy size the
    # default double-buffering fits comfortably.
    w_specs = [pl.BlockSpec((1,) + w.shape[1:], lambda b, l: (l, 0, 0))
               for w in weights]
    tok_spec = pl.BlockSpec((1, Sp, D), lambda b, l: (b, 0, 0))
    fin_spec = pl.BlockSpec(fin_g.shape, lambda b, l: (0, 0))
    kern = functools.partial(_encoder_stack_kernel, nh=NUM_HEADS,
                             seq_len=seq_len, eps=LN_EPS)
    return pl.pallas_call(
        kern,
        out_shape=jax.ShapeDtypeStruct((B, Sp, D), x.dtype),
        grid=(B, L),
        in_specs=[tok_spec] + w_specs + [fin_spec, fin_spec],
        out_specs=tok_spec,
        scratch_shapes=[pltpu.VMEM((Sp, D), jnp.float32)],
        compiler_params=pltpu.CompilerParams(
            dimension_semantics=("parallel", "arbitrary"),
            vmem_limit_bytes=32 * 1024 * 1024),
    )(x, *weights, fin_g, fin_b)


# ============================ JAX glue building blocks =======================

def bilinear_resize_nchw(x, out_h, out_w):
    """PyTorch F.interpolate(mode='bilinear', align_corners=False) on (1,D,H,W)."""
    _, _, in_h, in_w = x.shape

    def src_index(out_n, in_n):
        scale = in_n / out_n
        s = (jnp.arange(out_n, dtype=jnp.float32) + 0.5) * scale - 0.5
        s = jnp.maximum(s, 0.0)
        i0 = jnp.floor(s).astype(jnp.int32)
        i0 = jnp.minimum(i0, in_n - 1)
        i1 = jnp.minimum(i0 + 1, in_n - 1)
        frac = s - i0.astype(jnp.float32)
        return i0, i1, frac

    i0, i1, fi = src_index(out_h, in_h)
    j0, j1, fj = src_index(out_w, in_w)
    rows0 = x[:, :, i0, :]
    rows1 = x[:, :, i1, :]

    def mix_w(r):
        return (r[:, :, :, j0] * (1.0 - fj)[None, None, None, :]
                + r[:, :, :, j1] * fj[None, None, None, :])

    top = mix_w(rows0)
    bot = mix_w(rows1)
    return top * (1.0 - fi)[None, None, :, None] + bot * fi[None, None, :, None]


# ================================ forward ====================================

def forward(params, x):
    B, C, H, W = x.shape
    ps, D, G = PATCH_SIZE, EMBED_DIM, POS_GRID

    # reflect-pad to a multiple of the patch size (JAX glue)
    pad_h = (ps - H % ps) % ps
    pad_w = (ps - W % ps) % ps
    if pad_h or pad_w:
        x = jnp.pad(x, ((0, 0), (0, 0), (0, pad_h), (0, pad_w)), mode="reflect")
    Hp, Wp = x.shape[-2], x.shape[-1]

    # imagenet normalisation (elementwise glue)
    x = (x - params["mean"]) / params["std"]

    # patch embedding: Conv2d(3, D, kernel=ps, stride=ps) as one tiled matmul
    h, w = Hp // ps, Wp // ps
    patches = (x.reshape(B, 3, h, ps, w, ps)
                 .transpose(0, 2, 4, 1, 3, 5)
                 .reshape(B * h * w, 3 * ps * ps))
    tok = matmul_bias(patches, params["conv_proj_w"], params["conv_proj_b"],
                      out_dtype=jnp.float32)
    tok = tok.reshape(B, h * w, D)

    # class token + bilinearly resized positional embedding (JAX glue)
    cls = jnp.broadcast_to(params["class_token"], (B, 1, D))
    tokens = jnp.concatenate([cls, tok], axis=1)               # (B, S, D)
    pe = params["pos_embed"]
    cls_pe = pe[:, :1, :]
    grid_pe = pe[:, 1:, :].transpose(0, 2, 1).reshape(1, D, G, G)
    resized = bilinear_resize_nchw(grid_pe, h, w)
    resized = resized.reshape(1, D, h * w).transpose(0, 2, 1)
    pos = jnp.concatenate([cls_pe, resized], axis=1)
    x_enc = (tokens + pos).astype(MXU_DTYPE)                   # bf16 activations

    # pad the token axis ONCE to a bf16 sublane multiple; padded keys are masked
    # inside the attention kernel and padded rows are sliced off at the end.
    S = x_enc.shape[1]
    Sp = _round_up(S, _SUB)
    if Sp != S:
        x_enc = jnp.pad(x_enc, ((0, 0), (0, Sp - S), (0, 0)))

    # transformer encoder: all layers in ONE fused pallas_call (grid = (B, L))
    x_enc = encoder_stack(x_enc, params["enc"], params["enc_ln_g"],
                          params["enc_ln_b"], seq_len=S)

    # back-propagate the final [..., :H, :W] crop through the x2 decoder stages:
    # output pixel (2i+di, 2j+dj) of a k=2,s=2 deconv depends only on input
    # pixel (i, j), so each stage needs exactly ceil(out/2) rows/cols.
    n_up = 2 * len(params["dec_pairs"]) + 1
    need_h, need_w = [H], [W]
    for _ in range(n_up):
        need_h.append(-(-need_h[-1] // 2))
        need_w.append(-(-need_w[-1] // 2))
    need_h = [min(v, h << r) for r, v in enumerate(need_h[::-1])]
    need_w = [min(v, w << r) for r, v in enumerate(need_w[::-1])]

    # decoder: NHWC, two ConvTranspose2d(k=2,s=2)+ReLU stages per kernel
    y = x_enc[:, 1:S, :].reshape(B, h, w, D)                   # NHWC, bf16
    level = 0
    for (w1, b1, w2, b2) in params["dec_pairs"]:
        y = y[:, :need_h[level], :need_w[level], :]
        Bq, Hq, Wq, Cq = y.shape
        c2 = w2.shape[1] // 4
        z = dec_pair(y.reshape(Bq * Hq * Wq, Cq), w1, b1, w2, b2,
                     out_dtype=MXU_DTYPE)                      # (M, 16*c2)
        # TODO(synk): the inter-group pixel-shuffle stays in XLA; doing it
        # in-kernel would need cross-lane layout moves that are not worth it.
        y = (z.reshape(Bq, Hq, Wq, 2, 2, 2, 2, c2)
               .transpose(0, 1, 3, 5, 2, 4, 6, 7)
               .reshape(Bq, 4 * Hq, 4 * Wq, c2))
        level += 2

    # last ConvTranspose2d stage + ReLU + final 1x1 conv, lane-dense transposed
    w1, b1, w2t, b2t = params["dec_final"]
    y = y[:, :need_h[level], :need_w[level], :]
    Bq, Hq, Wq, Cq = y.shape
    zT = dec_final(y.reshape(Bq * Hq * Wq, Cq), w1, b1, w2t, b2t)  # (4*ncls, M)
    out = (zT.reshape(2, 2, N_CLASSES, Bq, Hq, Wq)
             .transpose(3, 2, 4, 0, 5, 1)
             .reshape(Bq, N_CLASSES, 2 * Hq, 2 * Wq))
    return out[..., :H, :W]


# ============================ parameter init =================================

def init_params(key):
    ks = iter(jax.random.split(key, 200))

    def nrm(shape, scale=0.02):
        return (scale * jax.random.normal(next(ks), shape)).astype(jnp.float32)

    D, ps, mlp, L, G = EMBED_DIM, PATCH_SIZE, MLP_DIM, NUM_LAYERS, POS_GRID
    dh = D // NUM_HEADS
    qk_scale = 1.0 / math.sqrt(dh)

    p = {
        # all matmul weights are stored pre-transposed into the (K, N) layouts
        # the kernels consume and cast to bf16 once at init time.
        "conv_proj_w": nrm((D, 3, ps, ps)).reshape(D, 3 * ps * ps).T.astype(MXU_DTYPE),
        "conv_proj_b": nrm((D,)).reshape(1, D),
        "class_token": nrm((1, 1, D)),
        "pos_embed": nrm((1, G * G + 1, D)),
        "enc_ln_g": (1.0 + nrm((D,))).reshape(1, D),
        "enc_ln_b": nrm((D,)).reshape(1, D),
        "mean": jnp.array([0.485, 0.456, 0.406], jnp.float32).reshape(1, 3, 1, 1),
        "std": jnp.array([0.229, 0.224, 0.225], jnp.float32).reshape(1, 3, 1, 1),
    }

    # ---- encoder blocks: LN1/LN2 gamma-beta and the 1/sqrt(dh) score scale are
    # folded into the following matmul weight/bias; per-layer tensors are
    # stacked along a leading layer axis for the single fused pallas_call.
    col_scale = jnp.concatenate([jnp.full((D,), qk_scale, jnp.float32),
                                 jnp.ones((2 * D,), jnp.float32)])
    blocks = []
    for _ in range(L):
        ln1g, ln1b = 1.0 + nrm((D,)), nrm((D,))
        ln2g, ln2b = 1.0 + nrm((D,)), nrm((D,))
        wqkv = nrm((3 * D, D)).T                       # torch in_proj_weight.T
        bqkv = nrm((3 * D,))
        wqkv_f = (ln1g[:, None] * wqkv) * col_scale[None, :]
        bqkv_f = (ln1b @ wqkv + bqkv) * col_scale
        wfc1 = nrm((mlp, D)).T
        bfc1 = nrm((mlp,))
        wfc1_f = ln2g[:, None] * wfc1
        bfc1_f = ln2b @ wfc1 + bfc1
        blocks.append(dict(
            wqkv=wqkv_f, bqkv=bqkv_f.reshape(1, 3 * D),
            wout=nrm((D, D)).T, bout=nrm((D,)).reshape(1, D),
            wfc1=wfc1_f, bfc1=bfc1_f.reshape(1, mlp),
            wfc2=nrm((D, mlp)).T, bfc2=nrm((D,)).reshape(1, D)))
    enc = {k: jnp.stack([blk[k] for blk in blocks]) for k in blocks[0]}
    for k in ("wqkv", "wout", "wfc1", "wfc2"):
        enc[k] = enc[k].astype(MXU_DTYPE)
    p["enc"] = enc

    # ---- decoder ConvTranspose2d(k=2,s=2) stages: columns ordered (di, dj, co)
    # so the next stage consumes contiguous column groups.
    stage_w = []
    for cin, cout in zip(DEC_CHANNELS[:-1], DEC_CHANNELS[1:]):
        wt = nrm((cin, cout, 2, 2))                    # torch ConvTranspose2d layout
        w = wt.transpose(0, 2, 3, 1).reshape(cin, 4 * cout)
        b = jnp.tile(nrm((cout,)), 4).reshape(1, 4 * cout)
        stage_w.append((w, b))
    n_stage = len(stage_w)
    assert (n_stage - 1) % 2 == 0, "non-final decoder stages must pair up"
    pairs = []
    for s in range(0, n_stage - 1, 2):
        (w1, b1), (w2, b2) = stage_w[s], stage_w[s + 1]
        pairs.append((w1.astype(MXU_DTYPE), b1, w2.astype(MXU_DTYPE), b2))
    p["dec_pairs"] = pairs

    # last stage + final 1x1 conv as a block-diagonal (4*c, 4*n_classes) matmul
    w_last, b_last = stage_w[-1]
    c_last = DEC_CHANNELS[-1]
    fw = nrm((N_CLASSES, c_last))                      # Conv2d(c_last, ncls, 1) weight
    fb = nrm((N_CLASSES,))
    eye4 = jnp.eye(4, dtype=jnp.float32)
    w2_sel = jnp.einsum("gh,cn->gchn", eye4, fw.T).reshape(4 * c_last, 4 * N_CLASSES)
    b2_sel_t = jnp.tile(fb, 4).reshape(4 * N_CLASSES, 1)
    p["dec_final"] = (w_last.astype(MXU_DTYPE), b_last,
                      w2_sel.astype(MXU_DTYPE), b2_sel_t)
    return p


# ================================= main ======================================

if __name__ == "__main__":
    key = jax.random.PRNGKey(0)
    pkey, xkey = jax.random.split(key)
    params = init_params(pkey)

    # NCHW input, 3 channels (mean/std buffers assume RGB); H=W=14 exercises the
    # reflect-padding path (padded to 16 -> 4x4 patch grid -> 17 tokens -> Sp=32)
    # and the crop back-propagation through the decoder.
    x = jax.random.uniform(xkey, (2, 3, 14, 14), dtype=jnp.float32)

    out = jax.jit(forward)(params, x)
    out = jax.block_until_ready(out)
    assert out.shape == (2, N_CLASSES, 14, 14), out.shape
    assert jnp.all(jnp.isfinite(out))
    print("KERNEL_OK")
</pallas_src>

<mosaic_0001>
module attributes {stable_mosaic.version = 11 : i64} {
  func.func @_matmul_bias_kernel(%arg0: i32, %arg1: memref<32x48xf32, #tpu.memory_space<vmem>>, %arg2: memref<48x32xbf16, #tpu.memory_space<vmem>>, %arg3: memref<1x32xf32, #tpu.memory_space<vmem>>, %arg4: memref<32x32xf32, #tpu.memory_space<vmem>>) attributes {dimension_semantics = [#tpu.dimension_semantics<parallel>], iteration_bounds = array<i64: 1>, scalar_prefetch = 0 : i64, scratch_operands = 0 : i64, tpu.core_type = #tpu.core_type<tc>, window_params = [{transform_indices = @transform_0, window_bounds = array<i64: 32, 48>}, {pipeline_mode = #tpu.pipeline_mode<synchronous>, transform_indices = @transform_1, window_bounds = array<i64: 48, 32>}, {pipeline_mode = #tpu.pipeline_mode<synchronous>, transform_indices = @transform_2, window_bounds = array<i64: 1, 32>}, {transform_indices = @transform_3, window_bounds = array<i64: 32, 32>}]} {
    %c0 = arith.constant 0 : index
    %c0_0 = arith.constant 0 : index
    %0 = vector.load %arg1[%c0, %c0_0] : memref<32x48xf32, #tpu.memory_space<vmem>>, vector<32x48xf32>
    %1 = arith.truncf %0 : vector<32x48xf32> to vector<32x48xbf16>
    %c0_1 = arith.constant 0 : index
    %c0_2 = arith.constant 0 : index
    %2 = vector.load %arg2[%c0_1, %c0_2] : memref<48x32xbf16, #tpu.memory_space<vmem>>, vector<48x32xbf16>
    %cst = arith.constant dense<0.000000e+00> : vector<32x32xf32>
    %3 = tpu.matmul %1, %2, %cst {dimension_numbers = #tpu.dot_dimension_numbers<[1], [0], [0], [1], [0, 0, 1, 1], [], []>} : vector<32x48xbf16>, vector<48x32xbf16>, vector<32x32xf32> -> vector<32x32xf32>
    %c0_3 = arith.constant 0 : index
    %c0_4 = arith.constant 0 : index
    %4 = vector.load %arg3[%c0_3, %c0_4] : memref<1x32xf32, #tpu.memory_space<vmem>>, vector<1x32xf32>
    %5 = vector.broadcast %4 : vector<1x32xf32> to vector<32x32xf32>
    %6 = arith.addf %3, %5 : vector<32x32xf32>
    %c0_5 = arith.constant 0 : index
    %c0_6 = arith.constant 0 : index
    %7 = vector.load %arg4[%c0_5, %c0_6] : memref<32x32xf32, #tpu.memory_space<vmem>>, vector<32x32xf32>
    tpu.vector_store %arg4[%c0_5, %c0_6], %6 {strides = array<i32>} : memref<32x32xf32, #tpu.memory_space<vmem>>, vector<32x32xf32>,
    return
  }
  func.func @transform_0(%arg0: i32) -> (i32, i32) {
    %c0_i32 = arith.constant 0 : i32
    %c0_i32_0 = arith.constant 0 : i32
    return %arg0, %c0_i32 : i32, i32
  }
  func.func @transform_1(%arg0: i32) -> (i32, i32) {
    %c0_i32 = arith.constant 0 : i32
    %c0_i32_0 = arith.constant 0 : i32
    %c0_i32_1 = arith.constant 0 : i32
    return %c0_i32, %c0_i32_0 : i32, i32
  }
  func.func @transform_2(%arg0: i32) -> (i32, i32) {
    %c0_i32 = arith.constant 0 : i32
    %c0_i32_0 = arith.constant 0 : i32
    %c0_i32_1 = arith.constant 0 : i32
    return %c0_i32, %c0_i32_0 : i32, i32
  }
  func.func @transform_3(%arg0: i32) -> (i32, i32) {
    %c0_i32 = arith.constant 0 : i32
    %c0_i32_0 = arith.constant 0 : i32
    return %arg0, %c0_i32 : i32, i32
  }
}

module attributes {stable_mosaic.version = 11 : i64} {
  func.func @_encoder_stack_kernel(%arg0: i32, %arg1: i32, %arg2: memref<1x32x32xbf16, #tpu.memory_space<vmem>>, %arg3: memref<1x32x96xbf16, #tpu.memory_space<vmem>>, %arg4: memref<1x1x96xf32, #tpu.memory_space<vmem>>, %arg5: memref<1x32x32xbf16, #tpu.memory_space<vmem>>, %arg6: memref<1x1x32xf32, #tpu.memory_space<vmem>>, %arg7: memref<1x32x64xbf16, #tpu.memory_space<vmem>>, %arg8: memref<1x1x64xf32, #tpu.memory_space<vmem>>, %arg9: memref<1x64x32xbf16, #tpu.memory_space<vmem>>, %arg10: memref<1x1x32xf32, #tpu.memory_space<vmem>>, %arg11: memref<1x32xf32, #tpu.memory_space<vmem>>, %arg12: memref<1x32xf32, #tpu.memory_space<vmem>>, %arg13: memref<1x32x32xbf16, #tpu.memory_space<vmem>>, %arg14: memref<32x32xf32, #tpu.memory_space<vmem>>) attributes {dimension_semantics = [#tpu.dimension_semantics<parallel>, #tpu.dimension_semantics<arbitrary>], iteration_bounds = array<i64: 2, 2>, scalar_prefetch = 0 : i64, scratch_operands = 1 : i64, tpu.core_type = #tpu.core_type<tc>, window_params = [{transform_indices = @transform_0, window_bounds = array<i64: 1, 32, 32>}, {transform_indices = @transform_1, window_bounds = array<i64: 1, 32, 96>}, {transform_indices = @transform_2, window_bounds = array<i64: 1, 1, 96>}, {transform_indices = @transform_3, window_bounds = array<i64: 1, 32, 32>}, {transform_indices = @transform_4, window_bounds = array<i64: 1, 1, 32>}, {transform_indices = @transform_5, window_bounds = array<i64: 1, 32, 64>}, {transform_indices = @transform_6, window_bounds = array<i64: 1, 1, 64>}, {transform_indices = @transform_7, window_bounds = array<i64: 1, 64, 32>}, {transform_indices = @transform_8, window_bounds = array<i64: 1, 1, 32>}, {pipeline_mode = #tpu.pipeline_mode<synchronous>, transform_indices = @transform_9, window_bounds = array<i64: 1, 32>}, {pipeline_mode = #tpu.pipeline_mode<synchronous>, transform_indices = @transform_10, window_bounds = array<i64: 1, 32>}, {transform_indices = @transform_11, window_bounds = array<i64: 1, 32, 32>}]} {
    %c0_i32 = arith.constant 0 : i32
    %0 = arith.cmpi eq, %arg1, %c0_i32 : i32
    %1 = arith.extui %0 : i1 to i32
    %c0_i32_0 = arith.constant 0 : i32
    %2 = arith.cmpi ne, %1, %c0_i32_0 : i32
    scf.if %2 {
      %c0_77 = arith.constant 0 : index
      %c0_78 = arith.constant 0 : index
      %c0_79 = arith.constant 0 : index
      %202 = vector.load %arg2[%c0_77, %c0_78, %c0_79] : memref<1x32x32xbf16, #tpu.memory_space<vmem>>, vector<1x32x32xbf16>
      %203 = vector.shape_cast %202 : vector<1x32x32xbf16> to vector<32x32xbf16>
      %204 = arith.extf %203 : vector<32x32xbf16> to vector<32x32xf32>
      %c0_80 = arith.constant 0 : index
      %c0_81 = arith.constant 0 : index
      %205 = vector.load %arg14[%c0_80, %c0_81] : memref<32x32xf32, #tpu.memory_space<vmem>>, vector<32x32xf32>
      tpu.vector_store %arg14[%c0_80, %c0_81], %204 {strides = array<i32>} : memref<32x32xf32, #tpu.memory_space<vmem>>, vector<32x32xf32>,
    } else {
    }
    %c0 = arith.constant 0 : index
    %c0_1 = arith.constant 0 : index
    %3 = vector.load %arg14[%c0, %c0_1] : memref<32x32xf32, #tpu.memory_space<vmem>>, vector<32x32xf32>
    %cst = arith.constant dense<0.000000e+00> : vector<32xf32>
    %4 = vector.multi_reduction <add>, %3, %cst [1] : vector<32x32xf32> to vector<32xf32>
    %5 = vector.shape_cast %4 : vector<32xf32> to vector<32x1xf32>
    %cst_2 = arith.constant 3.200000e+01 : f32
    %6 = vector.broadcast %cst_2 : f32 to vector<32x1xf32>
    %7 = arith.divf %5, %6 : vector<32x1xf32>
    %8 = vector.broadcast %7 : vector<32x1xf32> to vector<32x32xf32>
    %9 = arith.subf %3, %8 : vector<32x32xf32>
    %10 = arith.mulf %9, %9 : vector<32x32xf32>
    %cst_3 = arith.constant dense<0.000000e+00> : vector<32xf32>
    %11 = vector.multi_reduction <add>, %10, %cst_3 [1] : vector<32x32xf32> to vector<32xf32>
    %12 = vector.shape_cast %11 : vector<32xf32> to vector<32x1xf32>
    %cst_4 = arith.constant 3.200000e+01 : f32
    %13 = vector.broadcast %cst_4 : f32 to vector<32x1xf32>
    %14 = arith.divf %12, %13 : vector<32x1xf32>
    %cst_5 = arith.constant 9.99999997E-7 : f32
    %15 = vector.broadcast %cst_5 : f32 to vector<32x1xf32>
    %16 = arith.addf %14, %15 : vector<32x1xf32>
    %17 = math.rsqrt %16 : vector<32x1xf32>
    %18 = vector.broadcast %17 : vector<32x1xf32> to vector<32x32xf32>
    %19 = arith.mulf %9, %18 : vector<32x32xf32>
    %20 = arith.truncf %19 : vector<32x32xf32> to vector<32x32xbf16>
    %c0_6 = arith.constant 0 : index
    %c0_7 = arith.constant 0 : index
    %c0_8 = arith.constant 0 : index
    %21 = vector.load %arg3[%c0_6, %c0_7, %c0_8] : memref<1x32x96xbf16, #tpu.memory_space<vmem>>, vector<1x32x96xbf16>
    %22 = vector.shape_cast %21 : vector<1x32x96xbf16> to vector<32x96xbf16>
    %cst_9 = arith.constant dense<0.000000e+00> : vector<32x96xf32>
    %23 = tpu.matmul %20, %22, %cst_9 {dimension_numbers = #tpu.dot_dimension_numbers<[1], [0], [0], [1], [0, 0, 1, 1], [], []>} : vector<32x32xbf16>, vector<32x96xbf16>, vector<32x96xf32> -> vector<32x96xf32>
    %c0_10 = arith.constant 0 : index
    %c0_11 = arith.constant 0 : index
    %c0_12 = arith.constant 0 : index
    %24 = vector.load %arg4[%c0_10, %c0_11, %c0_12] : memref<1x1x96xf32, #tpu.memory_space<vmem>>, vector<1x1x96xf32>
    %25 = vector.shape_cast %24 : vector<1x1x96xf32> to vector<1x96xf32>
    %26 = vector.broadcast %25 : vector<1x96xf32> to vector<32x96xf32>
    %27 = arith.addf %23, %26 : vector<32x96xf32>
    %28 = tpu.iota {dimensions = array<i32: 1>} : vector<32x32xi32>
    %c17_i32 = arith.constant 17 : i32
    %29 = vector.broadcast %c17_i32 : i32 to vector<32x32xi32>
    %30 = arith.cmpi slt, %28, %29 : vector<32x32xi32>
    %31 = vector.extract_strided_slice %27 {offsets = [0, 0], sizes = [32, 8], strides = [1, 1]} : vector<32x96xf32> to vector<32x8xf32>
    %32 = vector.extract_strided_slice %27 {offsets = [0, 32], sizes = [32, 8], strides = [1, 1]} : vector<32x96xf32> to vector<32x8xf32>
    %33 = vector.extract_strided_slice %27 {offsets = [0, 64], sizes = [32, 8], strides = [1, 1]} : vector<32x96xf32> to vector<32x8xf32>
    %34 = arith.truncf %31 : vector<32x8xf32> to vector<32x8xbf16>
    %35 = arith.truncf %32 : vector<32x8xf32> to vector<32x8xbf16>
    %cst_13 = arith.constant dense<0.000000e+00> : vector<32x32xf32>
    %36 = tpu.matmul %34, %35, %cst_13 {dimension_numbers = #tpu.dot_dimension_numbers<[1], [1], [0], [0], [0, 0, 1, 0], [], []>} : vector<32x8xbf16>, vector<32x8xbf16>, vector<32x32xf32> -> vector<32x32xf32>
    %cst_14 = arith.constant -1.000000e+30 : f32
    %37 = vector.broadcast %cst_14 : f32 to vector<32x32xf32>
    %38 = arith.select %30, %36, %37 : vector<32x32xi1>, vector<32x32xf32>
    %cst_15 = arith.constant dense<0xFF800000> : vector<32xf32>
    %39 = vector.multi_reduction <maximumf>, %38, %cst_15 [1] : vector<32x32xf32> to vector<32xf32>
    %40 = vector.shape_cast %39 : vector<32xf32> to vector<32x1xf32>
    %41 = vector.broadcast %40 : vector<32x1xf32> to vector<32x32xf32>
    %42 = arith.subf %38, %41 : vector<32x32xf32>
    %43 = math.exp %42 : vector<32x32xf32>
    %cst_16 = arith.constant dense<0.000000e+00> : vector<32xf32>
    %44 = vector.multi_reduction <add>, %43, %cst_16 [1] : vector<32x32xf32> to vector<32xf32>
    %45 = vector.shape_cast %44 : vector<32xf32> to vector<32x1xf32>
    %46 = tpu.reciprocal %45 {approx = true} : vector<32x1xf32> -> vector<32x1xf32>
    %47 = arith.truncf %43 : vector<32x32xf32> to vector<32x32xbf16>
    %48 = arith.truncf %33 : vector<32x8xf32> to vector<32x8xbf16>
    %cst_17 = arith.constant dense<0.000000e+00> : vector<32x8xf32>
    %49 = tpu.matmul %47, %48, %cst_17 {dimension_numbers = #tpu.dot_dimension_numbers<[1], [0], [0], [1], [0, 0, 1, 1], [], []>} : vector<32x32xbf16>, vector<32x8xbf16>, vector<32x8xf32> -> vector<32x8xf32>
    %50 = vector.broadcast %46 : vector<32x1xf32> to vector<32x8xf32>
    %51 = arith.mulf %49, %50 : vector<32x8xf32>
    %52 = vector.extract_strided_slice %27 {offsets = [0, 8], sizes = [32, 8], strides = [1, 1]} : vector<32x96xf32> to vector<32x8xf32>
    %53 = vector.extract_strided_slice %27 {offsets = [0, 40], sizes = [32, 8], strides = [1, 1]} : vector<32x96xf32> to vector<32x8xf32>
    %54 = vector.extract_strided_slice %27 {offsets = [0, 72], sizes = [32, 8], strides = [1, 1]} : vector<32x96xf32> to vector<32x8xf32>
    %55 = arith.truncf %52 : vector<32x8xf32> to vector<32x8xbf16>
    %56 = arith.truncf %53 : vector<32x8xf32> to vector<32x8xbf16>
    %cst_18 = arith.constant dense<0.000000e+00> : vector<32x32xf32>
    %57 = tpu.matmul %55, %56, %cst_18 {dimension_numbers = #tpu.dot_dimension_numbers<[1], [1], [0], [0], [0, 0, 1, 0], [], []>} : vector<32x8xbf16>, vector<32x8xbf16>, vector<32x32xf32> -> vector<32x32xf32>
    %cst_19 = arith.constant -1.000000e+30 : f32
    %58 = vector.broadcast %cst_19 : f32 to vector<32x32xf32>
    %59 = arith.select %30, %57, %58 : vector<32x32xi1>, vector<32x32xf32>
    %cst_20 = arith.constant dense<0xFF800000> : vector<32xf32>
    %60 = vector.multi_reduction <maximumf>, %59, %cst_20 [1] : vector<32x32xf32> to vector<32xf32>
    %61 = vector.shape_cast %60 : vector<32xf32> to vector<32x1xf32>
    %62 = vector.broadcast %61 : vector<32x1xf32> to vector<32x32xf32>
    %63 = arith.subf %59, %62 : vector<32x32xf32>
    %64 = math.exp %63 : vector<32x32xf32>
    %cst_21 = arith.constant dense<0.000000e+00> : vector<32xf32>
    %65 = vector.multi_reduction <add>, %64, %cst_21 [1] : vector<32x32xf32> to vector<32xf32>
    %66 = vector.shape_cast %65 : vector<32xf32> to vector<32x1xf32>
    %67 = tpu.reciprocal %66 {approx = true} : vector<32x1xf32> -> vector<32x1xf32>
    %68 = arith.truncf %64 : vector<32x32xf32> to vector<32x32xbf16>
    %69 = arith.truncf %54 : vector<32x8xf32> to vector<32x8xbf16>
    %cst_22 = arith.constant dense<0.000000e+00> : vector<32x8xf32>
    %70 = tpu.matmul %68, %69, %cst_22 {dimension_numbers = #tpu.dot_dimension_numbers<[1], [0], [0], [1], [0, 0, 1, 1], [], []>} : vector<32x32xbf16>, vector<32x8xbf16>, vector<32x8xf32> -> vector<32x8xf32>
    %71 = vector.broadcast %67 : vector<32x1xf32> to vector<32x8xf32>
    %72 = arith.mulf %70, %71 : vector<32x8xf32>
    %73 = vector.extract_strided_slice %27 {offsets = [0, 16], sizes = [32, 8], strides = [1, 1]} : vector<32x96xf32> to vector<32x8xf32>
    %74 = vector.extract_strided_slice %27 {offsets = [0, 48], sizes = [32, 8], strides = [1, 1]} : vector<32x96xf32> to vector<32x8xf32>
    %75 = vector.extract_strided_slice %27 {offsets = [0, 80], sizes = [32, 8], strides = [1, 1]} : vector<32x96xf32> to vector<32x8xf32>
    %76 = arith.truncf %73 : vector<32x8xf32> to vector<32x8xbf16>
    %77 = arith.truncf %74 : vector<32x8xf32> to vector<32x8xbf16>
    %cst_23 = arith.constant dense<0.000000e+00> : vector<32x32xf32>
    %78 = tpu.matmul %76, %77, %cst_23 {dimension_numbers = #tpu.dot_dimension_numbers<[1], [1], [0], [0], [0, 0, 1, 0], [], []>} : vector<32x8xbf16>, vector<32x8xbf16>, vector<32x32xf32> -> vector<32x32xf32>
    %cst_24 = arith.constant -1.000000e+30 : f32
    %79 = vector.broadcast %cst_24 : f32 to vector<32x32xf32>
    %80 = arith.select %30, %78, %79 : vector<32x32xi1>, vector<32x32xf32>
    %cst_25 = arith.constant dense<0xFF800000> : vector<32xf32>
    %81 = vector.multi_reduction <maximumf>, %80, %cst_25 [1] : vector<32x32xf32> to vector<32xf32>
    %82 = vector.shape_cast %81 : vector<32xf32> to vector<32x1xf32>
    %83 = vector.broadcast %82 : vector<32x1xf32> to vector<32x32xf32>
    %84 = arith.subf %80, %83 : vector<32x32xf32>
    %85 = math.exp %84 : vector<32x32xf32>
    %cst_26 = arith.constant dense<0.000000e+00> : vector<32xf32>
    %86 = vector.multi_reduction <add>, %85, %cst_26 [1] : vector<32x32xf32> to vector<32xf32>
    %87 = vector.shape_cast %86 : vector<32xf32> to vector<32x1xf32>
    %88 = tpu.reciprocal %87 {approx = true} : vector<32x1xf32> -> vector<32x1xf32>
    %89 = arith.truncf %85 : vector<32x32xf32> to vector<32x32xbf16>
    %90 = arith.truncf %75 : vector<32x8xf32> to vector<32x8xbf16>
    %cst_27 = arith.constant dense<0.000000e+00> : vector<32x8xf32>
    %91 = tpu.matmul %89, %90, %cst_27 {dimension_numbers = #tpu.dot_dimension_numbers<[1], [0], [0], [1], [0, 0, 1, 1], [], []>} : vector<32x32xbf16>, vector<32x8xbf16>, vector<32x8xf32> -> vector<32x8xf32>
    %92 = vector.broadcast %88 : vector<32x1xf32> to vector<32x8xf32>
    %93 = arith.mulf %91, %92 : vector<32x8xf32>
    %94 = vector.extract_strided_slice %27 {offsets = [0, 24], sizes = [32, 8], strides = [1, 1]} : vector<32x96xf32> to vector<32x8xf32>
    %95 = vector.extract_strided_slice %27 {offsets = [0, 56], sizes = [32, 8], strides = [1, 1]} : vector<32x96xf32> to vector<32x8xf32>
    %96 = vector.extract_strided_slice %27 {offsets = [0, 88], sizes = [32, 8], strides = [1, 1]} : vector<32x96xf32> to vector<32x8xf32>
    %97 = arith.truncf %94 : vector<32x8xf32> to vector<32x8xbf16>
    %98 = arith.truncf %95 : vector<32x8xf32> to vector<32x8xbf16>
    %cst_28 = arith.constant dense<0.000000e+00> : vector<32x32xf32>
    %99 = tpu.matmul %97, %98, %cst_28 {dimension_numbers = #tpu.dot_dimension_numbers<[1], [1], [0], [0], [0, 0, 1, 0], [], []>} : vector<32x8xbf16>, vector<32x8xbf16>, vector<32x32xf32> -> vector<32x32xf32>
    %cst_29 = arith.constant -1.000000e+30 : f32
    %100 = vector.broadcast %cst_29 : f32 to vector<32x32xf32>
    %101 = arith.select %30, %99, %100 : vector<32x32xi1>, vector<32x32xf32>
    %cst_30 = arith.constant dense<0xFF800000> : vector<32xf32>
    %102 = vector.multi_reduction <maximumf>, %101, %cst_30 [1] : vector<32x32xf32> to vector<32xf32>
    %103 = vector.shape_cast %102 : vector<32xf32> to vector<32x1xf32>
    %104 = vector.broadcast %103 : vector<32x1xf32> to vector<32x32xf32>
    %105 = arith.subf %101, %104 : vector<32x32xf32>
    %106 = math.exp %105 : vector<32x32xf32>
    %cst_31 = arith.constant dense<0.000000e+00> : vector<32xf32>
    %107 = vector.multi_reduction <add>, %106, %cst_31 [1] : vector<32x32xf32> to vector<32xf32>
    %108 = vector.shape_cast %107 : vector<32xf32> to vector<32x1xf32>
    %109 = tpu.reciprocal %108 {approx = true} : vector<32x1xf32> -> vector<32x1xf32>
    %110 = arith.truncf %106 : vector<32x32xf32> to vector<32x32xbf16>
    %111 = arith.truncf %96 : vector<32x8xf32> to vector<32x8xbf16>
    %cst_32 = arith.constant dense<0.000000e+00> : vector<32x8xf32>
    %112 = tpu.matmul %110, %111, %cst_32 {dimension_numbers = #tpu.dot_dimension_numbers<[1], [0], [0], [1], [0, 0, 1, 1], [], []>} : vector<32x32xbf16>, vector<32x8xbf16>, vector<32x8xf32> -> vector<32x8xf32>
    %113 = vector.broadcast %109 : vector<32x1xf32> to vector<32x8xf32>
    %114 = arith.mulf %112, %113 : vector<32x8xf32>
    %115 = tpu.concatenate %51, %72, %93, %114 in 1 : vector<32x8xf32>, vector<32x8xf32>, vector<32x8xf32>, vector<32x8xf32> -> vector<32x32xf32>
    %116 = arith.truncf %115 : vector<32x32xf32> to vector<32x32xbf16>
    %c0_33 = arith.constant 0 : index
    %c0_34 = arith.constant 0 : index
    %c0_35 = arith.constant 0 : index
    %117 = vector.load %arg5[%c0_33, %c0_34, %c0_35] : memref<1x32x32xbf16, #tpu.memory_space<vmem>>, vector<1x32x32xbf16>
    %118 = vector.shape_cast %117 : vector<1x32x32xbf16> to vector<32x32xbf16>
    %cst_36 = arith.constant dense<0.000000e+00> : vector<32x32xf32>
    %119 = tpu.matmul %116, %118, %cst_36 {dimension_numbers = #tpu.dot_dimension_numbers<[1], [0], [0], [1], [0, 0, 1, 1], [], []>} : vector<32x32xbf16>, vector<32x32xbf16>, vector<32x32xf32> -> vector<32x32xf32>
    %c0_37 = arith.constant 0 : index
    %c0_38 = arith.constant 0 : index
    %c0_39 = arith.constant 0 : index
    %120 = vector.load %arg6[%c0_37, %c0_38, %c0_39] : memref<1x1x32xf32, #tpu.memory_space<vmem>>, vector<1x1x32xf32>
    %121 = vector.shape_cast %120 : vector<1x1x32xf32> to vector<1x32xf32>
    %122 = vector.broadcast %121 : vector<1x32xf32> to vector<32x32xf32>
    %123 = arith.addf %119, %122 : vector<32x32xf32>
    %124 = arith.addf %3, %123 : vector<32x32xf32>
    %cst_40 = arith.constant dense<0.000000e+00> : vector<32xf32>
    %125 = vector.multi_reduction <add>, %124, %cst_40 [1] : vector<32x32xf32> to vector<32xf32>
    %126 = vector.shape_cast %125 : vector<32xf32> to vector<32x1xf32>
    %cst_41 = arith.constant 3.200000e+01 : f32
    %127 = vector.broadcast %cst_41 : f32 to vector<32x1xf32>
    %128 = arith.divf %126, %127 : vector<32x1xf32>
    %129 = vector.broadcast %128 : vector<32x1xf32> to vector<32x32xf32>
    %130 = arith.subf %124, %129 : vector<32x32xf32>
    %131 = arith.mulf %130, %130 : vector<32x32xf32>
    %cst_42 = arith.constant dense<0.000000e+00> : vector<32xf32>
    %132 = vector.multi_reduction <add>, %131, %cst_42 [1] : vector<32x32xf32> to vector<32xf32>
    %133 = vector.shape_cast %132 : vector<32xf32> to vector<32x1xf32>
    %cst_43 = arith.constant 3.200000e+01 : f32
    %134 = vector.broadcast %cst_43 : f32 to vector<32x1xf32>
    %135 = arith.divf %133, %134 : vector<32x1xf32>
    %cst_44 = arith.constant 9.99999997E-7 : f32
    %136 = vector.broadcast %cst_44 : f32 to vector<32x1xf32>
    %137 = arith.addf %135, %136 : vector<32x1xf32>
    %138 = math.rsqrt %137 : vector<32x1xf32>
    %139 = vector.broadcast %138 : vector<32x1xf32> to vector<32x32xf32>
    %140 = arith.mulf %130, %139 : vector<32x32xf32>
    %141 = arith.truncf %140 : vector<32x32xf32> to vector<32x32xbf16>
    %c0_45 = arith.constant 0 : index
    %c0_46 = arith.constant 0 : index
    %c0_47 = arith.constant 0 : index
    %142 = vector.load %arg7[%c0_45, %c0_46, %c0_47] : memref<1x32x64xbf16, #tpu.memory_space<vmem>>, vector<1x32x64xbf16>
    %143 = vector.shape_cast %142 : vector<1x32x64xbf16> to vector<32x64xbf16>
    %cst_48 = arith.constant dense<0.000000e+00> : vector<32x64xf32>
    %144 = tpu.matmul %141, %143, %cst_48 {dimension_numbers = #tpu.dot_dimension_numbers<[1], [0], [0], [1], [0, 0, 1, 1], [], []>} : vector<32x32xbf16>, vector<32x64xbf16>, vector<32x64xf32> -> vector<32x64xf32>
    %c0_49 = arith.constant 0 : index
    %c0_50 = arith.constant 0 : index
    %c0_51 = arith.constant 0 : index
    %145 = vector.load %arg8[%c0_49, %c0_50, %c0_51] : memref<1x1x64xf32, #tpu.memory_space<vmem>>, vector<1x1x64xf32>
    %146 = vector.shape_cast %145 : vector<1x1x64xf32> to vector<1x64xf32>
    %147 = vector.broadcast %146 : vector<1x64xf32> to vector<32x64xf32>
    %148 = arith.addf %144, %147 : vector<32x64xf32>
    %cst_52 = arith.constant 5.000000e-01 : f32
    %149 = vector.broadcast %cst_52 : f32 to vector<32x64xf32>
    %150 = arith.mulf %149, %148 : vector<32x64xf32>
    %cst_53 = arith.constant 0.707106769 : f32
    %151 = vector.broadcast %cst_53 : f32 to vector<32x64xf32>
    %152 = arith.mulf %148, %151 : vector<32x64xf32>
    %153 = math.absf %152 : vector<32x64xf32>
    %cst_54 = arith.constant 0.327591091 : f32
    %154 = vector.broadcast %cst_54 : f32 to vector<32x64xf32>
    %155 = arith.mulf %154, %153 : vector<32x64xf32>
    %cst_55 = arith.constant 1.000000e+00 : f32
    %156 = vector.broadcast %cst_55 : f32 to vector<32x64xf32>
    %157 = arith.addf %156, %155 : vector<32x64xf32>
    %cst_56 = arith.constant 1.000000e+00 : f32
    %158 = vector.broadcast %cst_56 : f32 to vector<32x64xf32>
    %159 = arith.divf %158, %157 : vector<32x64xf32>
    %cst_57 = arith.constant 1.06140542 : f32
    %160 = vector.broadcast %cst_57 : f32 to vector<32x64xf32>
    %161 = arith.mulf %160, %159 : vector<32x64xf32>
    %cst_58 = arith.constant -1.45315206 : f32
    %162 = vector.broadcast %cst_58 : f32 to vector<32x64xf32>
    %163 = arith.addf %161, %162 : vector<32x64xf32>
    %164 = arith.mulf %163, %159 : vector<32x64xf32>
    %cst_59 = arith.constant 1.42141378 : f32
    %165 = vector.broadcast %cst_59 : f32 to vector<32x64xf32>
    %166 = arith.addf %164, %165 : vector<32x64xf32>
    %167 = arith.mulf %166, %159 : vector<32x64xf32>
    %cst_60 = arith.constant -0.284496725 : f32
    %168 = vector.broadcast %cst_60 : f32 to vector<32x64xf32>
    %169 = arith.addf %167, %168 : vector<32x64xf32>
    %170 = arith.mulf %169, %159 : vector<32x64xf32>
    %cst_61 = arith.constant 0.254829586 : f32
    %171 = vector.broadcast %cst_61 : f32 to vector<32x64xf32>
    %172 = arith.addf %170, %171 : vector<32x64xf32>
    %173 = arith.mulf %172, %159 : vector<32x64xf32>
    %cst_62 = arith.constant 0.000000e+00 : f32
    %174 = vector.broadcast %cst_62 : f32 to vector<32x64xf32>
    %175 = arith.subf %174, %153 : vector<32x64xf32>
    %176 = arith.mulf %175, %153 : vector<32x64xf32>
    %177 = math.exp %176 : vector<32x64xf32>
    %178 = arith.mulf %173, %177 : vector<32x64xf32>
    %cst_63 = arith.constant 1.000000e+00 : f32
    %179 = vector.broadcast %cst_63 : f32 to vector<32x64xf32>
    %180 = arith.subf %179, %178 : vector<32x64xf32>
    %cst_64 = arith.constant 0.000000e+00 : f32
    %181 = vector.broadcast %cst_64 : f32 to vector<32x64xf32>
    %182 = arith.cmpf oge, %152, %181 : vector<32x64xf32>
    %cst_65 = arith.constant 0.000000e+00 : f32
    %183 = vector.broadcast %cst_65 : f32 to vector<32x64xf32>
    %184 = arith.subf %183, %180 : vector<32x64xf32>
    %185 = arith.select %182, %180, %184 : vector<32x64xi1>, vector<32x64xf32>
    %cst_66 = arith.constant 1.000000e+00 : f32
    %186 = vector.broadcast %cst_66 : f32 to vector<32x64xf32>
    %187 = arith.addf %186, %185 : vector<32x64xf32>
    %188 = arith.mulf %150, %187 : vector<32x64xf32>
    %189 = arith.truncf %188 : vector<32x64xf32> to vector<32x64xbf16>
    %c0_67 = arith.constant 0 : index
    %c0_68 = arith.constant 0 : index
    %c0_69 = arith.constant 0 : index
    %190 = vector.load %arg9[%c0_67, %c0_68, %c0_69] : memref<1x64x32xbf16, #tpu.memory_space<vmem>>, vector<1x64x32xbf16>
    %191 = vector.shape_cast %190 : vector<1x64x32xbf16> to vector<64x32xbf16>
    %cst_70 = arith.constant dense<0.000000e+00> : vector<32x32xf32>
    %192 = tpu.matmul %189, %191, %cst_70 {dimension_numbers = #tpu.dot_dimension_numbers<[1], [0], [0], [1], [0, 0, 1, 1], [], []>} : vector<32x64xbf16>, vector<64x32xbf16>, vector<32x32xf32> -> vector<32x32xf32>
    %c0_71 = arith.constant 0 : index
    %c0_72 = arith.constant 0 : index
    %c0_73 = arith.constant 0 : index
    %193 = vector.load %arg10[%c0_71, %c0_72, %c0_73] : memref<1x1x32xf32, #tpu.memory_space<vmem>>, vector<1x1x32xf32>
    %194 = vector.shape_cast %193 : vector<1x1x32xf32> to vector<1x32xf32>
    %195 = vector.broadcast %194 : vector<1x32xf32> to vector<32x32xf32>
    %196 = arith.addf %192, %195 : vector<32x32xf32>
    %197 = arith.addf %124, %196 : vector<32x32xf32>
    %c0_74 = arith.constant 0 : index
    %c0_75 = arith.constant 0 : index
    %198 = vector.load %arg14[%c0_74, %c0_75] : memref<32x32xf32, #tpu.memory_space<vmem>>, vector<32x32xf32>
    tpu.vector_store %arg14[%c0_74, %c0_75], %197 {strides = array<i32>} : memref<32x32xf32, #tpu.memory_space<vmem>>, vector<32x32xf32>,
    %c1_i32 = arith.constant 1 : i32
    %199 = arith.cmpi eq, %arg1, %c1_i32 : i32
    %200 = arith.extui %199 : i1 to i32
    %c0_i32_76 = arith.constant 0 : i32
    %201 = arith.cmpi ne, %200, %c0_i32_76 : i32
    scf.if %201 {
      %cst_77 = arith.constant dense<0.000000e+00> : vector<32xf32>
      %202 = vector.multi_reduction <add>, %197, %cst_77 [1] : vector<32x32xf32> to vector<32xf32>
      %203 = vector.shape_cast %202 : vector<32xf32> to vector<32x1xf32>
      %cst_78 = arith.constant 3.200000e+01 : f32
      %204 = vector.broadcast %cst_78 : f32 to vector<32x1xf32>
      %205 = arith.divf %203, %204 : vector<32x1xf32>
      %206 = vector.broadcast %205 : vector<32x1xf32> to vector<32x32xf32>
      %207 = arith.subf %197, %206 : vector<32x32xf32>
      %208 = arith.mulf %207, %207 : vector<32x32xf32>
      %cst_79 = arith.constant dense<0.000000e+00> : vector<32xf32>
      %209 = vector.multi_reduction <add>, %208, %cst_79 [1] : vector<32x32xf32> to vector<32xf32>
      %210 = vector.shape_cast %209 : vector<32xf32> to vector<32x1xf32>
      %cst_80 = arith.constant 3.200000e+01 : f32
      %211 = vector.broadcast %cst_80 : f32 to vector<32x1xf32>
      %212 = arith.divf %210, %211 : vector<32x1xf32>
      %cst_81 = arith.constant 9.99999997E-7 : f32
      %213 = vector.broadcast %cst_81 : f32 to vector<32x1xf32>
      %214 = arith.addf %212, %213 : vector<32x1xf32>
      %215 = math.rsqrt %214 : vector<32x1xf32>
      %216 = vector.broadcast %215 : vector<32x1xf32> to vector<32x32xf32>
      %217 = arith.mulf %207, %216 : vector<32x32xf32>
      %c0_82 = arith.constant 0 : index
      %c0_83 = arith.constant 0 : index
      %218 = vector.load %arg11[%c0_82, %c0_83] : memref<1x32xf32, #tpu.memory_space<vmem>>, vector<1x32xf32>
      %219 = vector.broadcast %218 : vector<1x32xf32> to vector<32x32xf32>
      %220 = arith.mulf %217, %219 : vector<32x32xf32>
      %c0_84 = arith.constant 0 : index
      %c0_85 = arith.constant 0 : index
      %221 = vector.load %arg12[%c0_84, %c0_85] : memref<1x32xf32, #tpu.memory_space<vmem>>, vector<1x32xf32>
      %222 = vector.broadcast %221 : vector<1x32xf32> to vector<32x32xf32>
      %223 = arith.addf %220, %222 : vector<32x32xf32>
      %224 = arith.truncf %223 : vector<32x32xf32> to vector<32x32xbf16>
      %c0_86 = arith.constant 0 : index
      %c0_87 = arith.constant 0 : index
      %c0_88 = arith.constant 0 : index
      %225 = vector.load %arg13[%c0_86, %c0_87, %c0_88] : memref<1x32x32xbf16, #tpu.memory_space<vmem>>, vector<1x32x32xbf16>
      %226 = vector.shape_cast %225 : vector<1x32x32xbf16> to vector<32x32xbf16>
      %227 = vector.shape_cast %224 : vector<32x32xbf16> to vector<1x32x32xbf16>
      tpu.vector_store %arg13[%c0_86, %c0_87, %c0_88], %227 {strides = array<i32>} : memref<1x32x32xbf16, #tpu.memory_space<vmem>>, vector<1x32x32xbf16>,
    } else {
    }
    return
  }
  func.func @transform_0(%arg0: i32, %arg1: i32) -> (i32, i32, i32) {
    %c0_i32 = arith.constant 0 : i32
    %c0_i32_0 = arith.constant 0 : i32
    %c0_i32_1 = arith.constant 0 : i32
    return %arg0, %c0_i32, %c0_i32_0 : i32, i32, i32
  }
  func.func @transform_1(%arg0: i32, %arg1: i32) -> (i32, i32, i32) {
    %c0_i32 = arith.constant 0 : i32
    %c0_i32_0 = arith.constant 0 : i32
    %c0_i32_1 = arith.constant 0 : i32
    return %arg1, %c0_i32, %c0_i32_0 : i32, i32, i32
  }
  func.func @transform_2(%arg0: i32, %arg1: i32) -> (i32, i32, i32) {
    %c0_i32 = arith.constant 0 : i32
    %c0_i32_0 = arith.constant 0 : i32
    %c0_i32_1 = arith.constant 0 : i32
    return %arg1, %c0_i32, %c0_i32_0 : i32, i32, i32
  }
  func.func @transform_3(%arg0: i32, %arg1: i32) -> (i32, i32, i32) {
    %c0_i32 = arith.constant 0 : i32
    %c0_i32_0 = arith.constant 0 : i32
    %c0_i32_1 = arith.constant 0 : i32
    return %arg1, %c0_i32, %c0_i32_0 : i32, i32, i32
  }
  func.func @transform_4(%arg0: i32, %arg1: i32) -> (i32, i32, i32) {
    %c0_i32 = arith.constant 0 : i32
    %c0_i32_0 = arith.constant 0 : i32
    %c0_i32_1 = arith.constant 0 : i32
    return %arg1, %c0_i32, %c0_i32_0 : i32, i32, i32
  }
  func.func @transform_5(%arg0: i32, %arg1: i32) -> (i32, i32, i32) {
    %c0_i32 = arith.constant 0 : i32
    %c0_i32_0 = arith.constant 0 : i32
    %c0_i32_1 = arith.constant 0 : i32
    return %arg1, %c0_i32, %c0_i32_0 : i32, i32, i32
  }
  func.func @transform_6(%arg0: i32, %arg1: i32) -> (i32, i32, i32) {
    %c0_i32 = arith.constant 0 : i32
    %c0_i32_0 = arith.constant 0 : i32
    %c0_i32_1 = arith.constant 0 : i32
    return %arg1, %c0_i32, %c0_i32_0 : i32, i32, i32
  }
  func.func @transform_7(%arg0: i32, %arg1: i32) -> (i32, i32, i32) {
    %c0_i32 = arith.constant 0 : i32
    %c0_i32_0 = arith.constant 0 : i32
    %c0_i32_1 = arith.constant 0 : i32
    return %arg1, %c0_i32, %c0_i32_0 : i32, i32, i32
  }
  func.func @transform_8(%arg0: i32, %arg1: i32) -> (i32, i32, i32) {
    %c0_i32 = arith.constant 0 : i32
    %c0_i32_0 = arith.constant 0 : i32
    %c0_i32_1 = arith.constant 0 : i32
    return %arg1, %c0_i32, %c0_i32_0 : i32, i32, i32
  }
  func.func @transform_9(%arg0: i32, %arg1: i32) -> (i32, i32) {
    %c0_i32 = arith.constant 0 : i32
    %c0_i32_0 = arith.constant 0 : i32
    %c0_i32_1 = arith.constant 0 : i32
    return %c0_i32, %c0_i32_0 : i32, i32
  }
  func.func @transform_10(%arg0: i32, %arg1: i32) -> (i32, i32) {
    %c0_i32 = arith.constant 0 : i32
    %c0_i32_0 = arith.constant 0 : i32
    %c0_i32_1 = arith.constant 0 : i32
    return %c0_i32, %c0_i32_0 : i32, i32
  }
  func.func @transform_11(%arg0: i32, %arg1: i32) -> (i32, i32, i32) {
    %c0_i32 = arith.constant 0 : i32
    %c0_i32_0 = arith.constant 0 : i32
    %c0_i32_1 = arith.constant 0 : i32
    return %arg0, %c0_i32, %c0_i32_0 : i32, i32, i32
  }
}

module attributes {stable_mosaic.version = 11 : i64} {
  func.func @_dec_pair_kernel(%arg0: i32, %arg1: memref<16x32xbf16, #tpu.memory_space<vmem>>, %arg2: memref<32x128xbf16, #tpu.memory_space<vmem>>, %arg3: memref<1x128xf32, #tpu.memory_space<vmem>>, %arg4: memref<32x64xbf16, #tpu.memory_space<vmem>>, %arg5: memref<1x64xf32, #tpu.memory_space<vmem>>, %arg6: memref<16x256xbf16, #tpu.memory_space<vmem>>) attributes {dimension_semantics = [#tpu.dimension_semantics<parallel>], iteration_bounds = array<i64: 1>, scalar_prefetch = 0 : i64, scratch_operands = 0 : i64, tpu.core_type = #tpu.core_type<tc>, window_params = [{transform_indices = @transform_0, window_bounds = array<i64: 16, 32>}, {pipeline_mode = #tpu.pipeline_mode<synchronous>, transform_indices = @transform_1, window_bounds = array<i64: 32, 128>}, {pipeline_mode = #tpu.pipeline_mode<synchronous>, transform_indices = @transform_2, window_bounds = array<i64: 1, 128>}, {pipeline_mode = #tpu.pipeline_mode<synchronous>, transform_indices = @transform_3, window_bounds = array<i64: 32, 64>}, {pipeline_mode = #tpu.pipeline_mode<synchronous>, transform_indices = @transform_4, window_bounds = array<i64: 1, 64>}, {transform_indices = @transform_5, window_bounds = array<i64: 16, 256>}]} {
    %c0 = arith.constant 0 : index
    %c0_0 = arith.constant 0 : index
    %0 = vector.load %arg1[%c0, %c0_0] : memref<16x32xbf16, #tpu.memory_space<vmem>>, vector<16x32xbf16>
    %c0_1 = arith.constant 0 : index
    %c0_2 = arith.constant 0 : index
    %1 = vector.load %arg2[%c0_1, %c0_2] : memref<32x128xbf16, #tpu.memory_space<vmem>>, vector<32x128xbf16>
    %cst = arith.constant dense<0.000000e+00> : vector<16x128xf32>
    %2 = tpu.matmul %0, %1, %cst {dimension_numbers = #tpu.dot_dimension_numbers<[1], [0], [0], [1], [0, 0, 1, 1], [], []>} : vector<16x32xbf16>, vector<32x128xbf16>, vector<16x128xf32> -> vector<16x128xf32>
    %c0_3 = arith.constant 0 : index
    %c0_4 = arith.constant 0 : index
    %3 = vector.load %arg3[%c0_3, %c0_4] : memref<1x128xf32, #tpu.memory_space<vmem>>, vector<1x128xf32>
    %4 = vector.broadcast %3 : vector<1x128xf32> to vector<16x128xf32>
    %5 = arith.addf %2, %4 : vector<16x128xf32>
    %cst_5 = arith.constant 0.000000e+00 : f32
    %6 = vector.broadcast %cst_5 : f32 to vector<16x128xf32>
    %7 = arith.maximumf %5, %6 : vector<16x128xf32>
    %8 = vector.extract_strided_slice %7 {offsets = [0, 0], sizes = [16, 32], strides = [1, 1]} : vector<16x128xf32> to vector<16x32xf32>
    %9 = arith.truncf %8 : vector<16x32xf32> to vector<16x32xbf16>
    %c0_6 = arith.constant 0 : index
    %c0_7 = arith.constant 0 : index
    %10 = vector.load %arg4[%c0_6, %c0_7] : memref<32x64xbf16, #tpu.memory_space<vmem>>, vector<32x64xbf16>
    %cst_8 = arith.constant dense<0.000000e+00> : vector<16x64xf32>
    %11 = tpu.matmul %9, %10, %cst_8 {dimension_numbers = #tpu.dot_dimension_numbers<[1], [0], [0], [1], [0, 0, 1, 1], [], []>} : vector<16x32xbf16>, vector<32x64xbf16>, vector<16x64xf32> -> vector<16x64xf32>
    %c0_9 = arith.constant 0 : index
    %c0_10 = arith.constant 0 : index
    %12 = vector.load %arg5[%c0_9, %c0_10] : memref<1x64xf32, #tpu.memory_space<vmem>>, vector<1x64xf32>
    %13 = vector.broadcast %12 : vector<1x64xf32> to vector<16x64xf32>
    %14 = arith.addf %11, %13 : vector<16x64xf32>
    %cst_11 = arith.constant 0.000000e+00 : f32
    %15 = vector.broadcast %cst_11 : f32 to vector<16x64xf32>
    %16 = arith.maximumf %14, %15 : vector<16x64xf32>
    %17 = vector.extract_strided_slice %7 {offsets = [0, 32], sizes = [16, 32], strides = [1, 1]} : vector<16x128xf32> to vector<16x32xf32>
    %18 = arith.truncf %17 : vector<16x32xf32> to vector<16x32xbf16>
    %c0_12 = arith.constant 0 : index
    %c0_13 = arith.constant 0 : index
    %19 = vector.load %arg4[%c0_12, %c0_13] : memref<32x64xbf16, #tpu.memory_space<vmem>>, vector<32x64xbf16>
    %cst_14 = arith.constant dense<0.000000e+00> : vector<16x64xf32>
    %20 = tpu.matmul %18, %19, %cst_14 {dimension_numbers = #tpu.dot_dimension_numbers<[1], [0], [0], [1], [0, 0, 1, 1], [], []>} : vector<16x32xbf16>, vector<32x64xbf16>, vector<16x64xf32> -> vector<16x64xf32>
    %c0_15 = arith.constant 0 : index
    %c0_16 = arith.constant 0 : index
    %21 = vector.load %arg5[%c0_15, %c0_16] : memref<1x64xf32, #tpu.memory_space<vmem>>, vector<1x64xf32>
    %22 = vector.broadcast %21 : vector<1x64xf32> to vector<16x64xf32>
    %23 = arith.addf %20, %22 : vector<16x64xf32>
    %cst_17 = arith.constant 0.000000e+00 : f32
    %24 = vector.broadcast %cst_17 : f32 to vector<16x64xf32>
    %25 = arith.maximumf %23, %24 : vector<16x64xf32>
    %26 = vector.extract_strided_slice %7 {offsets = [0, 64], sizes = [16, 32], strides = [1, 1]} : vector<16x128xf32> to vector<16x32xf32>
    %27 = arith.truncf %26 : vector<16x32xf32> to vector<16x32xbf16>
    %c0_18 = arith.constant 0 : index
    %c0_19 = arith.constant 0 : index
    %28 = vector.load %arg4[%c0_18, %c0_19] : memref<32x64xbf16, #tpu.memory_space<vmem>>, vector<32x64xbf16>
    %cst_20 = arith.constant dense<0.000000e+00> : vector<16x64xf32>
    %29 = tpu.matmul %27, %28, %cst_20 {dimension_numbers = #tpu.dot_dimension_numbers<[1], [0], [0], [1], [0, 0, 1, 1], [], []>} : vector<16x32xbf16>, vector<32x64xbf16>, vector<16x64xf32> -> vector<16x64xf32>
    %c0_21 = arith.constant 0 : index
    %c0_22 = arith.constant 0 : index
    %30 = vector.load %arg5[%c0_21, %c0_22] : memref<1x64xf32, #tpu.memory_space<vmem>>, vector<1x64xf32>
    %31 = vector.broadcast %30 : vector<1x64xf32> to vector<16x64xf32>
    %32 = arith.addf %29, %31 : vector<16x64xf32>
    %cst_23 = arith.constant 0.000000e+00 : f32
    %33 = vector.broadcast %cst_23 : f32 to vector<16x64xf32>
    %34 = arith.maximumf %32, %33 : vector<16x64xf32>
    %35 = vector.extract_strided_slice %7 {offsets = [0, 96], sizes = [16, 32], strides = [1, 1]} : vector<16x128xf32> to vector<16x32xf32>
    %36 = arith.truncf %35 : vector<16x32xf32> to vector<16x32xbf16>
    %c0_24 = arith.constant 0 : index
    %c0_25 = arith.constant 0 : index
    %37 = vector.load %arg4[%c0_24, %c0_25] : memref<32x64xbf16, #tpu.memory_space<vmem>>, vector<32x64xbf16>
    %cst_26 = arith.constant dense<0.000000e+00> : vector<16x64xf32>
    %38 = tpu.matmul %36, %37, %cst_26 {dimension_numbers = #tpu.dot_dimension_numbers<[1], [0], [0], [1], [0, 0, 1, 1], [], []>} : vector<16x32xbf16>, vector<32x64xbf16>, vector<16x64xf32> -> vector<16x64xf32>
    %c0_27 = arith.constant 0 : index
    %c0_28 = arith.constant 0 : index
    %39 = vector.load %arg5[%c0_27, %c0_28] : memref<1x64xf32, #tpu.memory_space<vmem>>, vector<1x64xf32>
    %40 = vector.broadcast %39 : vector<1x64xf32> to vector<16x64xf32>
    %41 = arith.addf %38, %40 : vector<16x64xf32>
    %cst_29 = arith.constant 0.000000e+00 : f32
    %42 = vector.broadcast %cst_29 : f32 to vector<16x64xf32>
    %43 = arith.maximumf %41, %42 : vector<16x64xf32>
    %44 = tpu.concatenate %16, %25, %34, %43 in 1 : vector<16x64xf32>, vector<16x64xf32>, vector<16x64xf32>, vector<16x64xf32> -> vector<16x256xf32>
    %45 = arith.truncf %44 : vector<16x256xf32> to vector<16x256xbf16>
    %c0_30 = arith.constant 0 : index
    %c0_31 = arith.constant 0 : index
    %46 = vector.load %arg6[%c0_30, %c0_31] : memref<16x256xbf16, #tpu.memory_space<vmem>>, vector<16x256xbf16>
    tpu.vector_store %arg6[%c0_30, %c0_31], %45 {strides = array<i32>} : memref<16x256xbf16, #tpu.memory_space<vmem>>, vector<16x256xbf16>,
    return
  }
  func.func @transform_0(%arg0: i32) -> (i32, i32) {
    %c0_i32 = arith.constant 0 : i32
    %c0_i32_0 = arith.constant 0 : i32
    return %arg0, %c0_i32 : i32, i32
  }
  func.func @transform_1(%arg0: i32) -> (i32, i32) {
    %c0_i32 = arith.constant 0 : i32
    %c0_i32_0 = arith.constant 0 : i32
    %c0_i32_1 = arith.constant 0 : i32
    return %c0_i32, %c0_i32_0 : i32, i32
  }
  func.func @transform_2(%arg0: i32) -> (i32, i32) {
    %c0_i32 = arith.constant 0 : i32
    %c0_i32_0 = arith.constant 0 : i32
    %c0_i32_1 = arith.constant 0 : i32
    return %c0_i32, %c0_i32_0 : i32, i32
  }
  func.func @transform_3(%arg0: i32) -> (i32, i32) {
    %c0_i32 = arith.constant 0 : i32
    %c0_i32_0 = arith.constant 0 : i32
    %c0_i32_1 = arith.constant 0 : i32
    return %c0_i32, %c0_i32_0 : i32, i32
  }
  func.func @transform_4(%arg0: i32) -> (i32, i32) {
    %c0_i32 = arith.constant 0 : i32
    %c0_i32_0 = arith.constant 0 : i32
    %c0_i32_1 = arith.constant 0 : i32
    return %c0_i32, %c0_i32_0 : i32, i32
  }
  func.func @transform_5(%arg0: i32) -> (i32, i32) {
    %c0_i32 = arith.constant 0 : i32
    %c0_i32_0 = arith.constant 0 : i32
    return %arg0, %c0_i32 : i32, i32
  }
}

module attributes {stable_mosaic.version = 11 : i64} {
  func.func @_dec_pair_kernel(%arg0: i32, %arg1: memref<16x16xbf16, #tpu.memory_space<vmem>>, %arg2: memref<16x64xbf16, #tpu.memory_space<vmem>>, %arg3: memref<1x64xf32, #tpu.memory_space<vmem>>, %arg4: memref<16x32xbf16, #tpu.memory_space<vmem>>, %arg5: memref<1x32xf32, #tpu.memory_space<vmem>>, %arg6: memref<16x128xbf16, #tpu.memory_space<vmem>>) attributes {dimension_semantics = [#tpu.dimension_semantics<parallel>], iteration_bounds = array<i64: 1>, scalar_prefetch = 0 : i64, scratch_operands = 0 : i64, tpu.core_type = #tpu.core_type<tc>, window_params = [{transform_indices = @transform_0, window_bounds = array<i64: 16, 16>}, {pipeline_mode = #tpu.pipeline_mode<synchronous>, transform_indices = @transform_1, window_bounds = array<i64: 16, 64>}, {pipeline_mode = #tpu.pipeline_mode<synchronous>, transform_indices = @transform_2, window_bounds = array<i64: 1, 64>}, {pipeline_mode = #tpu.pipeline_mode<synchronous>, transform_indices = @transform_3, window_bounds = array<i64: 16, 32>}, {pipeline_mode = #tpu.pipeline_mode<synchronous>, transform_indices = @transform_4, window_bounds = array<i64: 1, 32>}, {transform_indices = @transform_5, window_bounds = array<i64: 16, 128>}]} {
    %c0 = arith.constant 0 : index
    %c0_0 = arith.constant 0 : index
    %0 = vector.load %arg1[%c0, %c0_0] : memref<16x16xbf16, #tpu.memory_space<vmem>>, vector<16x16xbf16>
    %c0_1 = arith.constant 0 : index
    %c0_2 = arith.constant 0 : index
    %1 = vector.load %arg2[%c0_1, %c0_2] : memref<16x64xbf16, #tpu.memory_space<vmem>>, vector<16x64xbf16>
    %cst = arith.constant dense<0.000000e+00> : vector<16x64xf32>
    %2 = tpu.matmul %0, %1, %cst {dimension_numbers = #tpu.dot_dimension_numbers<[1], [0], [0], [1], [0, 0, 1, 1], [], []>} : vector<16x16xbf16>, vector<16x64xbf16>, vector<16x64xf32> -> vector<16x64xf32>
    %c0_3 = arith.constant 0 : index
    %c0_4 = arith.constant 0 : index
    %3 = vector.load %arg3[%c0_3, %c0_4] : memref<1x64xf32, #tpu.memory_space<vmem>>, vector<1x64xf32>
    %4 = vector.broadcast %3 : vector<1x64xf32> to vector<16x64xf32>
    %5 = arith.addf %2, %4 : vector<16x64xf32>
    %cst_5 = arith.constant 0.000000e+00 : f32
    %6 = vector.broadcast %cst_5 : f32 to vector<16x64xf32>
    %7 = arith.maximumf %5, %6 : vector<16x64xf32>
    %8 = vector.extract_strided_slice %7 {offsets = [0, 0], sizes = [16, 16], strides = [1, 1]} : vector<16x64xf32> to vector<16x16xf32>
    %9 = arith.truncf %8 : vector<16x16xf32> to vector<16x16xbf16>
    %c0_6 = arith.constant 0 : index
    %c0_7 = arith.constant 0 : index
    %10 = vector.load %arg4[%c0_6, %c0_7] : memref<16x32xbf16, #tpu.memory_space<vmem>>, vector<16x32xbf16>
    %cst_8 = arith.constant dense<0.000000e+00> : vector<16x32xf32>
    %11 = tpu.matmul %9, %10, %cst_8 {dimension_numbers = #tpu.dot_dimension_numbers<[1], [0], [0], [1], [0, 0, 1, 1], [], []>} : vector<16x16xbf16>, vector<16x32xbf16>, vector<16x32xf32> -> vector<16x32xf32>
    %c0_9 = arith.constant 0 : index
    %c0_10 = arith.constant 0 : index
    %12 = vector.load %arg5[%c0_9, %c0_10] : memref<1x32xf32, #tpu.memory_space<vmem>>, vector<1x32xf32>
    %13 = vector.broadcast %12 : vector<1x32xf32> to vector<16x32xf32>
    %14 = arith.addf %11, %13 : vector<16x32xf32>
    %cst_11 = arith.constant 0.000000e+00 : f32
    %15 = vector.broadcast %cst_11 : f32 to vector<16x32xf32>
    %16 = arith.maximumf %14, %15 : vector<16x32xf32>
    %17 = vector.extract_strided_slice %7 {offsets = [0, 16], sizes = [16, 16], strides = [1, 1]} : vector<16x64xf32> to vector<16x16xf32>
    %18 = arith.truncf %17 : vector<16x16xf32> to vector<16x16xbf16>
    %c0_12 = arith.constant 0 : index
    %c0_13 = arith.constant 0 : index
    %19 = vector.load %arg4[%c0_12, %c0_13] : memref<16x32xbf16, #tpu.memory_space<vmem>>, vector<16x32xbf16>
    %cst_14 = arith.constant dense<0.000000e+00> : vector<16x32xf32>
    %20 = tpu.matmul %18, %19, %cst_14 {dimension_numbers = #tpu.dot_dimension_numbers<[1], [0], [0], [1], [0, 0, 1, 1], [], []>} : vector<16x16xbf16>, vector<16x32xbf16>, vector<16x32xf32> -> vector<16x32xf32>
    %c0_15 = arith.constant 0 : index
    %c0_16 = arith.constant 0 : index
    %21 = vector.load %arg5[%c0_15, %c0_16] : memref<1x32xf32, #tpu.memory_space<vmem>>, vector<1x32xf32>
    %22 = vector.broadcast %21 : vector<1x32xf32> to vector<16x32xf32>
    %23 = arith.addf %20, %22 : vector<16x32xf32>
    %cst_17 = arith.constant 0.000000e+00 : f32
    %24 = vector.broadcast %cst_17 : f32 to vector<16x32xf32>
    %25 = arith.maximumf %23, %24 : vector<16x32xf32>
    %26 = vector.extract_strided_slice %7 {offsets = [0, 32], sizes = [16, 16], strides = [1, 1]} : vector<16x64xf32> to vector<16x16xf32>
    %27 = arith.truncf %26 : vector<16x16xf32> to vector<16x16xbf16>
    %c0_18 = arith.constant 0 : index
    %c0_19 = arith.constant 0 : index
    %28 = vector.load %arg4[%c0_18, %c0_19] : memref<16x32xbf16, #tpu.memory_space<vmem>>, vector<16x32xbf16>
    %cst_20 = arith.constant dense<0.000000e+00> : vector<16x32xf32>
    %29 = tpu.matmul %27, %28, %cst_20 {dimension_numbers = #tpu.dot_dimension_numbers<[1], [0], [0], [1], [0, 0, 1, 1], [], []>} : vector<16x16xbf16>, vector<16x32xbf16>, vector<16x32xf32> -> vector<16x32xf32>
    %c0_21 = arith.constant 0 : index
    %c0_22 = arith.constant 0 : index
    %30 = vector.load %arg5[%c0_21, %c0_22] : memref<1x32xf32, #tpu.memory_space<vmem>>, vector<1x32xf32>
    %31 = vector.broadcast %30 : vector<1x32xf32> to vector<16x32xf32>
    %32 = arith.addf %29, %31 : vector<16x32xf32>
    %cst_23 = arith.constant 0.000000e+00 : f32
    %33 = vector.broadcast %cst_23 : f32 to vector<16x32xf32>
    %34 = arith.maximumf %32, %33 : vector<16x32xf32>
    %35 = vector.extract_strided_slice %7 {offsets = [0, 48], sizes = [16, 16], strides = [1, 1]} : vector<16x64xf32> to vector<16x16xf32>
    %36 = arith.truncf %35 : vector<16x16xf32> to vector<16x16xbf16>
    %c0_24 = arith.constant 0 : index
    %c0_25 = arith.constant 0 : index
    %37 = vector.load %arg4[%c0_24, %c0_25] : memref<16x32xbf16, #tpu.memory_space<vmem>>, vector<16x32xbf16>
    %cst_26 = arith.constant dense<0.000000e+00> : vector<16x32xf32>
    %38 = tpu.matmul %36, %37, %cst_26 {dimension_numbers = #tpu.dot_dimension_numbers<[1], [0], [0], [1], [0, 0, 1, 1], [], []>} : vector<16x16xbf16>, vector<16x32xbf16>, vector<16x32xf32> -> vector<16x32xf32>
    %c0_27 = arith.constant 0 : index
    %c0_28 = arith.constant 0 : index
    %39 = vector.load %arg5[%c0_27, %c0_28] : memref<1x32xf32, #tpu.memory_space<vmem>>, vector<1x32xf32>
    %40 = vector.broadcast %39 : vector<1x32xf32> to vector<16x32xf32>
    %41 = arith.addf %38, %40 : vector<16x32xf32>
    %cst_29 = arith.constant 0.000000e+00 : f32
    %42 = vector.broadcast %cst_29 : f32 to vector<16x32xf32>
    %43 = arith.maximumf %41, %42 : vector<16x32xf32>
    %44 = tpu.concatenate %16, %25, %34, %43 in 1 : vector<16x32xf32>, vector<16x32xf32>, vector<16x32xf32>, vector<16x32xf32> -> vector<16x128xf32>
    %45 = arith.truncf %44 : vector<16x128xf32> to vector<16x128xbf16>
    %c0_30 = arith.constant 0 : index
    %c0_31 = arith.constant 0 : index
    %46 = vector.load %arg6[%c0_30, %c0_31] : memref<16x128xbf16, #tpu.memory_space<vmem>>, vector<16x128xbf16>
    tpu.vector_store %arg6[%c0_30, %c0_31], %45 {strides = array<i32>} : memref<16x128xbf16, #tpu.memory_space<vmem>>, vector<16x128xbf16>,
    return
  }
  func.func @transform_0(%arg0: i32) -> (i32, i32) {
    %c0_i32 = arith.constant 0 : i32
    %c0_i32_0 = arith.constant 0 : i32
    return %arg0, %c0_i32 : i32, i32
  }
  func.func @transform_1(%arg0: i32) -> (i32, i32) {
    %c0_i32 = arith.constant 0 : i32
    %c0_i32_0 = arith.constant 0 : i32
    %c0_i32_1 = arith.constant 0 : i32
    return %c0_i32, %c0_i32_0 : i32, i32
  }
  func.func @transform_2(%arg0: i32) -> (i32, i32) {
    %c0_i32 = arith.constant 0 : i32
    %c0_i32_0 = arith.constant 0 : i32
    %c0_i32_1 = arith.constant 0 : i32
    return %c0_i32, %c0_i32_0 : i32, i32
  }
  func.func @transform_3(%arg0: i32) -> (i32, i32) {
    %c0_i32 = arith.constant 0 : i32
    %c0_i32_0 = arith.constant 0 : i32
    %c0_i32_1 = arith.constant 0 : i32
    return %c0_i32, %c0_i32_0 : i32, i32
  }
  func.func @transform_4(%arg0: i32) -> (i32, i32) {
    %c0_i32 = arith.constant 0 : i32
    %c0_i32_0 = arith.constant 0 : i32
    %c0_i32_1 = arith.constant 0 : i32
    return %c0_i32, %c0_i32_0 : i32, i32
  }
  func.func @transform_5(%arg0: i32) -> (i32, i32) {
    %c0_i32 = arith.constant 0 : i32
    %c0_i32_0 = arith.constant 0 : i32
    return %arg0, %c0_i32 : i32, i32
  }
}

module attributes {stable_mosaic.version = 11 : i64} {
  func.func @_dec_final_kernel(%arg0: i32, %arg1: memref<128x8xbf16, #tpu.memory_space<vmem>>, %arg2: memref<8x32xbf16, #tpu.memory_space<vmem>>, %arg3: memref<1x32xf32, #tpu.memory_space<vmem>>, %arg4: memref<32x4xbf16, #tpu.memory_space<vmem>>, %arg5: memref<4x1xf32, #tpu.memory_space<vmem>>, %arg6: memref<4x128xf32, #tpu.memory_space<vmem>>) attributes {dimension_semantics = [#tpu.dimension_semantics<parallel>], iteration_bounds = array<i64: 1>, scalar_prefetch = 0 : i64, scratch_operands = 0 : i64, tpu.core_type = #tpu.core_type<tc>, window_params = [{transform_indices = @transform_0, window_bounds = array<i64: 128, 8>}, {pipeline_mode = #tpu.pipeline_mode<synchronous>, transform_indices = @transform_1, window_bounds = array<i64: 8, 32>}, {pipeline_mode = #tpu.pipeline_mode<synchronous>, transform_indices = @transform_2, window_bounds = array<i64: 1, 32>}, {pipeline_mode = #tpu.pipeline_mode<synchronous>, transform_indices = @transform_3, window_bounds = array<i64: 32, 4>}, {pipeline_mode = #tpu.pipeline_mode<synchronous>, transform_indices = @transform_4, window_bounds = array<i64: 4, 1>}, {transform_indices = @transform_5, window_bounds = array<i64: 4, 128>}]} {
    %c0 = arith.constant 0 : index
    %c0_0 = arith.constant 0 : index
    %0 = vector.load %arg1[%c0, %c0_0] : memref<128x8xbf16, #tpu.memory_space<vmem>>, vector<128x8xbf16>
    %c0_1 = arith.constant 0 : index
    %c0_2 = arith.constant 0 : index
    %1 = vector.load %arg2[%c0_1, %c0_2] : memref<8x32xbf16, #tpu.memory_space<vmem>>, vector<8x32xbf16>
    %cst = arith.constant dense<0.000000e+00> : vector<128x32xf32>
    %2 = tpu.matmul %0, %1, %cst {dimension_numbers = #tpu.dot_dimension_numbers<[1], [0], [0], [1], [0, 0, 1, 1], [], []>} : vector<128x8xbf16>, vector<8x32xbf16>, vector<128x32xf32> -> vector<128x32xf32>
    %c0_3 = arith.constant 0 : index
    %c0_4 = arith.constant 0 : index
    %3 = vector.load %arg3[%c0_3, %c0_4] : memref<1x32xf32, #tpu.memory_space<vmem>>, vector<1x32xf32>
    %4 = vector.broadcast %3 : vector<1x32xf32> to vector<128x32xf32>
    %5 = arith.addf %2, %4 : vector<128x32xf32>
    %cst_5 = arith.constant 0.000000e+00 : f32
    %6 = vector.broadcast %cst_5 : f32 to vector<128x32xf32>
    %7 = arith.maximumf %5, %6 : vector<128x32xf32>
    %c0_6 = arith.constant 0 : index
    %c0_7 = arith.constant 0 : index
    %8 = vector.load %arg4[%c0_6, %c0_7] : memref<32x4xbf16, #tpu.memory_space<vmem>>, vector<32x4xbf16>
    %9 = arith.truncf %7 : vector<128x32xf32> to vector<128x32xbf16>
    %cst_8 = arith.constant dense<0.000000e+00> : vector<4x128xf32>
    %10 = tpu.matmul %8, %9, %cst_8 {dimension_numbers = #tpu.dot_dimension_numbers<[0], [1], [1], [0], [0, 1, 1, 0], [], []>} : vector<32x4xbf16>, vector<128x32xbf16>, vector<4x128xf32> -> vector<4x128xf32>
    %c0_9 = arith.constant 0 : index
    %c0_10 = arith.constant 0 : index
    %11 = vector.load %arg5[%c0_9, %c0_10] : memref<4x1xf32, #tpu.memory_space<vmem>>, vector<4x1xf32>
    %12 = vector.broadcast %11 : vector<4x1xf32> to vector<4x128xf32>
    %13 = arith.addf %10, %12 : vector<4x128xf32>
    %c0_11 = arith.constant 0 : index
    %c0_12 = arith.constant 0 : index
    %14 = vector.load %arg6[%c0_11, %c0_12] : memref<4x128xf32, #tpu.memory_space<vmem>>, vector<4x128xf32>
    tpu.vector_store %arg6[%c0_11, %c0_12], %13 {strides = array<i32>} : memref<4x128xf32, #tpu.memory_space<vmem>>, vector<4x128xf32>,
    return
  }
  func.func @transform_0(%arg0: i32) -> (i32, i32) {
    %c0_i32 = arith.constant 0 : i32
    %c0_i32_0 = arith.constant 0 : i32
    return %arg0, %c0_i32 : i32, i32
  }
  func.func @transform_1(%arg0: i32) -> (i32, i32) {
    %c0_i32 = arith.constant 0 : i32
    %c0_i32_0 = arith.constant 0 : i32
    %c0_i32_1 = arith.constant 0 : i32
    return %c0_i32, %c0_i32_0 : i32, i32
  }
  func.func @transform_2(%arg0: i32) -> (i32, i32) {
    %c0_i32 = arith.constant 0 : i32
    %c0_i32_0 = arith.constant 0 : i32
    %c0_i32_1 = arith.constant 0 : i32
    return %c0_i32, %c0_i32_0 : i32, i32
  }
  func.func @transform_3(%arg0: i32) -> (i32, i32) {
    %c0_i32 = arith.constant 0 : i32
    %c0_i32_0 = arith.constant 0 : i32
    %c0_i32_1 = arith.constant 0 : i32
    return %c0_i32, %c0_i32_0 : i32, i32
  }
  func.func @transform_4(%arg0: i32) -> (i32, i32) {
    %c0_i32 = arith.constant 0 : i32
    %c0_i32_0 = arith.constant 0 : i32
    %c0_i32_1 = arith.constant 0 : i32
    return %c0_i32, %c0_i32_0 : i32, i32
  }
  func.func @transform_5(%arg0: i32) -> (i32, i32) {
    %c0_i32 = arith.constant 0 : i32
    %c0_i32_0 = arith.constant 0 : i32
    return %c0_i32, %arg0 : i32, i32
  }
}

</mosaic_0001>

<llo_original>
// kernel: forward.5
$region0: #{forward.5}
  #allocation0 [shape = 'u32[]', space=smem, size = 0x4, offset = 0x4, fixed_abs, tag = 'smem constant byte address 0x4 - core index']
  #allocation1 [shape = 'u32[144,128]{1,0:T(1,128)}', space=vmem, size = 0x12000, scoped, tag = 'internal scratch']
  %s0 = inlined_call_operand.vmem [shape: f32[32,48], index: 0, kind: input, shape index: {}]
  %s1 = inlined_call_operand.vmem [shape: bf16[48,32], index: 1, kind: input, shape index: {}]
  %s2 = inlined_call_operand.vmem [shape: f32[1,32], index: 2, kind: input, shape index: {}]
  %s3 = inlined_call_operand.vmem [shape: f32[32,32], index: 3, kind: output, shape index: {}]
  %s4 = sld [smem:[#allocation0]]
  $region22: #{forward.5} parent=0
    _
  %s6 = ssub.s32 1, %s4
  %s7 = scalar_select 0, %s6, %s4
  // Predicated region
  $region2: #{forward.5} parent=0 // pred_check
    _
  $region3: #{forward.5} parent=0 // pred_check_branch
    %9 = sbr.rel (0) target = $region5
  $region4: #{forward.5} parent=0 // pred_region
    _
  $region5: #{forward.5} parent=0 // pred_fallthru
    _
  // Predicated region
  $region6: #{forward.5} parent=0 // pred_check
    _
  $region7: #{forward.5} parent=0 // pred_check_branch
    %11 = sbr.rel (0) target = $region9
  $region8: #{forward.5} parent=0 // pred_region
    _
  $region9: #{forward.5} parent=0 // pred_fallthru
    _
  // Predicated region
  $region10: #{forward.5} parent=0 // pred_check
    _
  $region11: #{forward.5} parent=0 // pred_check_branch
    %13 = sbr.rel (0) target = $region13
  $region12: #{forward.5} parent=0 // pred_region
    _
  $region13: #{forward.5} parent=0 // pred_fallthru
    _
  %v15 = vld [vmem:[%s0] sm:$0xff]
  %v16 = vld [vmem:[%s0 + $0x8] sm:$0xff]
  %v17 = vld [vmem:[%s0 + $0x10] sm:$0xff]
  %v18 = vld [vmem:[%s0 + $0x18] sm:$0xff]
  %v19 = vpack.c.bf16 %v16, %v15
  %v20 = vpack.c.bf16 %v18, %v17
  %v21 = vld [vmem:[%s1] sm:$0xf]
  %v22 = vld [vmem:[%s1 + $0x4] sm:$0xf]
  %v23 = vld [vmem:[%s1 + $0x8] sm:$0xf]
  %v24 = vld [vmem:[%s1 + $0xc] sm:$0xf]
  %v25 = vld [vmem:[%s1 + $0x10] sm:$0xf]
  %v26 = vld [vmem:[%s1 + $0x14] sm:$0xf]
  %v27 = vld [vmem:[%s2] sm:$0x1]
  %v29 = vlaneseq
  %v30 = vshrl.u32 %v29, 7
  %v31 = vsub.s32 0, %v30
  %v32 = vrot.slane %v27, %v31
  %v40 = vunpack.c.l.b16 %v21
  %v41 = vunpack.c.l.b16 %v22
  %v42 = vunpack.c.l.b16 %v23
  %v43 = vunpack.c.l.b16 %v24
  %v44 = vunpack.c.l.b16 %v25
  %v45 = vunpack.c.l.b16 %v26
  %v46 = vpack.c.b16 %v41, %v40
  %v47 = vpack.c.b16 %v43, %v42
  %v48 = vpack.c.b16 %v45, %v44
  %vm52 = vcmask 392192
  %v54 = vsel %vm52, %v19, 0
  %v57 = vsel %vm52, %v20, 0
  %59 = vmatprep.subr.bf16.mxu0 0
  %60 = vmatpush1.bf16.msra.mxu0 %v46
  %61 = vmatprep.subr.bf16.mxu0 0
  %62 = vmatpush1.bf16.msra.mxu0 %v47
  %63 = vmatprep.subr.bf16.mxu0 0
  %64 = vmatpush1.bf16.msra.mxu0 %v48
  %65 = vmatprep.subr.bf16.mxu0 0
  %66 = vmatpush1.bf16.msra.mxu0 0
  %67 = vmatprep.subr.bf16.mxu0 0
  %68 = vmatpush1.bf16.msra.mxu0 0
  %69 = vmatprep.subr.bf16.mxu0 0
  %70 = vmatpush1.bf16.msra.mxu0 0
  %71 = vmatprep.subr.bf16.mxu0 0
  %72 = vmatpush1.bf16.msra.mxu0 0
  %73 = vmatprep.subr.bf16.mxu0 0
  %74 = vmatpush1.bf16.msra.mxu0 0
  %75 = vmatprep.subr.bf16.mxu0 0
  %76 = vmatpush1.bf16.msra.mxu0 0
  %77 = vmatprep.subr.bf16.mxu0 0
  %78 = vmatpush1.bf16.msra.mxu0 0
  %79 = vmatprep.subr.bf16.mxu0 0
  %80 = vmatpush1.bf16.msra.mxu0 0
  %81 = vmatprep.subr.bf16.mxu0 0
  %82 = vmatpush1.bf16.msra.mxu0 0
  %83 = vmatprep.subr.bf16.mxu0 0
  %84 = vmatpush1.bf16.msra.mxu0 0
  %85 = vmatprep.subr.bf16.mxu0 0
  %86 = vmatpush1.bf16.msra.mxu0 0
  %87 = vmatprep.subr.bf16.mxu0 0
  %88 = vmatpush1.bf16.msra.mxu0 0
  %89 = vmatprep.subr.bf16.mxu0 0
  %90 = vmatpush1.bf16.msra.mxu0 0
  %91 = vmatprep.mubr.bf16.mxu0 0
  %92 = vmatmul.mubr.bf16.gmra.mrb[0].mxu0 %v54
  %v93 = vpop.f32.mrb[0].mxu0
  %v94 = vadd.f32 %v32, %v93
  %v95 = vpop.f32.mrb[0].mxu0
  %v96 = vpop.f32.mrb[0].mxu0
  %v97 = vadd.f32 %v32, %v96
  %v98 = vpop.f32.mrb[0].mxu0
  %99 = vmatprep.mubr.bf16.mxu0 0
  %100 = vmatmul.mubr.bf16.gmra.mrb[0].mxu0 %v57
  %v101 = vpop.f32.mrb[0].mxu0
  %v102 = vadd.f32 %v32, %v101
  %v103 = vpop.f32.mrb[0].mxu0
  %v104 = vpop.f32.mrb[0].mxu0
  %v105 = vadd.f32 %v32, %v104
  %v106 = vpop.f32.mrb[0].mxu0
  %107 = vdwg.mxu0
  %vm108 = vcmask 261120
  %109 = vst.msk [vmem:[%s3] sm:$0xff] %vm108, %v94
  %110 = vst.msk [vmem:[%s3 + $0x8] sm:$0xff] %vm108, %v97
  %111 = vst.msk [vmem:[%s3 + $0x10] sm:$0xff] %vm108, %v102
  %112 = vst.msk [vmem:[%s3 + $0x18] sm:$0xff] %vm108, %v105
  // Predicated region
  $region14: #{forward.5} parent=0 // pred_check
    _
  $region15: #{forward.5} parent=0 // pred_check_branch
    %114 = sbr.rel (0) target = $region17
  $region16: #{forward.5} parent=0 // pred_region
    _
  $region17: #{forward.5} parent=0 // pred_fallthru
    _
  // Predicated region
  $region18: #{forward.5} parent=0 // pred_check
    _
  $region19: #{forward.5} parent=0 // pred_check_branch
    %116 = sbr.rel (0) target = $region21
  $region20: #{forward.5} parent=0 // pred_region
    _
  $region21: #{forward.5} parent=0 // pred_fallthru
    _

// kernel: forward.7
$region0: #{forward.7}
  #allocation0 [shape = 'u32[]', space=smem, size = 0x4, offset = 0x4, fixed_abs, tag = 'smem constant byte address 0x4 - core index']
  #allocation1 [shape = 'u32[144,128]{1,0:T(1,128)}', space=vmem, size = 0x12000, scoped, tag = 'internal scratch']
  %s0 = inlined_call_operand.vmem [shape: bf16[16,32], index: 0, kind: input, shape index: {}]
  %s1 = inlined_call_operand.vmem [shape: bf16[32,128], index: 1, kind: input, shape index: {}]
  %s2 = inlined_call_operand.vmem [shape: f32[1,128], index: 2, kind: input, shape index: {}]
  %s3 = inlined_call_operand.vmem [shape: bf16[32,64], index: 3, kind: input, shape index: {}]
  %s4 = inlined_call_operand.vmem [shape: f32[1,64], index: 4, kind: input, shape index: {}]
  %s5 = inlined_call_operand.vmem [shape: bf16[16,256], index: 5, kind: output, shape index: {}]
  %s6 = sld [smem:[#allocation0]]
  $region30: #{forward.7} parent=0
    _
  %s8 = ssub.s32 1, %s6
  %s9 = scalar_select 0, %s8, %s6
  // Predicated region
  $region2: #{forward.7} parent=0 // pred_check
    _
  $region3: #{forward.7} parent=0 // pred_check_branch
    %11 = sbr.rel (0) target = $region5
  $region4: #{forward.7} parent=0 // pred_region
    _
  $region5: #{forward.7} parent=0 // pred_fallthru
    _
  // Predicated region
  $region6: #{forward.7} parent=0 // pred_check
    _
  $region7: #{forward.7} parent=0 // pred_check_branch
    %13 = sbr.rel (0) target = $region9
  $region8: #{forward.7} parent=0 // pred_region
    _
  $region9: #{forward.7} parent=0 // pred_fallthru
    _
  // Predicated region
  $region10: #{forward.7} parent=0 // pred_check
    _
  $region11: #{forward.7} parent=0 // pred_check_branch
    %15 = sbr.rel (0) target = $region13
  $region12: #{forward.7} parent=0 // pred_region
    _
  $region13: #{forward.7} parent=0 // pred_fallthru
    _
  // Predicated region
  $region14: #{forward.7} parent=0 // pred_check
    _
  $region15: #{forward.7} parent=0 // pred_check_branch
    %17 = sbr.rel (0) target = $region17
  $region16: #{forward.7} parent=0 // pred_region
    _
  $region17: #{forward.7} parent=0 // pred_fallthru
    _
  // Predicated region
  $region18: #{forward.7} parent=0 // pred_check
    _
  $region19: #{forward.7} parent=0 // pred_check_branch
    %19 = sbr.rel (0) target = $region21
  $region20: #{forward.7} parent=0 // pred_region
    _
  $region21: #{forward.7} parent=0 // pred_fallthru
    _
  %v21 = vld [vmem:[%s0] sm:$0xf]
  %v22 = vld [vmem:[%s0 + $0x4] sm:$0xf]
  %v23 = vld [vmem:[%s1] sm:$0xf]
  %v24 = vld [vmem:[%s1 + $0x4] sm:$0xf]
  %v25 = vld [vmem:[%s1 + $0x8] sm:$0xf]
  %v26 = vld [vmem:[%s1 + $0xc] sm:$0xf]
  %v27 = vld [vmem:[%s2] sm:$0x1]
  %v29 = vlaneseq
  %v30 = vshrl.u32 %v29, 7
  %v31 = vsub.s32 0, %v30
  %v32 = vrot.slane %v27, %v31
  %v36 = vunpack.c.l.b16 %v21
  %v37 = vunpack.c.l.b16 %v22
  %v38 = vpack.c.b16 %v37, %v36
  %v43 = vunpack.c.l.b16 %v23
  %v44 = vunpack.c.l.b16 %v24
  %v45 = vunpack.c.l.b16 %v25
  %v46 = vunpack.c.l.b16 %v26
  %v47 = vpack.c.b16 %v44, %v43
  %v48 = vpack.c.b16 %v46, %v45
  %vm51 = vcmask 261120
  %v53 = vsel %vm51, %v38, 0
  %55 = vmatprep.subr.bf16.mxu0 0
  %56 = vmatpush1.bf16.msra.mxu0 %v47
  %57 = vmatprep.subr.bf16.mxu0 0
  %58 = vmatpush1.bf16.msra.mxu0 %v48
  %59 = vmatprep.subr.bf16.mxu0 0
  %60 = vmatpush1.bf16.msra.mxu0 0
  %61 = vmatprep.subr.bf16.mxu0 0
  %62 = vmatpush1.bf16.msra.mxu0 0
  %63 = vmatprep.subr.bf16.mxu0 0
  %64 = vmatpush1.bf16.msra.mxu0 0
  %65 = vmatprep.subr.bf16.mxu0 0
  %66 = vmatpush1.bf16.msra.mxu0 0
  %67 = vmatprep.subr.bf16.mxu0 0
  %68 = vmatpush1.bf16.msra.mxu0 0
  %69 = vmatprep.subr.bf16.mxu0 0
  %70 = vmatpush1.bf16.msra.mxu0 0
  %71 = vmatprep.subr.bf16.mxu0 0
  %72 = vmatpush1.bf16.msra.mxu0 0
  %73 = vmatprep.subr.bf16.mxu0 0
  %74 = vmatpush1.bf16.msra.mxu0 0
  %75 = vmatprep.subr.bf16.mxu0 0
  %76 = vmatpush1.bf16.msra.mxu0 0
  %77 = vmatprep.subr.bf16.mxu0 0
  %78 = vmatpush1.bf16.msra.mxu0 0
  %79 = vmatprep.subr.bf16.mxu0 0
  %80 = vmatpush1.bf16.msra.mxu0 0
  %81 = vmatprep.subr.bf16.mxu0 0
  %82 = vmatpush1.bf16.msra.mxu0 0
  %83 = vmatprep.subr.bf16.mxu0 0
  %84 = vmatpush1.bf16.msra.mxu0 0
  %85 = vmatprep.subr.bf16.mxu0 0
  %86 = vmatpush1.bf16.msra.mxu0 0
  %87 = vmatprep.mubr.bf16.mxu0 0
  %88 = vmatmul.mubr.bf16.gmra.mrb[0].mxu0 %v53
  %v89 = vpop.f32.mrb[0].mxu0
  %v90 = vadd.f32 %v32, %v89
  %v91 = vpop.f32.mrb[0].mxu0
  %v92 = vpop.f32.mrb[0].mxu0
  %v93 = vadd.f32 %v32, %v92
  %v94 = vpop.f32.mrb[0].mxu0
  %95 = vdwg.mxu0
  %v96 = vmax.f32 %v90, 0.0
  %v97 = vmax.f32 %v93, 0.0
  %v98 = vpack.c.bf16 %v97, %v96
  %v99 = vld [vmem:[%s3] sm:$0xf]
  %v100 = vld [vmem:[%s3 + $0x4] sm:$0xf]
  %v101 = vld [vmem:[%s3 + $0x8] sm:$0xf]
  %v102 = vld [vmem:[%s3 + $0xc] sm:$0xf]
  %v103 = vld [vmem:[%s4] sm:$0x1]
  %v105 = vlaneseq
  %v106 = vshrl.u32 %v105, 7
  %v107 = vsub.s32 0, %v106
  %v108 = vrot.slane %v103, %v107
  %v114 = vunpack.c.l.b16 %v99
  %v115 = vunpack.c.l.b16 %v100
  %v116 = vunpack.c.l.b16 %v101
  %v117 = vunpack.c.l.b16 %v102
  %v118 = vpack.c.b16 %v115, %v114
  %v119 = vpack.c.b16 %v117, %v116
  %v123 = vsel %vm51, %v98, 0
  %125 = vmatprep.subr.bf16.mxu0 0
  %126 = vmatpush1.bf16.msra.mxu0 %v118
  %127 = vmatprep.subr.bf16.mxu0 0
  %128 = vmatpush1.bf16.msra.mxu0 %v119
  %129 = vmatprep.subr.bf16.mxu0 0
  %130 = vmatpush1.bf16.msra.mxu0 0
  %131 = vmatprep.subr.bf16.mxu0 0
  %132 = vmatpush1.bf16.msra.mxu0 0
  %133 = vmatprep.subr.bf16.mxu0 0
  %134 = vmatpush1.bf16.msra.mxu0 0
  %135 = vmatprep.subr.bf16.mxu0 0
  %136 = vmatpush1.bf16.msra.mxu0 0
  %137 = vmatprep.subr.bf16.mxu0 0
  %138 = vmatpush1.bf16.msra.mxu0 0
  %139 = vmatprep.subr.bf16.mxu0 0
  %140 = vmatpush1.bf16.msra.mxu0 0
  %141 = vmatprep.subr.bf16.mxu0 0
  %142 = vmatpush1.bf16.msra.mxu0 0
  %143 = vmatprep.subr.bf16.mxu0 0
  %144 = vmatpush1.bf16.msra.mxu0 0
  %145 = vmatprep.subr.bf16.mxu0 0
  %146 = vmatpush1.bf16.msra.mxu0 0
  %147 = vmatprep.subr.bf16.mxu0 0
  %148 = vmatpush1.bf16.msra.mxu0 0
  %149 = vmatprep.subr.bf16.mxu0 0
  %150 = vmatpush1.bf16.msra.mxu0 0
  %151 = vmatprep.subr.bf16.mxu0 0
  %152 = vmatpush1.bf16.msra.mxu0 0
  %153 = vmatprep.subr.bf16.mxu0 0
  %154 = vmatpush1.bf16.msra.mxu0 0
  %155 = vmatprep.subr.bf16.mxu0 0
  %156 = vmatpush1.bf16.msra.mxu0 0
  %157 = vmatprep.mubr.bf16.mxu0 0
  %158 = vmatmul.mubr.bf16.gmra.mrb[0].mxu0 %v123
  %v159 = vpop.f32.mrb[0].mxu0
  %v160 = vadd.f32 %v108, %v159
  %v161 = vpop.f32.mrb[0].mxu0
  %v162 = vpop.f32.mrb[0].mxu0
  %v163 = vadd.f32 %v108, %v162
  %v164 = vpop.f32.mrb[0].mxu0
  %165 = vdwg.mxu0
  %v166 = vmax.f32 %v160, 0.0
  %v167 = vmax.f32 %v163, 0.0
  %169 = vrot.lane.b32.xlu0 %v98, 96
  %v170 = vpop.permute.xlu0 %169
  %v172 = vsel %vm51, %v170, 0
  %174 = vmatprep.subr.bf16.mxu0 0
  %175 = vmatpush1.bf16.msra.mxu0 %v118
  %176 = vmatprep.subr.bf16.mxu0 0
  %177 = vmatpush1.bf16.msra.mxu0 %v119
  %178 = vmatprep.subr.bf16.mxu0 0
  %179 = vmatpush1.bf16.msra.mxu0 0
  %180 = vmatprep.subr.bf16.mxu0 0
  %181 = vmatpush1.bf16.msra.mxu0 0
  %182 = vmatprep.subr.bf16.mxu0 0
  %183 = vmatpush1.bf16.msra.mxu0 0
  %184 = vmatprep.subr.bf16.mxu0 0
  %185 = vmatpush1.bf16.msra.mxu0 0
  %186 = vmatprep.subr.bf16.mxu0 0
  %187 = vmatpush1.bf16.msra.mxu0 0
  %188 = vmatprep.subr.bf16.mxu0 0
  %189 = vmatpush1.bf16.msra.mxu0 0
  %190 = vmatprep.subr.bf16.mxu0 0
  %191 = vmatpush1.bf16.msra.mxu0 0
  %192 = vmatprep.subr.bf16.mxu0 0
  %193 = vmatpush1.bf16.msra.mxu0 0
  %194 = vmatprep.subr.bf16.mxu0 0
  %195 = vmatpush1.bf16.msra.mxu0 0
  %196 = vmatprep.subr.bf16.mxu0 0
  %197 = vmatpush1.bf16.msra.mxu0 0
  %198 = vmatprep.subr.bf16.mxu0 0
  %199 = vmatpush1.bf16.msra.mxu0 0
  %200 = vmatprep.subr.bf16.mxu0 0
  %201 = vmatpush1.bf16.msra.mxu0 0
  %202 = vmatprep.subr.bf16.mxu0 0
  %203 = vmatpush1.bf16.msra.mxu0 0
  %204 = vmatprep.subr.bf16.mxu0 0
  %205 = vmatpush1.bf16.msra.mxu0 0
  %206 = vmatprep.mubr.bf16.mxu0 0
  %207 = vmatmul.mubr.bf16.gmra.mrb[0].mxu0 %v172
  %v208 = vpop.f32.mrb[0].mxu0
  %v209 = vadd.f32 %v108, %v208
  %v210 = vpop.f32.mrb[0].mxu0
  %v211 = vpop.f32.mrb[0].mxu0
  %v212 = vadd.f32 %v108, %v211
  %v213 = vpop.f32.mrb[0].mxu0
  %214 = vdwg.mxu0
  %v215 = vmax.f32 %v209, 0.0
  %v216 = vmax.f32 %v212, 0.0
  %217 = vrot.lane.b32.xlu0 %v98, 64
  %v218 = vpop.permute.xlu0 %217
  %v220 = vsel %vm51, %v218, 0
  %222 = vmatprep.subr.bf16.mxu0 0
  %223 = vmatpush1.bf16.msra.mxu0 %v118
  %224 = vmatprep.subr.bf16.mxu0 0
  %225 = vmatpush1.bf16.msra.mxu0 %v119
  %226 = vmatprep.subr.bf16.mxu0 0
  %227 = vmatpush1.bf16.msra.mxu0 0
  %228 = vmatprep.subr.bf16.mxu0 0
  %229 = vmatpush1.bf16.msra.mxu0 0
  %230 = vmatprep.subr.bf16.mxu0 0
  %231 = vmatpush1.bf16.msra.mxu0 0
  %232 = vmatprep.subr.bf16.mxu0 0
  %233 = vmatpush1.bf16.msra.mxu0 0
  %234 = vmatprep.subr.bf16.mxu0 0
  %235 = vmatpush1.bf16.msra.mxu0 0
  %236 = vmatprep.subr.bf16.mxu0 0
  %237 = vmatpush1.bf16.msra.mxu0 0
  %238 = vmatprep.subr.bf16.mxu0 0
  %239 = vmatpush1.bf16.msra.mxu0 0
  %240 = vmatprep.subr.bf16.mxu0 0
  %241 = vmatpush1.bf16.msra.mxu0 0
  %242 = vmatprep.subr.bf16.mxu0 0
  %243 = vmatpush1.bf16.msra.mxu0 0
  %244 = vmatprep.subr.bf16.mxu0 0
  %245 = vmatpush1.bf16.msra.mxu0 0
  %246 = vmatprep.subr.bf16.mxu0 0
  %247 = vmatpush1.bf16.msra.mxu0 0
  %248 = vmatprep.subr.bf16.mxu0 0
  %249 = vmatpush1.bf16.msra.mxu0 0
  %250 = vmatprep.subr.bf16.mxu0 0
  %251 = vmatpush1.bf16.msra.mxu0 0
  %252 = vmatprep.subr.bf16.mxu0 0
  %253 = vmatpush1.bf16.msra.mxu0 0
  %254 = vmatprep.mubr.bf16.mxu0 0
  %255 = vmatmul.mubr.bf16.gmra.mrb[0].mxu0 %v220
  %v256 = vpop.f32.mrb[0].mxu0
  %v257 = vadd.f32 %v108, %v256
  %v258 = vpop.f32.mrb[0].mxu0
  %v259 = vpop.f32.mrb[0].mxu0
  %v260 = vadd.f32 %v108, %v259
  %v261 = vpop.f32.mrb[0].mxu0
  %262 = vdwg.mxu0
  %v263 = vmax.f32 %v257, 0.0
  %v264 = vmax.f32 %v260, 0.0
  %265 = vrot.lane.b32.xlu0 %v98, 32
  %v266 = vpop.permute.xlu0 %265
  %v268 = vsel %vm51, %v266, 0
  %270 = vmatprep.subr.bf16.mxu0 0
  %271 = vmatpush1.bf16.msra.mxu0 %v118
  %272 = vmatprep.subr.bf16.mxu0 0
  %273 = vmatpush1.bf16.msra.mxu0 %v119
  %274 = vmatprep.subr.bf16.mxu0 0
  %275 = vmatpush1.bf16.msra.mxu0 0
  %276 = vmatprep.subr.bf16.mxu0 0
  %277 = vmatpush1.bf16.msra.mxu0 0
  %278 = vmatprep.subr.bf16.mxu0 0
  %279 = vmatpush1.bf16.msra.mxu0 0
  %280 = vmatprep.subr.bf16.mxu0 0
  %281 = vmatpush1.bf16.msra.mxu0 0
  %282 = vmatprep.subr.bf16.mxu0 0
  %283 = vmatpush1.bf16.msra.mxu0 0
  %284 = vmatprep.subr.bf16.mxu0 0
  %285 = vmatpush1.bf16.msra.mxu0 0
  %286 = vmatprep.subr.bf16.mxu0 0
  %287 = vmatpush1.bf16.msra.mxu0 0
  %288 = vmatprep.subr.bf16.mxu0 0
  %289 = vmatpush1.bf16.msra.mxu0 0
  %290 = vmatprep.subr.bf16.mxu0 0
  %291 = vmatpush1.bf16.msra.mxu0 0
  %292 = vmatprep.subr.bf16.mxu0 0
  %293 = vmatpush1.bf16.msra.mxu0 0
  %294 = vmatprep.subr.bf16.mxu0 0
  %295 = vmatpush1.bf16.msra.mxu0 0
  %296 = vmatprep.subr.bf16.mxu0 0
  %297 = vmatpush1.bf16.msra.mxu0 0
  %298 = vmatprep.subr.bf16.mxu0 0
  %299 = vmatpush1.bf16.msra.mxu0 0
  %300 = vmatprep.subr.bf16.mxu0 0
  %301 = vmatpush1.bf16.msra.mxu0 0
  %302 = vmatprep.mubr.bf16.mxu0 0
  %303 = vmatmul.mubr.bf16.gmra.mrb[0].mxu0 %v268
  %v304 = vpop.f32.mrb[0].mxu0
  %v305 = vadd.f32 %v108, %v304
  %v306 = vpop.f32.mrb[0].mxu0
  %v307 = vpop.f32.mrb[0].mxu0
  %v308 = vadd.f32 %v108, %v307
  %v309 = vpop.f32.mrb[0].mxu0
  %310 = vdwg.mxu0
  %v311 = vmax.f32 %v305, 0.0
  %v312 = vmax.f32 %v308, 0.0
  %315 = vrot.lane.b32.xlu0 %v215, 64
  %v316 = vpop.permute.xlu0 %315
  %317 = vrot.lane.b32.xlu0 %v216, 64
  %v318 = vpop.permute.xlu0 %317
  %323 = vrot.lane.b32.xlu0 %v311, 64
  %v324 = vpop.permute.xlu0 %323
  %325 = vrot.lane.b32.xlu0 %v312, 64
  %v326 = vpop.permute.xlu0 %325
  %vm329 = vcmask 523264
  %v330 = vsel %vm329, %v166, %v316
  %v331 = vsel %vm329, %v167, %v318
  %v332 = vsel %vm329, %v263, %v324
  %v333 = vsel %vm329, %v264, %v326
  %v334 = vpack.c.bf16 %v331, %v330
  %v335 = vpack.c.bf16 %v333, %v332
  %v338 = vunpack.c.l.b16 %v334
  %v339 = vunpack.c.l.b16 %v335
  %v340 = vunpack.c.h.b16 %v334
  %v341 = vunpack.c.h.b16 %v335
  %v342 = vpack.c.b16 %v339, %v338
  %v343 = vpack.c.b16 %v341, %v340
  %346 = vst [vmem:[%s5] sm:$0xff] %v342
  %347 = vst [vmem:[%s5 + $0x8] sm:$0xff] %v343
  // Predicated region
  $region22: #{forward.7} parent=0 // pred_check
    _
  $region23: #{forward.7} parent=0 // pred_check_branch
    %349 = sbr.rel (0) target = $region25
  $region24: #{forward.7} parent=0 // pred_region
    _
  $region25: #{forward.7} parent=0 // pred_fallthru
    _
  // Predicated region
  $region26: #{forward.7} parent=0 // pred_check
    _
  $region27: #{forward.7} parent=0 // pred_check_branch
    %351 = sbr.rel (0) target = $region29
  $region28: #{forward.7} parent=0 // pred_region
    _
  $region29: #{forward.7} parent=0 // pred_fallthru
    _

// kernel: forward.8
$region0: #{forward.8}
  #allocation0 [shape = 'u32[]', space=smem, size = 0x4, offset = 0x4, fixed_abs, tag = 'smem constant byte address 0x4 - core index']
  #allocation1 [shape = 'u32[144,128]{1,0:T(1,128)}', space=vmem, size = 0x12000, scoped, tag = 'internal scratch']
  %s0 = inlined_call_operand.vmem [shape: bf16[16,16], index: 0, kind: input, shape index: {}]
  %s1 = inlined_call_operand.vmem [shape: bf16[16,64], index: 1, kind: input, shape index: {}]
  %s2 = inlined_call_operand.vmem [shape: f32[1,64], index: 2, kind: input, shape index: {}]
  %s3 = inlined_call_operand.vmem [shape: bf16[16,32], index: 3, kind: input, shape index: {}]
  %s4 = inlined_call_operand.vmem [shape: f32[1,32], index: 4, kind: input, shape index: {}]
  %s5 = inlined_call_operand.vmem [shape: bf16[16,128], index: 5, kind: output, shape index: {}]
  %s6 = sld [smem:[#allocation0]]
  $region30: #{forward.8} parent=0
    _
  %s8 = ssub.s32 1, %s6
  %s9 = scalar_select 0, %s8, %s6
  // Predicated region
  $region2: #{forward.8} parent=0 // pred_check
    _
  $region3: #{forward.8} parent=0 // pred_check_branch
    %11 = sbr.rel (0) target = $region5
  $region4: #{forward.8} parent=0 // pred_region
    _
  $region5: #{forward.8} parent=0 // pred_fallthru
    _
  // Predicated region
  $region6: #{forward.8} parent=0 // pred_check
    _
  $region7: #{forward.8} parent=0 // pred_check_branch
    %13 = sbr.rel (0) target = $region9
  $region8: #{forward.8} parent=0 // pred_region
    _
  $region9: #{forward.8} parent=0 // pred_fallthru
    _
  // Predicated region
  $region10: #{forward.8} parent=0 // pred_check
    _
  $region11: #{forward.8} parent=0 // pred_check_branch
    %15 = sbr.rel (0) target = $region13
  $region12: #{forward.8} parent=0 // pred_region
    _
  $region13: #{forward.8} parent=0 // pred_fallthru
    _
  // Predicated region
  $region14: #{forward.8} parent=0 // pred_check
    _
  $region15: #{forward.8} parent=0 // pred_check_branch
    %17 = sbr.rel (0) target = $region17
  $region16: #{forward.8} parent=0 // pred_region
    _
  $region17: #{forward.8} parent=0 // pred_fallthru
    _
  // Predicated region
  $region18: #{forward.8} parent=0 // pred_check
    _
  $region19: #{forward.8} parent=0 // pred_check_branch
    %19 = sbr.rel (0) target = $region21
  $region20: #{forward.8} parent=0 // pred_region
    _
  $region21: #{forward.8} parent=0 // pred_fallthru
    _
  %v21 = vld [vmem:[%s0] sm:$0xf]
  %v22 = vld [vmem:[%s0 + $0x4] sm:$0xf]
  %v23 = vld [vmem:[%s1] sm:$0xf]
  %v24 = vld [vmem:[%s1 + $0x4] sm:$0xf]
  %v25 = vld [vmem:[%s2] sm:$0x1]
  %v27 = vlaneseq
  %v28 = vshrl.u32 %v27, 7
  %v29 = vsub.s32 0, %v28
  %v30 = vrot.slane %v25, %v29
  %v34 = vunpack.c.l.b16 %v21
  %v35 = vunpack.c.l.b16 %v22
  %v36 = vpack.c.b16 %v35, %v34
  %v39 = vunpack.c.l.b16 %v23
  %v40 = vunpack.c.l.b16 %v24
  %v41 = vpack.c.b16 %v40, %v39
  %vm43 = vcmask 130048
  %v45 = vsel %vm43, %v36, 0
  %47 = vmatprep.subr.bf16.mxu0 0
  %48 = vmatpush1.bf16.msra.mxu0 %v41
  %49 = vmatprep.subr.bf16.mxu0 0
  %50 = vmatpush1.bf16.msra.mxu0 0
  %51 = vmatprep.subr.bf16.mxu0 0
  %52 = vmatpush1.bf16.msra.mxu0 0
  %53 = vmatprep.subr.bf16.mxu0 0
  %54 = vmatpush1.bf16.msra.mxu0 0
  %55 = vmatprep.subr.bf16.mxu0 0
  %56 = vmatpush1.bf16.msra.mxu0 0
  %57 = vmatprep.subr.bf16.mxu0 0
  %58 = vmatpush1.bf16.msra.mxu0 0
  %59 = vmatprep.subr.bf16.mxu0 0
  %60 = vmatpush1.bf16.msra.mxu0 0
  %61 = vmatprep.subr.bf16.mxu0 0
  %62 = vmatpush1.bf16.msra.mxu0 0
  %63 = vmatprep.subr.bf16.mxu0 0
  %64 = vmatpush1.bf16.msra.mxu0 0
  %65 = vmatprep.subr.bf16.mxu0 0
  %66 = vmatpush1.bf16.msra.mxu0 0
  %67 = vmatprep.subr.bf16.mxu0 0
  %68 = vmatpush1.bf16.msra.mxu0 0
  %69 = vmatprep.subr.bf16.mxu0 0
  %70 = vmatpush1.bf16.msra.mxu0 0
  %71 = vmatprep.subr.bf16.mxu0 0
  %72 = vmatpush1.bf16.msra.mxu0 0
  %73 = vmatprep.subr.bf16.mxu0 0
  %74 = vmatpush1.bf16.msra.mxu0 0
  %75 = vmatprep.subr.bf16.mxu0 0
  %76 = vmatpush1.bf16.msra.mxu0 0
  %77 = vmatprep.subr.bf16.mxu0 0
  %78 = vmatpush1.bf16.msra.mxu0 0
  %79 = vmatprep.mubr.bf16.mxu0 0
  %80 = vmatmul.mubr.bf16.gmra.mrb[0].mxu0 %v45
  %v81 = vpop.f32.mrb[0].mxu0
  %v82 = vadd.f32 %v30, %v81
  %v83 = vpop.f32.mrb[0].mxu0
  %v84 = vpop.f32.mrb[0].mxu0
  %v85 = vadd.f32 %v30, %v84
  %v86 = vpop.f32.mrb[0].mxu0
  %87 = vdwg.mxu0
  %v88 = vmax.f32 %v82, 0.0
  %v89 = vmax.f32 %v85, 0.0
  %v90 = vpack.c.bf16 %v89, %v88
  %v91 = vld [vmem:[%s3] sm:$0xf]
  %v92 = vld [vmem:[%s3 + $0x4] sm:$0xf]
  %v93 = vld [vmem:[%s4] sm:$0x1]
  %v95 = vlaneseq
  %v96 = vshrl.u32 %v95, 7
  %v97 = vsub.s32 0, %v96
  %v98 = vrot.slane %v93, %v97
  %v102 = vunpack.c.l.b16 %v91
  %v103 = vunpack.c.l.b16 %v92
  %v104 = vpack.c.b16 %v103, %v102
  %v107 = vsel %vm43, %v90, 0
  %109 = vmatprep.subr.bf16.mxu0 0
  %110 = vmatpush1.bf16.msra.mxu0 %v104
  %111 = vmatprep.subr.bf16.mxu0 0
  %112 = vmatpush1.bf16.msra.mxu0 0
  %113 = vmatprep.subr.bf16.mxu0 0
  %114 = vmatpush1.bf16.msra.mxu0 0
  %115 = vmatprep.subr.bf16.mxu0 0
  %116 = vmatpush1.bf16.msra.mxu0 0
  %117 = vmatprep.subr.bf16.mxu0 0
  %118 = vmatpush1.bf16.msra.mxu0 0
  %119 = vmatprep.subr.bf16.mxu0 0
  %120 = vmatpush1.bf16.msra.mxu0 0
  %121 = vmatprep.subr.bf16.mxu0 0
  %122 = vmatpush1.bf16.msra.mxu0 0
  %123 = vmatprep.subr.bf16.mxu0 0
  %124 = vmatpush1.bf16.msra.mxu0 0
  %125 = vmatprep.subr.bf16.mxu0 0
  %126 = vmatpush1.bf16.msra.mxu0 0
  %127 = vmatprep.subr.bf16.mxu0 0
  %128 = vmatpush1.bf16.msra.mxu0 0
  %129 = vmatprep.subr.bf16.mxu0 0
  %130 = vmatpush1.bf16.msra.mxu0 0
  %131 = vmatprep.subr.bf16.mxu0 0
  %132 = vmatpush1.bf16.msra.mxu0 0
  %133 = vmatprep.subr.bf16.mxu0 0
  %134 = vmatpush1.bf16.msra.mxu0 0
  %135 = vmatprep.subr.bf16.mxu0 0
  %136 = vmatpush1.bf16.msra.mxu0 0
  %137 = vmatprep.subr.bf16.mxu0 0
  %138 = vmatpush1.bf16.msra.mxu0 0
  %139 = vmatprep.subr.bf16.mxu0 0
  %140 = vmatpush1.bf16.msra.mxu0 0
  %141 = vmatprep.mubr.bf16.mxu0 0
  %142 = vmatmul.mubr.bf16.gmra.mrb[0].mxu0 %v107
  %v143 = vpop.f32.mrb[0].mxu0
  %v144 = vadd.f32 %v98, %v143
  %v145 = vpop.f32.mrb[0].mxu0
  %v146 = vpop.f32.mrb[0].mxu0
  %v147 = vadd.f32 %v98, %v146
  %v148 = vpop.f32.mrb[0].mxu0
  %149 = vdwg.mxu0
  %v150 = vmax.f32 %v144, 0.0
  %v151 = vmax.f32 %v147, 0.0
  %153 = vrot.lane.b32.xlu0 %v90, 112
  %v154 = vpop.permute.xlu0 %153
  %v156 = vsel %vm43, %v154, 0
  %158 = vmatprep.subr.bf16.mxu0 0
  %159 = vmatpush1.bf16.msra.mxu0 %v104
  %160 = vmatprep.subr.bf16.mxu0 0
  %161 = vmatpush1.bf16.msra.mxu0 0
  %162 = vmatprep.subr.bf16.mxu0 0
  %163 = vmatpush1.bf16.msra.mxu0 0
  %164 = vmatprep.subr.bf16.mxu0 0
  %165 = vmatpush1.bf16.msra.mxu0 0
  %166 = vmatprep.subr.bf16.mxu0 0
  %167 = vmatpush1.bf16.msra.mxu0 0
  %168 = vmatprep.subr.bf16.mxu0 0
  %169 = vmatpush1.bf16.msra.mxu0 0
  %170 = vmatprep.subr.bf16.mxu0 0
  %171 = vmatpush1.bf16.msra.mxu0 0
  %172 = vmatprep.subr.bf16.mxu0 0
  %173 = vmatpush1.bf16.msra.mxu0 0
  %174 = vmatprep.subr.bf16.mxu0 0
  %175 = vmatpush1.bf16.msra.mxu0 0
  %176 = vmatprep.subr.bf16.mxu0 0
  %177 = vmatpush1.bf16.msra.mxu0 0
  %178 = vmatprep.subr.bf16.mxu0 0
  %179 = vmatpush1.bf16.msra.mxu0 0
  %180 = vmatprep.subr.bf16.mxu0 0
  %181 = vmatpush1.bf16.msra.mxu0 0
  %182 = vmatprep.subr.bf16.mxu0 0
  %183 = vmatpush1.bf16.msra.mxu0 0
  %184 = vmatprep.subr.bf16.mxu0 0
  %185 = vmatpush1.bf16.msra.mxu0 0
  %186 = vmatprep.subr.bf16.mxu0 0
  %187 = vmatpush1.bf16.msra.mxu0 0
  %188 = vmatprep.subr.bf16.mxu0 0
  %189 = vmatpush1.bf16.msra.mxu0 0
  %190 = vmatprep.mubr.bf16.mxu0 0
  %191 = vmatmul.mubr.bf16.gmra.mrb[0].mxu0 %v156
  %v192 = vpop.f32.mrb[0].mxu0
  %v193 = vadd.f32 %v98, %v192
  %v194 = vpop.f32.mrb[0].mxu0
  %v195 = vpop.f32.mrb[0].mxu0
  %v196 = vadd.f32 %v98, %v195
  %v197 = vpop.f32.mrb[0].mxu0
  %198 = vdwg.mxu0
  %v199 = vmax.f32 %v193, 0.0
  %v200 = vmax.f32 %v196, 0.0
  %201 = vrot.lane.b32.xlu0 %v90, 96
  %v202 = vpop.permute.xlu0 %201
  %v204 = vsel %vm43, %v202, 0
  %206 = vmatprep.subr.bf16.mxu0 0
  %207 = vmatpush1.bf16.msra.mxu0 %v104
  %208 = vmatprep.subr.bf16.mxu0 0
  %209 = vmatpush1.bf16.msra.mxu0 0
  %210 = vmatprep.subr.bf16.mxu0 0
  %211 = vmatpush1.bf16.msra.mxu0 0
  %212 = vmatprep.subr.bf16.mxu0 0
  %213 = vmatpush1.bf16.msra.mxu0 0
  %214 = vmatprep.subr.bf16.mxu0 0
  %215 = vmatpush1.bf16.msra.mxu0 0
  %216 = vmatprep.subr.bf16.mxu0 0
  %217 = vmatpush1.bf16.msra.mxu0 0
  %218 = vmatprep.subr.bf16.mxu0 0
  %219 = vmatpush1.bf16.msra.mxu0 0
  %220 = vmatprep.subr.bf16.mxu0 0
  %221 = vmatpush1.bf16.msra.mxu0 0
  %222 = vmatprep.subr.bf16.mxu0 0
  %223 = vmatpush1.bf16.msra.mxu0 0
  %224 = vmatprep.subr.bf16.mxu0 0
  %225 = vmatpush1.bf16.msra.mxu0 0
  %226 = vmatprep.subr.bf16.mxu0 0
  %227 = vmatpush1.bf16.msra.mxu0 0
  %228 = vmatprep.subr.bf16.mxu0 0
  %229 = vmatpush1.bf16.msra.mxu0 0
  %230 = vmatprep.subr.bf16.mxu0 0
  %231 = vmatpush1.bf16.msra.mxu0 0
  %232 = vmatprep.subr.bf16.mxu0 0
  %233 = vmatpush1.bf16.msra.mxu0 0
  %234 = vmatprep.subr.bf16.mxu0 0
  %235 = vmatpush1.bf16.msra.mxu0 0
  %236 = vmatprep.subr.bf16.mxu0 0
  %237 = vmatpush1.bf16.msra.mxu0 0
  %238 = vmatprep.mubr.bf16.mxu0 0
  %239 = vmatmul.mubr.bf16.gmra.mrb[0].mxu0 %v204
  %v240 = vpop.f32.mrb[0].mxu0
  %v241 = vadd.f32 %v98, %v240
  %v242 = vpop.f32.mrb[0].mxu0
  %v243 = vpop.f32.mrb[0].mxu0
  %v244 = vadd.f32 %v98, %v243
  %v245 = vpop.f32.mrb[0].mxu0
  %246 = vdwg.mxu0
  %v247 = vmax.f32 %v241, 0.0
  %v248 = vmax.f32 %v244, 0.0
  %249 = vrot.lane.b32.xlu0 %v90, 80
  %v250 = vpop.permute.xlu0 %249
  %v252 = vsel %vm43, %v250, 0
  %254 = vmatprep.subr.bf16.mxu0 0
  %255 = vmatpush1.bf16.msra.mxu0 %v104
  %256 = vmatprep.subr.bf16.mxu0 0
  %257 = vmatpush1.bf16.msra.mxu0 0
  %258 = vmatprep.subr.bf16.mxu0 0
  %259 = vmatpush1.bf16.msra.mxu0 0
  %260 = vmatprep.subr.bf16.mxu0 0
  %261 = vmatpush1.bf16.msra.mxu0 0
  %262 = vmatprep.subr.bf16.mxu0 0
  %263 = vmatpush1.bf16.msra.mxu0 0
  %264 = vmatprep.subr.bf16.mxu0 0
  %265 = vmatpush1.bf16.msra.mxu0 0
  %266 = vmatprep.subr.bf16.mxu0 0
  %267 = vmatpush1.bf16.msra.mxu0 0
  %268 = vmatprep.subr.bf16.mxu0 0
  %269 = vmatpush1.bf16.msra.mxu0 0
  %270 = vmatprep.subr.bf16.mxu0 0
  %271 = vmatpush1.bf16.msra.mxu0 0
  %272 = vmatprep.subr.bf16.mxu0 0
  %273 = vmatpush1.bf16.msra.mxu0 0
  %274 = vmatprep.subr.bf16.mxu0 0
  %275 = vmatpush1.bf16.msra.mxu0 0
  %276 = vmatprep.subr.bf16.mxu0 0
  %277 = vmatpush1.bf16.msra.mxu0 0
  %278 = vmatprep.subr.bf16.mxu0 0
  %279 = vmatpush1.bf16.msra.mxu0 0
  %280 = vmatprep.subr.bf16.mxu0 0
  %281 = vmatpush1.bf16.msra.mxu0 0
  %282 = vmatprep.subr.bf16.mxu0 0
  %283 = vmatpush1.bf16.msra.mxu0 0
  %284 = vmatprep.subr.bf16.mxu0 0
  %285 = vmatpush1.bf16.msra.mxu0 0
  %286 = vmatprep.mubr.bf16.mxu0 0
  %287 = vmatmul.mubr.bf16.gmra.mrb[0].mxu0 %v252
  %v288 = vpop.f32.mrb[0].mxu0
  %v289 = vadd.f32 %v98, %v288
  %v290 = vpop.f32.mrb[0].mxu0
  %v291 = vpop.f32.mrb[0].mxu0
  %v292 = vadd.f32 %v98, %v291
  %v293 = vpop.f32.mrb[0].mxu0
  %294 = vdwg.mxu0
  %v295 = vmax.f32 %v289, 0.0
  %v296 = vmax.f32 %v292, 0.0
  %299 = vrot.lane.b32.xlu0 %v199, 32
  %v300 = vpop.permute.xlu0 %299
  %301 = vrot.lane.b32.xlu0 %v200, 32
  %v302 = vpop.permute.xlu0 %301
  %307 = vrot.lane.b32.xlu0 %v247, 64
  %v308 = vpop.permute.xlu0 %307
  %309 = vrot.lane.b32.xlu0 %v248, 64
  %v310 = vpop.permute.xlu0 %309
  %315 = vrot.lane.b32.xlu0 %v295, 96
  %v316 = vpop.permute.xlu0 %315
  %317 = vrot.lane.b32.xlu0 %v296, 96
  %v318 = vpop.permute.xlu0 %317
  %vm321 = vcmask 261120
  %v322 = vsel %vm321, %v150, %v300
  %v323 = vsel %vm321, %v151, %v302
  %vm324 = vcmask 523264
  %v325 = vsel %vm324, %v322, %v308
  %v326 = vsel %vm324, %v323, %v310
  %vm327 = vcmask 785408
  %v328 = vsel %vm327, %v325, %v316
  %v329 = vsel %vm327, %v326, %v318
  %v330 = vpack.c.bf16 %v329, %v328
  %v332 = vunpack.c.l.b16 %v330
  %v333 = vunpack.c.h.b16 %v330
  %v334 = vpack.c.b16 %v332, %v332
  %v335 = vpack.c.b16 %v333, %v333
  %338 = vst [vmem:[%s5] sm:$0xf] %v334
  %339 = vst [vmem:[%s5 + $0x4] sm:$0xf] %v335
  // Predicated region
  $region22: #{forward.8} parent=0 // pred_check
    _
  $region23: #{forward.8} parent=0 // pred_check_branch
    %341 = sbr.rel (0) target = $region25
  $region24: #{forward.8} parent=0 // pred_region
    _
  $region25: #{forward.8} parent=0 // pred_fallthru
    _
  // Predicated region
  $region26: #{forward.8} parent=0 // pred_check
    _
  $region27: #{forward.8} parent=0 // pred_check_branch
    %343 = sbr.rel (0) target = $region29
  $region28: #{forward.8} parent=0 // pred_region
    _
  $region29: #{forward.8} parent=0 // pred_fallthru
    _

// kernel: forward.6
$region0: #{forward.6}
  #allocation0 [shape = 'u32[]', space=smem, size = 0x4, offset = 0x4, fixed_abs, tag = 'smem constant byte address 0x4 - core index']
  #allocation1 [shape = 'u32[144,128]{1,0:T(1,128)}', space=vmem, size = 0x12000, scoped, tag = 'internal scratch']
  #allocation2 [shape = 'f32[32,32]{1,0:T(8,128)}', space=vmem, size = 0x4000, scoped, tag = 'scratch operand']
  %s0 = inlined_call_operand.vmem [shape: bf16[2,32,32], index: 0, kind: input, shape index: {}]
  %s1 = inlined_call_operand.vmem [shape: bf16[2,32,96], index: 1, kind: input, shape index: {}]
  %s2 = inlined_call_operand.vmem [shape: f32[2,1,96], index: 2, kind: input, shape index: {}]
  %s3 = inlined_call_operand.vmem [shape: bf16[2,32,32], index: 3, kind: input, shape index: {}]
  %s4 = inlined_call_operand.vmem [shape: f32[2,1,32], index: 4, kind: input, shape index: {}]
  %s5 = inlined_call_operand.vmem [shape: bf16[2,32,64], index: 5, kind: input, shape index: {}]
  %s6 = inlined_call_operand.vmem [shape: f32[2,1,64], index: 6, kind: input, shape index: {}]
  %s7 = inlined_call_operand.vmem [shape: bf16[2,64,32], index: 7, kind: input, shape index: {}]
  %s8 = inlined_call_operand.vmem [shape: f32[2,1,32], index: 8, kind: input, shape index: {}]
  %s9 = inlined_call_operand.vmem [shape: f32[1,32], index: 9, kind: input, shape index: {}]
  %s10 = inlined_call_operand.vmem [shape: f32[1,32], index: 10, kind: input, shape index: {}]
  %s11 = inlined_call_operand.vmem [shape: bf16[2,32,32], index: 11, kind: output, shape index: {}]
  %s12 = sld [smem:[#allocation0]]
  $region85: #{forward.6} parent=0
    _
  %s14 = ssub.s32 1, %s12
  %s15 = scalar_select 0, %s14, %s12
  loop: start=0, step=1, limit=6
  $region2: #{forward.6} parent=0 // loop_pre_header
    _
  $region3: #{forward.6} parent=0 // loop_header
    %s17 = sphi 0, %s21
    %p18 = scmp.ge.s32.totalorder %s17, 6
    %s24 = sphi 0, %s36
    %s25 = sphi 0, %s32
    %s26 = sphi 0, %s24
    %s27 = sphi 0, %s25
    %s28 = sphi 0, %s26
    %s29 = sphi 0, %s27
    %s39 = sphi 0, %s41
    %s42 = sphi 0, %s39
    %s43 = sphi 0, %s42
    %s59 = sphi 0, %s43
    %s65 = sphi 0, %s67
    %s68 = sphi 0, %s65
    %s69 = sphi 0, %s68
    %s85 = sphi 0, %s69
    %s91 = sphi 0, %s93
    %s94 = sphi 0, %s91
    %s95 = sphi 0, %s94
    %s111 = sphi 0, %s95
    %s117 = sphi 0, %s119
    %s120 = sphi 0, %s117
    %s121 = sphi 0, %s120
    %s137 = sphi 0, %s121
    %s143 = sphi 0, %s145
    %s146 = sphi 0, %s143
    %s147 = sphi 0, %s146
    %s163 = sphi 0, %s147
    %s169 = sphi 0, %s171
    %s172 = sphi 0, %s169
    %s173 = sphi 0, %s172
    %s189 = sphi 0, %s173
    %s195 = sphi 0, %s197
    %s198 = sphi 0, %s195
    %s199 = sphi 0, %s198
    %s215 = sphi 0, %s199
    %s221 = sphi 0, %s223
    %s224 = sphi 0, %s221
    %s225 = sphi 0, %s224
    %s241 = sphi 0, %s225
    %s247 = sphi 0, %s249
    %s250 = sphi 0, %s247
    %s251 = sphi 0, %s250
    %s267 = sphi 0, %s251
    %s271 = sphi 0, %s271
    %s273 = sphi 0, %s271
    %s274 = sphi 0, %s273
    %s288 = sphi 0, %s274
    %s292 = sphi 0, %s292
    %s294 = sphi 0, %s292
    %s295 = sphi 0, %s294
    %s309 = sphi 0, %s295
    %s315 = sphi 0, %s317
    %s318 = sphi 0, %s315
    %s319 = sphi 0, %s318
    %s335 = sphi 0, %s319
  $region4: #{forward.6} parent=0 // loop_header_branch
    %20 = sbr.rel (%p18) target = $region8
  $region5: #{forward.6} parent=0 // loop_body
    %s22 = ssub.s32 %s17, 1
    %s23 = ssub.s32 %s17, 2
    %s30 = sadd.s32 1, %s25
    %p31 = scmp.ge.s32.totalorder %s30, 2
    %s32 = scalar_select %p31, 0, %s30
    %s33 = sadd.s32 1, %s24
    %s34 = scalar_select %p31, %s33, %s24
    %p35 = scmp.ge.s32.totalorder %s34, 2
    %s36 = scalar_select %p35, 0, %s34
    %s37 = ssub.s32 %s24, %s36
    %p38 = scmp.eq.s32.totalorder %s37, 0
    %s40 = sadd.s32 %s39, 1
    %s41 = scalar_select %p38, %s39, %s40
    %p44 = pneg %p38
    %p45 = scmp.eq.s32.totalorder %s17, 3
    %p46 = por %p44, %p45
    %p47 = scmp.ne.s32.totalorder %s39, %s42
    %p48 = scmp.eq.s32.totalorder %s17, 0
    %p49 = por %p47, %p48
    %p50 = scmp.ne.s32.totalorder %s39, %s42
    %p51 = scmp.eq.s32.totalorder %s22, 3
    %p52 = por %p50, %p51
    %p53 = scmp.ne.s32.totalorder %s42, %s43
    %p54 = scmp.eq.s32.totalorder %s22, 0
    %p55 = por %p53, %p54
    %p56 = scmp.ne.s32.totalorder %s42, %s43
    %p57 = scmp.eq.s32.totalorder %s23, 3
    %p58 = por %p56, %p57
    %p60 = scmp.ne.s32.totalorder %s43, %s59
    %p61 = scmp.eq.s32.totalorder %s23, 0
    %p62 = por %p60, %p61
    %s63 = ssub.s32 %s25, %s32
    %p64 = scmp.eq.s32.totalorder %s63, 0
    %s66 = sadd.s32 %s65, 1
    %s67 = scalar_select %p64, %s65, %s66
    %p70 = pneg %p64
    %p71 = scmp.eq.s32.totalorder %s17, 3
    %p72 = por %p70, %p71
    %p73 = scmp.ne.s32.totalorder %s65, %s68
    %p74 = scmp.eq.s32.totalorder %s17, 0
    %p75 = por %p73, %p74
    %p76 = scmp.ne.s32.totalorder %s65, %s68
    %p77 = scmp.eq.s32.totalorder %s22, 3
    %p78 = por %p76, %p77
    %p79 = scmp.ne.s32.totalorder %s68, %s69
    %p80 = scmp.eq.s32.totalorder %s22, 0
    %p81 = por %p79, %p80
    %p82 = scmp.ne.s32.totalorder %s68, %s69
    %p83 = scmp.eq.s32.totalorder %s23, 3
    %p84 = por %p82, %p83
    %p86 = scmp.ne.s32.totalorder %s69, %s85
    %p87 = scmp.eq.s32.totalorder %s23, 0
    %p88 = por %p86, %p87
    %s89 = ssub.s32 %s25, %s32
    %p90 = scmp.eq.s32.totalorder %s89, 0
    %s92 = sadd.s32 %s91, 1
    %s93 = scalar_select %p90, %s91, %s92
    %p96 = pneg %p90
    %p97 = scmp.eq.s32.totalorder %s17, 3
    %p98 = por %p96, %p97
    %p99 = scmp.ne.s32.totalorder %s91, %s94
    %p100 = scmp.eq.s32.totalorder %s17, 0
    %p101 = por %p99, %p100
    %p102 = scmp.ne.s32.totalorder %s91, %s94
    %p103 = scmp.eq.s32.totalorder %s22, 3
    %p104 = por %p102, %p103
    %p105 = scmp.ne.s32.totalorder %s94, %s95
    %p106 = scmp.eq.s32.totalorder %s22, 0
    %p107 = por %p105, %p106
    %p108 = scmp.ne.s32.totalorder %s94, %s95
    %p109 = scmp.eq.s32.totalorder %s23, 3
    %p110 = por %p108, %p109
    %p112 = scmp.ne.s32.totalorder %s95, %s111
    %p113 = scmp.eq.s32.totalorder %s23, 0
    %p114 = por %p112, %p113
    %s115 = ssub.s32 %s25, %s32
    %p116 = scmp.eq.s32.totalorder %s115, 0
    %s118 = sadd.s32 %s117, 1
    %s119 = scalar_select %p116, %s117, %s118
    %p122 = pneg %p116
    %p123 = scmp.eq.s32.totalorder %s17, 3
    %p124 = por %p122, %p123
    %p125 = scmp.ne.s32.totalorder %s117, %s120
    %p126 = scmp.eq.s32.totalorder %s17, 0
    %p127 = por %p125, %p126
    %p128 = scmp.ne.s32.totalorder %s117, %s120
    %p129 = scmp.eq.s32.totalorder %s22, 3
    %p130 = por %p128, %p129
    %p131 = scmp.ne.s32.totalorder %s120, %s121
    %p132 = scmp.eq.s32.totalorder %s22, 0
    %p133 = por %p131, %p132
    %p134 = scmp.ne.s32.totalorder %s120, %s121
    %p135 = scmp.eq.s32.totalorder %s23, 3
    %p136 = por %p134, %p135
    %p138 = scmp.ne.s32.totalorder %s121, %s137
    %p139 = scmp.eq.s32.totalorder %s23, 0
    %p140 = por %p138, %p139
    %s141 = ssub.s32 %s25, %s32
    %p142 = scmp.eq.s32.totalorder %s141, 0
    %s144 = sadd.s32 %s143, 1
    %s145 = scalar_select %p142, %s143, %s144
    %p148 = pneg %p142
    %p149 = scmp.eq.s32.totalorder %s17, 3
    %p150 = por %p148, %p149
    %p151 = scmp.ne.s32.totalorder %s143, %s146
    %p152 = scmp.eq.s32.totalorder %s17, 0
    %p153 = por %p151, %p152
    %p154 = scmp.ne.s32.totalorder %s143, %s146
    %p155 = scmp.eq.s32.totalorder %s22, 3
    %p156 = por %p154, %p155
    %p157 = scmp.ne.s32.totalorder %s146, %s147
    %p158 = scmp.eq.s32.totalorder %s22, 0
    %p159 = por %p157, %p158
    %p160 = scmp.ne.s32.totalorder %s146, %s147
    %p161 = scmp.eq.s32.totalorder %s23, 3
    %p162 = por %p160, %p161
    %p164 = scmp.ne.s32.totalorder %s147, %s163
    %p165 = scmp.eq.s32.totalorder %s23, 0
    %p166 = por %p164, %p165
    %s167 = ssub.s32 %s25, %s32
    %p168 = scmp.eq.s32.totalorder %s167, 0
    %s170 = sadd.s32 %s169, 1
    %s171 = scalar_select %p168, %s169, %s170
    %p174 = pneg %p168
    %p175 = scmp.eq.s32.totalorder %s17, 3
    %p176 = por %p174, %p175
    %p177 = scmp.ne.s32.totalorder %s169, %s172
    %p178 = scmp.eq.s32.totalorder %s17, 0
    %p179 = por %p177, %p178
    %p180 = scmp.ne.s32.totalorder %s169, %s172
    %p181 = scmp.eq.s32.totalorder %s22, 3
    %p182 = por %p180, %p181
    %p183 = scmp.ne.s32.totalorder %s172, %s173
    %p184 = scmp.eq.s32.totalorder %s22, 0
    %p185 = por %p183, %p184
    %p186 = scmp.ne.s32.totalorder %s172, %s173
    %p187 = scmp.eq.s32.totalorder %s23, 3
    %p188 = por %p186, %p187
    %p190 = scmp.ne.s32.totalorder %s173, %s189
    %p191 = scmp.eq.s32.totalorder %s23, 0
    %p192 = por %p190, %p191
    %s193 = ssub.s32 %s25, %s32
    %p194 = scmp.eq.s32.totalorder %s193, 0
    %s196 = sadd.s32 %s195, 1
    %s197 = scalar_select %p194, %s195, %s196
    %p200 = pneg %p194
    %p201 = scmp.eq.s32.totalorder %s17, 3
    %p202 = por %p200, %p201
    %p203 = scmp.ne.s32.totalorder %s195, %s198
    %p204 = scmp.eq.s32.totalorder %s17, 0
    %p205 = por %p203, %p204
    %p206 = scmp.ne.s32.totalorder %s195, %s198
    %p207 = scmp.eq.s32.totalorder %s22, 3
    %p208 = por %p206, %p207
    %p209 = scmp.ne.s32.totalorder %s198, %s199
    %p210 = scmp.eq.s32.totalorder %s22, 0
    %p211 = por %p209, %p210
    %p212 = scmp.ne.s32.totalorder %s198, %s199
    %p213 = scmp.eq.s32.totalorder %s23, 3
    %p214 = por %p212, %p213
    %p216 = scmp.ne.s32.totalorder %s199, %s215
    %p217 = scmp.eq.s32.totalorder %s23, 0
    %p218 = por %p216, %p217
    %s219 = ssub.s32 %s25, %s32
    %p220 = scmp.eq.s32.totalorder %s219, 0
    %s222 = sadd.s32 %s221, 1
    %s223 = scalar_select %p220, %s221, %s222
    %p226 = pneg %p220
    %p227 = scmp.eq.s32.totalorder %s17, 3
    %p228 = por %p226, %p227
    %p229 = scmp.ne.s32.totalorder %s221, %s224
    %p230 = scmp.eq.s32.totalorder %s17, 0
    %p231 = por %p229, %p230
    %p232 = scmp.ne.s32.totalorder %s221, %s224
    %p233 = scmp.eq.s32.totalorder %s22, 3
    %p234 = por %p232, %p233
    %p235 = scmp.ne.s32.totalorder %s224, %s225
    %p236 = scmp.eq.s32.totalorder %s22, 0
    %p237 = por %p235, %p236
    %p238 = scmp.ne.s32.totalorder %s224, %s225
    %p239 = scmp.eq.s32.totalorder %s23, 3
    %p240 = por %p238, %p239
    %p242 = scmp.ne.s32.totalorder %s225, %s241
    %p243 = scmp.eq.s32.totalorder %s23, 0
    %p244 = por %p242, %p243
    %s245 = ssub.s32 %s25, %s32
    %p246 = scmp.eq.s32.totalorder %s245, 0
    %s248 = sadd.s32 %s247, 1
    %s249 = scalar_select %p246, %s247, %s248
    %p252 = pneg %p246
    %p253 = scmp.eq.s32.totalorder %s17, 3
    %p254 = por %p252, %p253
    %p255 = scmp.ne.s32.totalorder %s247, %s250
    %p256 = scmp.eq.s32.totalorder %s17, 0
    %p257 = por %p255, %p256
    %p258 = scmp.ne.s32.totalorder %s247, %s250
    %p259 = scmp.eq.s32.totalorder %s22, 3
    %p260 = por %p258, %p259
    %p261 = scmp.ne.s32.totalorder %s250, %s251
    %p262 = scmp.eq.s32.totalorder %s22, 0
    %p263 = por %p261, %p262
    %p264 = scmp.ne.s32.totalorder %s250, %s251
    %p265 = scmp.eq.s32.totalorder %s23, 3
    %p266 = por %p264, %p265
    %p268 = scmp.ne.s32.totalorder %s251, %s267
    %p269 = scmp.eq.s32.totalorder %s23, 0
    %p270 = por %p268, %p269
    %s272 = sadd.s32 %s271, 1
    %p275 = scmp.eq.s32.totalorder %s17, 3
    %p276 = scmp.ne.s32.totalorder %s271, %s273
    %p277 = scmp.eq.s32.totalorder %s17, 0
    %p278 = por %p276, %p277
    %p279 = scmp.ne.s32.totalorder %s271, %s273
    %p280 = scmp.eq.s32.totalorder %s22, 3
    %p281 = por %p279, %p280
    %p282 = scmp.ne.s32.totalorder %s273, %s274
    %p283 = scmp.eq.s32.totalorder %s22, 0
    %p284 = por %p282, %p283
    %p285 = scmp.ne.s32.totalorder %s273, %s274
    %p286 = scmp.eq.s32.totalorder %s23, 3
    %p287 = por %p285, %p286
    %p289 = scmp.ne.s32.totalorder %s274, %s288
    %p290 = scmp.eq.s32.totalorder %s23, 0
    %p291 = por %p289, %p290
    %s293 = sadd.s32 %s292, 1
    %p296 = scmp.eq.s32.totalorder %s17, 3
    %p297 = scmp.ne.s32.totalorder %s292, %s294
    %p298 = scmp.eq.s32.totalorder %s17, 0
    %p299 = por %p297, %p298
    %p300 = scmp.ne.s32.totalorder %s292, %s294
    %p301 = scmp.eq.s32.totalorder %s22, 3
    %p302 = por %p300, %p301
    %p303 = scmp.ne.s32.totalorder %s294, %s295
    %p304 = scmp.eq.s32.totalorder %s22, 0
    %p305 = por %p303, %p304
    %p306 = scmp.ne.s32.totalorder %s294, %s295
    %p307 = scmp.eq.s32.totalorder %s23, 3
    %p308 = por %p306, %p307
    %p310 = scmp.ne.s32.totalorder %s295, %s309
    %p311 = scmp.eq.s32.totalorder %s23, 0
    %p312 = por %p310, %p311
    %s313 = ssub.s32 %s24, %s36
    %p314 = scmp.eq.s32.totalorder %s313, 0
    %s316 = sadd.s32 %s315, 1
    %s317 = scalar_select %p314, %s315, %s316
    %p320 = pneg %p314
    %p321 = scmp.eq.s32.totalorder %s17, 3
    %p322 = por %p320, %p321
    %p323 = scmp.ne.s32.totalorder %s315, %s318
    %p324 = scmp.eq.s32.totalorder %s17, 0
    %p325 = por %p323, %p324
    %p326 = scmp.ne.s32.totalorder %s315, %s318
    %p327 = scmp.eq.s32.totalorder %s22, 3
    %p328 = por %p326, %p327
    %p329 = scmp.ne.s32.totalorder %s318, %s319
    %p330 = scmp.eq.s32.totalorder %s22, 0
    %p331 = por %p329, %p330
    %p332 = scmp.ne.s32.totalorder %s318, %s319
    %p333 = scmp.eq.s32.totalorder %s23, 3
    %p334 = por %p332, %p333
    %p336 = scmp.ne.s32.totalorder %s319, %s335
    %p337 = scmp.eq.s32.totalorder %s23, 0
    %p338 = por %p336, %p337
    %p339 = scmp.le.s32.totalorder 1, %s17
    %p340 = scmp.lt.s32.totalorder %s17, 5
    %p341 = pnand %p339, %p340
    %p342 = pneg %p341
    // Predicated region
    $region9: #{forward.6} parent=5 // pred_check
      _
    $region10: #{forward.6} parent=5 // pred_check_branch
      %344 = sbr.rel (%p341) target = $region12
    $region11: #{forward.6} parent=5 // pred_region
      %s345 = ssub.s32 %s17, 1
      // Predicated region
      $region13: #{forward.6} parent=11 // pred_check
        %p346 = pneg %p284
      $region14: #{forward.6} parent=11 // pred_check_branch
        %348 = sbr.rel (%p346) target = $region16
      $region15: #{forward.6} parent=11 // pred_region
        _
      $region16: #{forward.6} parent=11 // pred_fallthru
        _
      // Predicated region
      $region17: #{forward.6} parent=11 // pred_check
        %p349 = pneg %p305
      $region18: #{forward.6} parent=11 // pred_check_branch
        %351 = sbr.rel (%p349) target = $region20
      $region19: #{forward.6} parent=11 // pred_region
        _
      $region20: #{forward.6} parent=11 // pred_fallthru
        _
    $region12: #{forward.6} parent=5 // pred_fallthru
      _
    %p352 = scmp.lt.s32.totalorder %s17, 4
    // Predicated region
    $region21: #{forward.6} parent=5 // pred_check
      %p353 = pneg %p352
    $region22: #{forward.6} parent=5 // pred_check_branch
      %355 = sbr.rel (%p353) target = $region24
    $region23: #{forward.6} parent=5 // pred_region
      // Predicated region
      $region25: #{forward.6} parent=23 // pred_check
        %p356 = pneg %p49
      $region26: #{forward.6} parent=23 // pred_check_branch
        %358 = sbr.rel (%p356) target = $region28
      $region27: #{forward.6} parent=23 // pred_region
        %p359 = scmp.lt.s32.totalorder %s24, 1
        %s360 = scalar_select %p359, %s24, 1
        %s361 = smul.addr %s360, 4
        %s362 = smul.addr %s361, 4
        %s363 = scalar_lea.vmem %s0, %s362
      $region28: #{forward.6} parent=23 // pred_fallthru
        _
      // Predicated region
      $region29: #{forward.6} parent=23 // pred_check
        %p364 = pneg %p75
      $region30: #{forward.6} parent=23 // pred_check_branch
        %366 = sbr.rel (%p364) target = $region32
      $region31: #{forward.6} parent=23 // pred_region
        %p367 = scmp.lt.s32.totalorder %s25, 1
        %s368 = scalar_select %p367, %s25, 1
        %s369 = smul.addr %s368, 4
        %s370 = smul.addr %s369, 4
        %s371 = scalar_lea.vmem %s1, %s370
      $region32: #{forward.6} parent=23 // pred_fallthru
        _
      // Predicated region
      $region33: #{forward.6} parent=23 // pred_check
        %p372 = pneg %p101
      $region34: #{forward.6} parent=23 // pred_check_branch
        %374 = sbr.rel (%p372) target = $region36
      $region35: #{forward.6} parent=23 // pred_region
        %p375 = scmp.lt.s32.totalorder %s25, 1
        %s376 = scalar_select %p375, %s25, 1
        %s377 = scalar_lea.vmem %s2, %s376
      $region36: #{forward.6} parent=23 // pred_fallthru
        _
      // Predicated region
      $region37: #{forward.6} parent=23 // pred_check
        %p378 = pneg %p127
      $region38: #{forward.6} parent=23 // pred_check_branch
        %380 = sbr.rel (%p378) target = $region40
      $region39: #{forward.6} parent=23 // pred_region
        %p381 = scmp.lt.s32.totalorder %s25, 1
        %s382 = scalar_select %p381, %s25, 1
        %s383 = smul.addr %s382, 4
        %s384 = smul.addr %s383, 4
        %s385 = scalar_lea.vmem %s3, %s384
      $region40: #{forward.6} parent=23 // pred_fallthru
        _
      // Predicated region
      $region41: #{forward.6} parent=23 // pred_check
        %p386 = pneg %p153
      $region42: #{forward.6} parent=23 // pred_check_branch
        %388 = sbr.rel (%p386) target = $region44
      $region43: #{forward.6} parent=23 // pred_region
        %p389 = scmp.lt.s32.totalorder %s25, 1
        %s390 = scalar_select %p389, %s25, 1
        %s391 = scalar_lea.vmem %s4, %s390
      $region44: #{forward.6} parent=23 // pred_fallthru
        _
      // Predicated region
      $region45: #{forward.6} parent=23 // pred_check
        %p392 = pneg %p179
      $region46: #{forward.6} parent=23 // pred_check_branch
        %394 = sbr.rel (%p392) target = $region48
      $region47: #{forward.6} parent=23 // pred_region
        %p395 = scmp.lt.s32.totalorder %s25, 1
        %s396 = scalar_select %p395, %s25, 1
        %s397 = smul.addr %s396, 4
        %s398 = smul.addr %s397, 4
        %s399 = scalar_lea.vmem %s5, %s398
      $region48: #{forward.6} parent=23 // pred_fallthru
        _
      // Predicated region
      $region49: #{forward.6} parent=23 // pred_check
        %p400 = pneg %p205
      $region50: #{forward.6} parent=23 // pred_check_branch
        %402 = sbr.rel (%p400) target = $region52
      $region51: #{forward.6} parent=23 // pred_region
        %p403 = scmp.lt.s32.totalorder %s25, 1
        %s404 = scalar_select %p403, %s25, 1
        %s405 = scalar_lea.vmem %s6, %s404
      $region52: #{forward.6} parent=23 // pred_fallthru
        _
      // Predicated region
      $region53: #{forward.6} parent=23 // pred_check
        %p406 = pneg %p231
      $region54: #{forward.6} parent=23 // pred_check_branch
        %408 = sbr.rel (%p406) target = $region56
      $region55: #{forward.6} parent=23 // pred_region
        %p409 = scmp.lt.s32.totalorder %s25, 1
        %s410 = scalar_select %p409, %s25, 1
        %s411 = smul.addr %s410, 8
        %s412 = smul.addr %s411, 4
        %s413 = scalar_lea.vmem %s7, %s412
      $region56: #{forward.6} parent=23 // pred_fallthru
        _
      // Predicated region
      $region57: #{forward.6} parent=23 // pred_check
        %p414 = pneg %p257
      $region58: #{forward.6} parent=23 // pred_check_branch
        %416 = sbr.rel (%p414) target = $region60
      $region59: #{forward.6} parent=23 // pred_region
        %p417 = scmp.lt.s32.totalorder %s25, 1
        %s418 = scalar_select %p417, %s25, 1
        %s419 = scalar_lea.vmem %s8, %s418
      $region60: #{forward.6} parent=23 // pred_fallthru
        _
    $region24: #{forward.6} parent=5 // pred_fallthru
      _
    %p420 = scmp.le.s32.totalorder 1, %s17
    %p421 = scmp.lt.s32.totalorder %s17, 5
    %p422 = pnand %p420, %p421
    %p423 = pneg %p422
    // Predicated region
    $region61: #{forward.6} parent=5 // pred_check
      _
    $region62: #{forward.6} parent=5 // pred_check_branch
      %425 = sbr.rel (%p422) target = $region64
    $region63: #{forward.6} parent=5 // pred_region
      %s426 = ssub.s32 %s17, 1
      %p427 = scmp.lt.s32.totalorder %s26, 1
      %s428 = scalar_select %p427, %s26, 1
      %s429 = smul.addr %s428, 4
      %s430 = smul.addr %s429, 4
      %s431 = scalar_lea.vmem %s0, %s430
      %p432 = pneg %p55
      %p433 = pneg %p52
      %p434 = scmp.lt.s32.totalorder %s27, 1
      %s435 = scalar_select %p434, %s27, 1
      %s436 = smul.addr %s435, 4
      %s437 = smul.addr %s436, 4
      %s438 = scalar_lea.vmem %s1, %s437
      %p439 = pneg %p81
      %p440 = pneg %p78
      %p441 = scmp.lt.s32.totalorder %s27, 1
      %s442 = scalar_select %p441, %s27, 1
      %s443 = scalar_lea.vmem %s2, %s442
      %p444 = pneg %p107
      %p445 = pneg %p104
      %p446 = scmp.lt.s32.totalorder %s27, 1
      %s447 = scalar_select %p446, %s27, 1
      %s448 = smul.addr %s447, 4
      %s449 = smul.addr %s448, 4
      %s450 = scalar_lea.vmem %s3, %s449
      %p451 = pneg %p133
      %p452 = pneg %p130
      %p453 = scmp.lt.s32.totalorder %s27, 1
      %s454 = scalar_select %p453, %s27, 1
      %s455 = scalar_lea.vmem %s4, %s454
      %p456 = pneg %p159
      %p457 = pneg %p156
      %p458 = scmp.lt.s32.totalorder %s27, 1
      %s459 = scalar_select %p458, %s27, 1
      %s460 = smul.addr %s459, 4
      %s461 = smul.addr %s460, 4
      %s462 = scalar_lea.vmem %s5, %s461
      %p463 = pneg %p185
      %p464 = pneg %p182
      %p465 = scmp.lt.s32.totalorder %s27, 1
      %s466 = scalar_select %p465, %s27, 1
      %s467 = scalar_lea.vmem %s6, %s466
      %p468 = pneg %p211
      %p469 = pneg %p208
      %p470 = scmp.lt.s32.totalorder %s27, 1
      %s471 = scalar_select %p470, %s27, 1
      %s472 = smul.addr %s471, 8
      %s473 = smul.addr %s472, 4
      %s474 = scalar_lea.vmem %s7, %s473
      %p475 = pneg %p237
      %p476 = pneg %p234
      %p477 = scmp.lt.s32.totalorder %s27, 1
      %s478 = scalar_select %p477, %s27, 1
      %s479 = scalar_lea.vmem %s8, %s478
      %p480 = pneg %p263
      %p481 = pneg %p260
      %p482 = pneg %p284
      %p483 = pneg %p281
      %p484 = pneg %p305
      %p485 = pneg %p302
      %p486 = pneg %p331
      %p487 = pneg %p328
      %p488 = scmp.lt.s32.totalorder %s26, 1
      %s489 = scalar_select %p488, %s26, 1
      %s490 = smul.addr %s489, 4
      %s491 = smul.addr %s490, 4
      %s492 = scalar_lea.vmem %s11, %s491
      %p493 = scmp.lt.s32.totalorder %s26, 1
      %s494 = scalar_select %p493, %s26, 1
      %s495 = smul.addr %s494, 4
      %s496 = smul.addr %s495, 4
      %s497 = scalar_lea.vmem %s0, %s496
      %p498 = scmp.lt.s32.totalorder %s27, 1
      %s499 = scalar_select %p498, %s27, 1
      %s500 = smul.addr %s499, 4
      %s501 = smul.addr %s500, 4
      %s502 = scalar_lea.vmem %s1, %s501
      %p503 = scmp.lt.s32.totalorder %s27, 1
      %s504 = scalar_select %p503, %s27, 1
      %s505 = scalar_lea.vmem %s2, %s504
      %p506 = scmp.lt.s32.totalorder %s27, 1
      %s507 = scalar_select %p506, %s27, 1
      %s508 = smul.addr %s507, 4
      %s509 = smul.addr %s508, 4
      %s510 = scalar_lea.vmem %s3, %s509
      %p511 = scmp.lt.s32.totalorder %s27, 1
      %s512 = scalar_select %p511, %s27, 1
      %s513 = scalar_lea.vmem %s4, %s512
      %p514 = scmp.lt.s32.totalorder %s27, 1
      %s515 = scalar_select %p514, %s27, 1
      %s516 = smul.addr %s515, 4
      %s517 = smul.addr %s516, 4
      %s518 = scalar_lea.vmem %s5, %s517
      %p519 = scmp.lt.s32.totalorder %s27, 1
      %s520 = scalar_select %p519, %s27, 1
      %s521 = scalar_lea.vmem %s6, %s520
      %p522 = scmp.lt.s32.totalorder %s27, 1
      %s523 = scalar_select %p522, %s27, 1
      %s524 = smul.addr %s523, 8
      %s525 = smul.addr %s524, 4
      %s526 = scalar_lea.vmem %s7, %s525
      %p527 = scmp.lt.s32.totalorder %s27, 1
      %s528 = scalar_select %p527, %s27, 1
      %s529 = scalar_lea.vmem %s8, %s528
      %p530 = scmp.lt.s32.totalorder %s26, 1
      %s531 = scalar_select %p530, %s26, 1
      %s532 = smul.addr %s531, 4
      %s533 = smul.addr %s532, 4
      %s534 = scalar_lea.vmem %s11, %s533
      %p536 = scmp.eq.s32.totalorder %s27, 0
      // Predicated region
      $region65: #{forward.6} parent=63 // pred_check
        %p537 = pneg %p536
      $region66: #{forward.6} parent=63 // pred_check_branch
        %539 = sbr.rel (%p537) target = $region68
      $region67: #{forward.6} parent=63 // pred_region
        %v540 = vld [vmem:[%s497] sm:$0xf]
        %v541 = vld [vmem:[%s497 + $0x4] sm:$0xf]
        %v542 = vld [vmem:[%s497 + $0x8] sm:$0xf]
        %v543 = vld [vmem:[%s497 + $0xc] sm:$0xf]
        %v544 = vunpack.c.l.bf16 %v540
        %v545 = vunpack.c.l.bf16 %v541
        %v546 = vunpack.c.l.bf16 %v542
        %v547 = vunpack.c.l.bf16 %v543
        %vm548 = vcmask 261120
        %549 = vst.msk [vmem:[#allocation2] sm:$0xff] %vm548, %v544
        %550 = vst.msk [vmem:[#allocation2 + $0x8] sm:$0xff] %vm548, %v545
        %551 = vst.msk [vmem:[#allocation2 + $0x10] sm:$0xff] %vm548, %v546
        %552 = vst.msk [vmem:[#allocation2 + $0x18] sm:$0xff] %vm548, %v547
      $region68: #{forward.6} parent=63 // pred_fallthru
        _
      %v553 = vld [vmem:[#allocation2] sm:$0xff]
      %v554 = vld [vmem:[#allocation2 + $0x8] sm:$0xff]
      %v555 = vld [vmem:[#allocation2 + $0x10] sm:$0xff]
      %v556 = vld [vmem:[#allocation2 + $0x18] sm:$0xff]
      %vm557 = vcmask 261120
      %v558 = vsel %vm557, %v553, 0.0
      %559 = vadd.xlane.f32.xlu0 %v558
      %v560 = vpop.xlane.xlu0 %559
      %v561 = vsel %vm557, %v554, 0.0
      %562 = vadd.xlane.f32.xlu0 %v561
      %v563 = vpop.xlane.xlu0 %562
      %v564 = vsel %vm557, %v555, 0.0
      %565 = vadd.xlane.f32.xlu0 %v564
      %v566 = vpop.xlane.xlu0 %565
      %v567 = vsel %vm557, %v556, 0.0
      %568 = vadd.xlane.f32.xlu0 %v567
      %v569 = vpop.xlane.xlu0 %568
      %v570 = vrcp.pop 32.0
      %v571 = vmul.f32 %v560, %v570
      %v572 = vmul.f32 %v563, %v570
      %v573 = vmul.f32 %v566, %v570
      %v574 = vmul.f32 %v569, %v570
      %v575 = vsub.f32 %v553, %v571
      %v576 = vsub.f32 %v554, %v572
      %v577 = vsub.f32 %v555, %v573
      %v578 = vsub.f32 %v556, %v574
      %v579 = vmul.f32 %v575, %v575
      %v580 = vmul.f32 %v576, %v576
      %v581 = vmul.f32 %v577, %v577
      %v582 = vmul.f32 %v578, %v578
      %v583 = vsel %vm557, %v579, 0.0
      %584 = vadd.xlane.f32.xlu0 %v583
      %v585 = vpop.xlane.xlu0 %584
      %v586 = vsel %vm557, %v580, 0.0
      %587 = vadd.xlane.f32.xlu0 %v586
      %v588 = vpop.xlane.xlu0 %587
      %v589 = vsel %vm557, %v581, 0.0
      %590 = vadd.xlane.f32.xlu0 %v589
      %v591 = vpop.xlane.xlu0 %590
      %v592 = vsel %vm557, %v582, 0.0
      %593 = vadd.xlane.f32.xlu0 %v592
      %v594 = vpop.xlane.xlu0 %593
      %v595 = vmul.f32 %v585, %v570
      %v596 = vmul.f32 %v588, %v570
      %v597 = vmul.f32 %v591, %v570
      %v598 = vmul.f32 %v594, %v570
      %v599 = vadd.f32 %v595, 1e-06
      %v600 = vadd.f32 %v596, 1e-06
      %v601 = vadd.f32 %v597, 1e-06
      %v602 = vadd.f32 %v598, 1e-06
      %v603 = vrsqrt.pop %v599
      %v604 = vrsqrt.pop %v600
      %v605 = vrsqrt.pop %v601
      %v606 = vrsqrt.pop %v602
      %v607 = vmul.f32 %v575, %v603
      %v608 = vmul.f32 %v576, %v604
      %v609 = vmul.f32 %v577, %v605
      %v610 = vmul.f32 %v578, %v606
      %v611 = vpack.c.bf16 %v608, %v607
      %v612 = vpack.c.bf16 %v610, %v609
      %v613 = vld [vmem:[%s502] sm:$0xf]
      %v614 = vld [vmem:[%s502 + $0x4] sm:$0xf]
      %v615 = vld [vmem:[%s502 + $0x8] sm:$0xf]
      %v616 = vld [vmem:[%s502 + $0xc] sm:$0xf]
      %v617 = vld [vmem:[%s505] sm:$0x1]
      %v619 = vlaneseq
      %v620 = vshrl.u32 %v619, 7
      %v621 = vsub.s32 0, %v620
      %v622 = vrot.slane %v617, %v621
      %v628 = vunpack.c.l.b16 %v613
      %v629 = vunpack.c.l.b16 %v614
      %v630 = vunpack.c.l.b16 %v615
      %v631 = vunpack.c.l.b16 %v616
      %v632 = vpack.c.b16 %v629, %v628
      %v633 = vpack.c.b16 %v631, %v630
      %v637 = vsel %vm557, %v611, 0
      %v640 = vsel %vm557, %v612, 0
      %642 = vmatprep.subr.bf16.mxu0 0
      %643 = vmatpush1.bf16.msra.mxu0 %v632
      %644 = vmatprep.subr.bf16.mxu0 0
      %645 = vmatpush1.bf16.msra.mxu0 %v633
      %646 = vmatprep.subr.bf16.mxu0 0
      %647 = vmatpush1.bf16.msra.mxu0 0
      %648 = vmatprep.subr.bf16.mxu0 0
      %649 = vmatpush1.bf16.msra.mxu0 0
      %650 = vmatprep.subr.bf16.mxu0 0
      %651 = vmatpush1.bf16.msra.mxu0 0
      %652 = vmatprep.subr.bf16.mxu0 0
      %653 = vmatpush1.bf16.msra.mxu0 0
      %654 = vmatprep.subr.bf16.mxu0 0
      %655 = vmatpush1.bf16.msra.mxu0 0
      %656 = vmatprep.subr.bf16.mxu0 0
      %657 = vmatpush1.bf16.msra.mxu0 0
      %658 = vmatprep.subr.bf16.mxu0 0
      %659 = vmatpush1.bf16.msra.mxu0 0
      %660 = vmatprep.subr.bf16.mxu0 0
      %661 = vmatpush1.bf16.msra.mxu0 0
      %662 = vmatprep.subr.bf16.mxu0 0
      %663 = vmatpush1.bf16.msra.mxu0 0
      %664 = vmatprep.subr.bf16.mxu0 0
      %665 = vmatpush1.bf16.msra.mxu0 0
      %666 = vmatprep.subr.bf16.mxu0 0
      %667 = vmatpush1.bf16.msra.mxu0 0
      %668 = vmatprep.subr.bf16.mxu0 0
      %669 = vmatpush1.bf16.msra.mxu0 0
      %670 = vmatprep.subr.bf16.mxu0 0
      %671 = vmatpush1.bf16.msra.mxu0 0
      %672 = vmatprep.subr.bf16.mxu0 0
      %673 = vmatpush1.bf16.msra.mxu0 0
      %674 = vmatprep.mubr.bf16.mxu0 0
      %675 = vmatmul.mubr.bf16.gmra.mrb[0].mxu0 %v637
      %v676 = vpop.f32.mrb[0].mxu0
      %v677 = vadd.f32 %v622, %v676
      %v678 = vpop.f32.mrb[0].mxu0
      %v679 = vpop.f32.mrb[0].mxu0
      %v680 = vadd.f32 %v622, %v679
      %v681 = vpop.f32.mrb[0].mxu0
      %682 = vmatprep.mubr.bf16.mxu0 0
      %683 = vmatmul.mubr.bf16.gmra.mrb[0].mxu0 %v640
      %v684 = vpop.f32.mrb[0].mxu0
      %v685 = vadd.f32 %v622, %v684
      %v686 = vpop.f32.mrb[0].mxu0
      %v687 = vpop.f32.mrb[0].mxu0
      %v688 = vadd.f32 %v622, %v687
      %v689 = vpop.f32.mrb[0].mxu0
      %690 = vdwg.mxu0
      %v691 = vlaneseq
      %v692 = vand.u32 %v691, 127
      %vm693 = vcmp.lt.s32.totalorder %v692, 17
      %v694 = vpack.c.bf16 %v680, %v677
      %v695 = vpack.c.bf16 %v688, %v685
      %698 = vrot.lane.b32.xlu0 %v694, 96
      %v699 = vpop.permute.xlu0 %698
      %700 = vrot.lane.b32.xlu0 %v695, 96
      %v701 = vpop.permute.xlu0 %700
      %vm702 = vcmask 64512
      %v704 = vsel %vm702, %v694, 0
      %v707 = vsel %vm702, %v695, 0
      %v710 = vsel %vm702, %v699, 0
      %v713 = vsel %vm702, %v701, 0
      %715 = vmatprep.subr.bf16.mxu0 0
      %716 = vmatpush1.bf16.xpose.msra.mxu0 %v710
      %717 = vmatprep.subr.bf16.mxu0 0
      %718 = vmatpush1.bf16.xpose.msra.mxu0 %v713
      %719 = vmatprep.subr.bf16.mxu0 0
      %720 = vmatpush1.bf16.xpose.msra.mxu0 0
      %721 = vmatprep.subr.bf16.mxu0 0
      %722 = vmatpush1.bf16.xpose.msra.mxu0 0
      %723 = vmatprep.subr.bf16.mxu0 0
      %724 = vmatpush1.bf16.xpose.msra.mxu0 0
      %725 = vmatprep.subr.bf16.mxu0 0
      %726 = vmatpush1.bf16.xpose.msra.mxu0 0
      %727 = vmatprep.subr.bf16.mxu0 0
      %728 = vmatpush1.bf16.xpose.msra.mxu0 0
      %729 = vmatprep.subr.bf16.mxu0 0
      %730 = vmatpush1.bf16.xpose.msra.mxu0 0
      %731 = vmatprep.subr.bf16.mxu0 0
      %732 = vmatpush1.bf16.xpose.msra.mxu0 0
      %733 = vmatprep.subr.bf16.mxu0 0
      %734 = vmatpush1.bf16.xpose.msra.mxu0 0
      %735 = vmatprep.subr.bf16.mxu0 0
      %736 = vmatpush1.bf16.xpose.msra.mxu0 0
      %737 = vmatprep.subr.bf16.mxu0 0
      %738 = vmatpush1.bf16.xpose.msra.mxu0 0
      %739 = vmatprep.subr.bf16.mxu0 0
      %740 = vmatpush1.bf16.xpose.msra.mxu0 0
      %741 = vmatprep.subr.bf16.mxu0 0
      %742 = vmatpush1.bf16.xpose.msra.mxu0 0
      %743 = vmatprep.subr.bf16.mxu0 0
      %744 = vmatpush1.bf16.xpose.msra.mxu0 0
      %745 = vmatprep.subr.bf16.mxu0 0
      %746 = vmatpush1.bf16.xpose.msra.mxu0 0
      %747 = vmatprep.mubr.bf16.mxu0 0
      %748 = vmatmul.mubr.bf16.gmra.mrb[0].mxu0 %v704
      %v749 = vpop.f32.mrb[0].mxu0
      %v750 = vadd.f32 0.0, %v749
      %v751 = vpop.f32.mrb[0].mxu0
      %v752 = vpop.f32.mrb[0].mxu0
      %v753 = vadd.f32 0.0, %v752
      %v754 = vpop.f32.mrb[0].mxu0
      %755 = vmatprep.mubr.bf16.mxu0 0
      %756 = vmatmul.mubr.bf16.gmra.mrb[0].mxu0 %v707
      %v757 = vpop.f32.mrb[0].mxu0
      %v758 = vadd.f32 0.0, %v757
      %v759 = vpop.f32.mrb[0].mxu0
      %v760 = vpop.f32.mrb[0].mxu0
      %v761 = vadd.f32 0.0, %v760
      %v762 = vpop.f32.mrb[0].mxu0
      %763 = vdwg.mxu0
      %v764 = vsel %vm693, %v750, -1e+30
      %v765 = vsel %vm693, %v753, -1e+30
      %v766 = vsel %vm693, %v758, -1e+30
      %v767 = vsel %vm693, %v761, -1e+30
      %v768 = vsel %vm557, %v764, -inf
      %769 = vmax.xlane.f32.xlu0 %v768
      %v770 = vpop.xlane.xlu0 %769
      %v771 = vsel %vm557, %v765, -inf
      %772 = vmax.xlane.f32.xlu0 %v771
      %v773 = vpop.xlane.xlu0 %772
      %v774 = vsel %vm557, %v766, -inf
      %775 = vmax.xlane.f32.xlu0 %v774
      %v776 = vpop.xlane.xlu0 %775
      %v777 = vsel %vm557, %v767, -inf
      %778 = vmax.xlane.f32.xlu0 %v777
      %v779 = vpop.xlane.xlu0 %778
      %v780 = vsub.f32 %v764, %v770
      %v781 = vsub.f32 %v765, %v773
      %v782 = vsub.f32 %v766, %v776
      %v783 = vsub.f32 %v767, %v779
      %v784 = vmul.f32 %v780, 1.442695
      %v785 = vpow.pop %v784
      %v786 = vmul.f32 %v781, 1.442695
      %v787 = vpow.pop %v786
      %v788 = vmul.f32 %v782, 1.442695
      %v789 = vpow.pop %v788
      %v790 = vmul.f32 %v783, 1.442695
      %v791 = vpow.pop %v790
      %v792 = vsel %vm557, %v785, 0.0
      %793 = vadd.xlane.f32.xlu0 %v792
      %v794 = vpop.xlane.xlu0 %793
      %v795 = vsel %vm557, %v787, 0.0
      %796 = vadd.xlane.f32.xlu0 %v795
      %v797 = vpop.xlane.xlu0 %796
      %v798 = vsel %vm557, %v789, 0.0
      %799 = vadd.xlane.f32.xlu0 %v798
      %v800 = vpop.xlane.xlu0 %799
      %v801 = vsel %vm557, %v791, 0.0
      %802 = vadd.xlane.f32.xlu0 %v801
      %v803 = vpop.xlane.xlu0 %802
      %v804 = vrcp.pop %v794
      %v805 = vrcp.pop %v797
      %v806 = vrcp.pop %v800
      %v807 = vrcp.pop %v803
      %v808 = vpack.c.bf16 %v787, %v785
      %v809 = vpack.c.bf16 %v791, %v789
      %810 = vrot.lane.b32.xlu0 %v694, 64
      %v811 = vpop.permute.xlu0 %810
      %812 = vrot.lane.b32.xlu0 %v695, 64
      %v813 = vpop.permute.xlu0 %812
      %v817 = vsel %vm557, %v808, 0
      %v820 = vsel %vm557, %v809, 0
      %822 = vmatprep.subr.bf16.mxu0 0
      %823 = vmatpush1.bf16.msra.mxu0 %v811
      %824 = vmatprep.subr.bf16.mxu0 0
      %825 = vmatpush1.bf16.msra.mxu0 %v813
      %826 = vmatprep.subr.bf16.mxu0 0
      %827 = vmatpush1.bf16.msra.mxu0 0
      %828 = vmatprep.subr.bf16.mxu0 0
      %829 = vmatpush1.bf16.msra.mxu0 0
      %830 = vmatprep.subr.bf16.mxu0 0
      %831 = vmatpush1.bf16.msra.mxu0 0
      %832 = vmatprep.subr.bf16.mxu0 0
      %833 = vmatpush1.bf16.msra.mxu0 0
      %834 = vmatprep.subr.bf16.mxu0 0
      %835 = vmatpush1.bf16.msra.mxu0 0
      %836 = vmatprep.subr.bf16.mxu0 0
      %837 = vmatpush1.bf16.msra.mxu0 0
      %838 = vmatprep.subr.bf16.mxu0 0
      %839 = vmatpush1.bf16.msra.mxu0 0
      %840 = vmatprep.subr.bf16.mxu0 0
      %841 = vmatpush1.bf16.msra.mxu0 0
      %842 = vmatprep.subr.bf16.mxu0 0
      %843 = vmatpush1.bf16.msra.mxu0 0
      %844 = vmatprep.subr.bf16.mxu0 0
      %845 = vmatpush1.bf16.msra.mxu0 0
      %846 = vmatprep.subr.bf16.mxu0 0
      %847 = vmatpush1.bf16.msra.mxu0 0
      %848 = vmatprep.subr.bf16.mxu0 0
      %849 = vmatpush1.bf16.msra.mxu0 0
      %850 = vmatprep.subr.bf16.mxu0 0
      %851 = vmatpush1.bf16.msra.mxu0 0
      %852 = vmatprep.subr.bf16.mxu0 0
      %853 = vmatpush1.bf16.msra.mxu0 0
      %854 = vmatprep.mubr.bf16.mxu0 0
      %855 = vmatmul.mubr.bf16.gmra.mrb[0].mxu0 %v817
      %v856 = vpop.f32.mrb[0].mxu0
      %v857 = vadd.f32 0.0, %v856
      %v858 = vpop.f32.mrb[0].mxu0
      %v859 = vpop.f32.mrb[0].mxu0
      %v860 = vadd.f32 0.0, %v859
      %v861 = vpop.f32.mrb[0].mxu0
      %862 = vmatprep.mubr.bf16.mxu0 0
      %863 = vmatmul.mubr.bf16.gmra.mrb[0].mxu0 %v820
      %v864 = vpop.f32.mrb[0].mxu0
      %v865 = vadd.f32 0.0, %v864
      %v866 = vpop.f32.mrb[0].mxu0
      %v867 = vpop.f32.mrb[0].mxu0
      %v868 = vadd.f32 0.0, %v867
      %v869 = vpop.f32.mrb[0].mxu0
      %870 = vdwg.mxu0
      %v871 = vmul.f32 %v857, %v804
      %v872 = vmul.f32 %v860, %v805
      %v873 = vmul.f32 %v865, %v806
      %v874 = vmul.f32 %v868, %v807
      %875 = vrot.lane.b32.xlu0 %v694, 120
      %v876 = vpop.permute.xlu0 %875
      %877 = vrot.lane.b32.xlu0 %v695, 120
      %v878 = vpop.permute.xlu0 %877
      %879 = vrot.lane.b32.xlu0 %v694, 88
      %v880 = vpop.permute.xlu0 %879
      %881 = vrot.lane.b32.xlu0 %v695, 88
      %v882 = vpop.permute.xlu0 %881
      %v884 = vsel %vm702, %v876, 0
      %v887 = vsel %vm702, %v878, 0
      %v890 = vsel %vm702, %v880, 0
      %v893 = vsel %vm702, %v882, 0
      %895 = vmatprep.subr.bf16.mxu0 0
      %896 = vmatpush1.bf16.xpose.msra.mxu0 %v890
      %897 = vmatprep.subr.bf16.mxu0 0
      %898 = vmatpush1.bf16.xpose.msra.mxu0 %v893
      %899 = vmatprep.subr.bf16.mxu0 0
      %900 = vmatpush1.bf16.xpose.msra.mxu0 0
      %901 = vmatprep.subr.bf16.mxu0 0
      %902 = vmatpush1.bf16.xpose.msra.mxu0 0
      %903 = vmatprep.subr.bf16.mxu0 0
      %904 = vmatpush1.bf16.xpose.msra.mxu0 0
      %905 = vmatprep.subr.bf16.mxu0 0
      %906 = vmatpush1.bf16.xpose.msra.mxu0 0
      %907 = vmatprep.subr.bf16.mxu0 0
      %908 = vmatpush1.bf16.xpose.msra.mxu0 0
      %909 = vmatprep.subr.bf16.mxu0 0
      %910 = vmatpush1.bf16.xpose.msra.mxu0 0
      %911 = vmatprep.subr.bf16.mxu0 0
      %912 = vmatpush1.bf16.xpose.msra.mxu0 0
      %913 = vmatprep.subr.bf16.mxu0 0
      %914 = vmatpush1.bf16.xpose.msra.mxu0 0
      %915 = vmatprep.subr.bf16.mxu0 0
      %916 = vmatpush1.bf16.xpose.msra.mxu0 0
      %917 = vmatprep.subr.bf16.mxu0 0
      %918 = vmatpush1.bf16.xpose.msra.mxu0 0
      %919 = vmatprep.subr.bf16.mxu0 0
      %920 = vmatpush1.bf16.xpose.msra.mxu0 0
      %921 = vmatprep.subr.bf16.mxu0 0
      %922 = vmatpush1.bf16.xpose.msra.mxu0 0
      %923 = vmatprep.subr.bf16.mxu0 0
      %924 = vmatpush1.bf16.xpose.msra.mxu0 0
      %925 = vmatprep.subr.bf16.mxu0 0
      %926 = vmatpush1.bf16.xpose.msra.mxu0 0
      %927 = vmatprep.mubr.bf16.mxu0 0
      %928 = vmatmul.mubr.bf16.gmra.mrb[0].mxu0 %v884
      %v929 = vpop.f32.mrb[0].mxu0
      %v930 = vadd.f32 0.0, %v929
      %v931 = vpop.f32.mrb[0].mxu0
      %v932 = vpop.f32.mrb[0].mxu0
      %v933 = vadd.f32 0.0, %v932
      %v934 = vpop.f32.mrb[0].mxu0
      %935 = vmatprep.mubr.bf16.mxu0 0
      %936 = vmatmul.mubr.bf16.gmra.mrb[0].mxu0 %v887
      %v937 = vpop.f32.mrb[0].mxu0
      %v938 = vadd.f32 0.0, %v937
      %v939 = vpop.f32.mrb[0].mxu0
      %v940 = vpop.f32.mrb[0].mxu0
      %v941 = vadd.f32 0.0, %v940
      %v942 = vpop.f32.mrb[0].mxu0
      %943 = vdwg.mxu0
      %v944 = vsel %vm693, %v930, -1e+30
      %v945 = vsel %vm693, %v933, -1e+30
      %v946 = vsel %vm693, %v938, -1e+30
      %v947 = vsel %vm693, %v941, -1e+30
      %v948 = vsel %vm557, %v944, -inf
      %949 = vmax.xlane.f32.xlu0 %v948
      %v950 = vpop.xlane.xlu0 %949
      %v951 = vsel %vm557, %v945, -inf
      %952 = vmax.xlane.f32.xlu0 %v951
      %v953 = vpop.xlane.xlu0 %952
      %v954 = vsel %vm557, %v946, -inf
      %955 = vmax.xlane.f32.xlu0 %v954
      %v956 = vpop.xlane.xlu0 %955
      %v957 = vsel %vm557, %v947, -inf
      %958 = vmax.xlane.f32.xlu0 %v957
      %v959 = vpop.xlane.xlu0 %958
      %v960 = vsub.f32 %v944, %v950
      %v961 = vsub.f32 %v945, %v953
      %v962 = vsub.f32 %v946, %v956
      %v963 = vsub.f32 %v947, %v959
      %v964 = vmul.f32 %v960, 1.442695
      %v965 = vpow.pop %v964
      %v966 = vmul.f32 %v961, 1.442695
      %v967 = vpow.pop %v966
      %v968 = vmul.f32 %v962, 1.442695
      %v969 = vpow.pop %v968
      %v970 = vmul.f32 %v963, 1.442695
      %v971 = vpow.pop %v970
      %v972 = vsel %vm557, %v965, 0.0
      %973 = vadd.xlane.f32.xlu0 %v972
      %v974 = vpop.xlane.xlu0 %973
      %v975 = vsel %vm557, %v967, 0.0
      %976 = vadd.xlane.f32.xlu0 %v975
      %v977 = vpop.xlane.xlu0 %976
      %v978 = vsel %vm557, %v969, 0.0
      %979 = vadd.xlane.f32.xlu0 %v978
      %v980 = vpop.xlane.xlu0 %979
      %v981 = vsel %vm557, %v971, 0.0
      %982 = vadd.xlane.f32.xlu0 %v981
      %v983 = vpop.xlane.xlu0 %982
      %v984 = vrcp.pop %v974
      %v985 = vrcp.pop %v977
      %v986 = vrcp.pop %v980
      %v987 = vrcp.pop %v983
      %v988 = vpack.c.bf16 %v967, %v965
      %v989 = vpack.c.bf16 %v971, %v969
      %990 = vrot.lane.b32.xlu0 %v694, 56
      %v991 = vpop.permute.xlu0 %990
      %992 = vrot.lane.b32.xlu0 %v695, 56
      %v993 = vpop.permute.xlu0 %992
      %v997 = vsel %vm557, %v988, 0
      %v1000 = vsel %vm557, %v989, 0
      %1002 = vmatprep.subr.bf16.mxu0 0
      %1003 = vmatpush1.bf16.msra.mxu0 %v991
      %1004 = vmatprep.subr.bf16.mxu0 0
      %1005 = vmatpush1.bf16.msra.mxu0 %v993
      %1006 = vmatprep.subr.bf16.mxu0 0
      %1007 = vmatpush1.bf16.msra.mxu0 0
      %1008 = vmatprep.subr.bf16.mxu0 0
      %1009 = vmatpush1.bf16.msra.mxu0 0
      %1010 = vmatprep.subr.bf16.mxu0 0
      %1011 = vmatpush1.bf16.msra.mxu0 0
      %1012 = vmatprep.subr.bf16.mxu0 0
      %1013 = vmatpush1.bf16.msra.mxu0 0
      %1014 = vmatprep.subr.bf16.mxu0 0
      %1015 = vmatpush1.bf16.msra.mxu0 0
      %1016 = vmatprep.subr.bf16.mxu0 0
      %1017 = vmatpush1.bf16.msra.mxu0 0
      %1018 = vmatprep.subr.bf16.mxu0 0
      %1019 = vmatpush1.bf16.msra.mxu0 0
      %1020 = vmatprep.subr.bf16.mxu0 0
      %1021 = vmatpush1.bf16.msra.mxu0 0
      %1022 = vmatprep.subr.bf16.mxu0 0
      %1023 = vmatpush1.bf16.msra.mxu0 0
      %1024 = vmatprep.subr.bf16.mxu0 0
      %1025 = vmatpush1.bf16.msra.mxu0 0
      %1026 = vmatprep.subr.bf16.mxu0 0
      %1027 = vmatpush1.bf16.msra.mxu0 0
      %1028 = vmatprep.subr.bf16.mxu0 0
      %1029 = vmatpush1.bf16.msra.mxu0 0
      %1030 = vmatprep.subr.bf16.mxu0 0
      %1031 = vmatpush1.bf16.msra.mxu0 0
      %1032 = vmatprep.subr.bf16.mxu0 0
      %1033 = vmatpush1.bf16.msra.mxu0 0
      %1034 = vmatprep.mubr.bf16.mxu0 0
      %1035 = vmatmul.mubr.bf16.gmra.mrb[0].mxu0 %v997
      %v1036 = vpop.f32.mrb[0].mxu0
      %v1037 = vadd.f32 0.0, %v1036
      %v1038 = vpop.f32.mrb[0].mxu0
      %v1039 = vpop.f32.mrb[0].mxu0
      %v1040 = vadd.f32 0.0, %v1039
      %v1041 = vpop.f32.mrb[0].mxu0
      %1042 = vmatprep.mubr.bf16.mxu0 0
      %1043 = vmatmul.mubr.bf16.gmra.mrb[0].mxu0 %v1000
      %v1044 = vpop.f32.mrb[0].mxu0
      %v1045 = vadd.f32 0.0, %v1044
      %v1046 = vpop.f32.mrb[0].mxu0
      %v1047 = vpop.f32.mrb[0].mxu0
      %v1048 = vadd.f32 0.0, %v1047
      %v1049 = vpop.f32.mrb[0].mxu0
      %1050 = vdwg.mxu0
      %v1051 = vmul.f32 %v1037, %v984
      %v1052 = vmul.f32 %v1040, %v985
      %v1053 = vmul.f32 %v1045, %v986
      %v1054 = vmul.f32 %v1048, %v987
      %1055 = vrot.lane.b32.xlu0 %v694, 112
      %v1056 = vpop.permute.xlu0 %1055
      %1057 = vrot.lane.b32.xlu0 %v695, 112
      %v1058 = vpop.permute.xlu0 %1057
      %1059 = vrot.lane.b32.xlu0 %v694, 80
      %v1060 = vpop.permute.xlu0 %1059
      %1061 = vrot.lane.b32.xlu0 %v695, 80
      %v1062 = vpop.permute.xlu0 %1061
      %v1064 = vsel %vm702, %v1056, 0
      %v1067 = vsel %vm702, %v1058, 0
      %v1070 = vsel %vm702, %v1060, 0
      %v1073 = vsel %vm702, %v1062, 0
      %1075 = vmatprep.subr.bf16.mxu0 0
      %1076 = vmatpush1.bf16.xpose.msra.mxu0 %v1070
      %1077 = vmatprep.subr.bf16.mxu0 0
      %1078 = vmatpush1.bf16.xpose.msra.mxu0 %v1073
      %1079 = vmatprep.subr.bf16.mxu0 0
      %1080 = vmatpush1.bf16.xpose.msra.mxu0 0
      %1081 = vmatprep.subr.bf16.mxu0 0
      %1082 = vmatpush1.bf16.xpose.msra.mxu0 0
      %1083 = vmatprep.subr.bf16.mxu0 0
      %1084 = vmatpush1.bf16.xpose.msra.mxu0 0
      %1085 = vmatprep.subr.bf16.mxu0 0
      %1086 = vmatpush1.bf16.xpose.msra.mxu0 0
      %1087 = vmatprep.subr.bf16.mxu0 0
      %1088 = vmatpush1.bf16.xpose.msra.mxu0 0
      %1089 = vmatprep.subr.bf16.mxu0 0
      %1090 = vmatpush1.bf16.xpose.msra.mxu0 0
      %1091 = vmatprep.subr.bf16.mxu0 0
      %1092 = vmatpush1.bf16.xpose.msra.mxu0 0
      %1093 = vmatprep.subr.bf16.mxu0 0
      %1094 = vmatpush1.bf16.xpose.msra.mxu0 0
      %1095 = vmatprep.subr.bf16.mxu0 0
      %1096 = vmatpush1.bf16.xpose.msra.mxu0 0
      %1097 = vmatprep.subr.bf16.mxu0 0
      %1098 = vmatpush1.bf16.xpose.msra.mxu0 0
      %1099 = vmatprep.subr.bf16.mxu0 0
      %1100 = vmatpush1.bf16.xpose.msra.mxu0 0
      %1101 = vmatprep.subr.bf16.mxu0 0
      %1102 = vmatpush1.bf16.xpose.msra.mxu0 0
      %1103 = vmatprep.subr.bf16.mxu0 0
      %1104 = vmatpush1.bf16.xpose.msra.mxu0 0
      %1105 = vmatprep.subr.bf16.mxu0 0
      %1106 = vmatpush1.bf16.xpose.msra.mxu0 0
      %1107 = vmatprep.mubr.bf16.mxu0 0
      %1108 = vmatmul.mubr.bf16.gmra.mrb[0].mxu0 %v1064
      %v1109 = vpop.f32.mrb[0].mxu0
      %v1110 = vadd.f32 0.0, %v1109
      %v1111 = vpop.f32.mrb[0].mxu0
      %v1112 = vpop.f32.mrb[0].mxu0
      %v1113 = vadd.f32 0.0, %v1112
      %v1114 = vpop.f32.mrb[0].mxu0
      %1115 = vmatprep.mubr.bf16.mxu0 0
      %1116 = vmatmul.mubr.bf16.gmra.mrb[0].mxu0 %v1067
      %v1117 = vpop.f32.mrb[0].mxu0
      %v1118 = vadd.f32 0.0, %v1117
      %v1119 = vpop.f32.mrb[0].mxu0
      %v1120 = vpop.f32.mrb[0].mxu0
      %v1121 = vadd.f32 0.0, %v1120
      %v1122 = vpop.f32.mrb[0].mxu0
      %1123 = vdwg.mxu0
      %v1124 = vsel %vm693, %v1110, -1e+30
      %v1125 = vsel %vm693, %v1113, -1e+30
      %v1126 = vsel %vm693, %v1118, -1e+30
      %v1127 = vsel %vm693, %v1121, -1e+30
      %v1128 = vsel %vm557, %v1124, -inf
      %1129 = vmax.xlane.f32.xlu0 %v1128
      %v1130 = vpop.xlane.xlu0 %1129
      %v1131 = vsel %vm557, %v1125, -inf
      %1132 = vmax.xlane.f32.xlu0 %v1131
      %v1133 = vpop.xlane.xlu0 %1132
      %v1134 = vsel %vm557, %v1126, -inf
      %1135 = vmax.xlane.f32.xlu0 %v1134
      %v1136 = vpop.xlane.xlu0 %1135
      %v1137 = vsel %vm557, %v1127, -inf
      %1138 = vmax.xlane.f32.xlu0 %v1137
      %v1139 = vpop.xlane.xlu0 %1138
      %v1140 = vsub.f32 %v1124, %v1130
      %v1141 = vsub.f32 %v1125, %v1133
      %v1142 = vsub.f32 %v1126, %v1136
      %v1143 = vsub.f32 %v1127, %v1139
      %v1144 = vmul.f32 %v1140, 1.442695
      %v1145 = vpow.pop %v1144
      %v1146 = vmul.f32 %v1141, 1.442695
      %v1147 = vpow.pop %v1146
      %v1148 = vmul.f32 %v1142, 1.442695
      %v1149 = vpow.pop %v1148
      %v1150 = vmul.f32 %v1143, 1.442695
      %v1151 = vpow.pop %v1150
      %v1152 = vsel %vm557, %v1145, 0.0
      %1153 = vadd.xlane.f32.xlu0 %v1152
      %v1154 = vpop.xlane.xlu0 %1153
      %v1155 = vsel %vm557, %v1147, 0.0
      %1156 = vadd.xlane.f32.xlu0 %v1155
      %v1157 = vpop.xlane.xlu0 %1156
      %v1158 = vsel %vm557, %v1149, 0.0
      %1159 = vadd.xlane.f32.xlu0 %v1158
      %v1160 = vpop.xlane.xlu0 %1159
      %v1161 = vsel %vm557, %v1151, 0.0
      %1162 = vadd.xlane.f32.xlu0 %v1161
      %v1163 = vpop.xlane.xlu0 %1162
      %v1164 = vrcp.pop %v1154
      %v1165 = vrcp.pop %v1157
      %v1166 = vrcp.pop %v1160
      %v1167 = vrcp.pop %v1163
      %v1168 = vpack.c.bf16 %v1147, %v1145
      %v1169 = vpack.c.bf16 %v1151, %v1149
      %1170 = vrot.lane.b32.xlu0 %v694, 48
      %v1171 = vpop.permute.xlu0 %1170
      %1172 = vrot.lane.b32.xlu0 %v695, 48
      %v1173 = vpop.permute.xlu0 %1172
      %v1177 = vsel %vm557, %v1168, 0
      %v1180 = vsel %vm557, %v1169, 0
      %1182 = vmatprep.subr.bf16.mxu0 0
      %1183 = vmatpush1.bf16.msra.mxu0 %v1171
      %1184 = vmatprep.subr.bf16.mxu0 0
      %1185 = vmatpush1.bf16.msra.mxu0 %v1173
      %1186 = vmatprep.subr.bf16.mxu0 0
      %1187 = vmatpush1.bf16.msra.mxu0 0
      %1188 = vmatprep.subr.bf16.mxu0 0
      %1189 = vmatpush1.bf16.msra.mxu0 0
      %1190 = vmatprep.subr.bf16.mxu0 0
      %1191 = vmatpush1.bf16.msra.mxu0 0
      %1192 = vmatprep.subr.bf16.mxu0 0
      %1193 = vmatpush1.bf16.msra.mxu0 0
      %1194 = vmatprep.subr.bf16.mxu0 0
      %1195 = vmatpush1.bf16.msra.mxu0 0
      %1196 = vmatprep.subr.bf16.mxu0 0
      %1197 = vmatpush1.bf16.msra.mxu0 0
      %1198 = vmatprep.subr.bf16.mxu0 0
      %1199 = vmatpush1.bf16.msra.mxu0 0
      %1200 = vmatprep.subr.bf16.mxu0 0
      %1201 = vmatpush1.bf16.msra.mxu0 0
      %1202 = vmatprep.subr.bf16.mxu0 0
      %1203 = vmatpush1.bf16.msra.mxu0 0
      %1204 = vmatprep.subr.bf16.mxu0 0
      %1205 = vmatpush1.bf16.msra.mxu0 0
      %1206 = vmatprep.subr.bf16.mxu0 0
      %1207 = vmatpush1.bf16.msra.mxu0 0
      %1208 = vmatprep.subr.bf16.mxu0 0
      %1209 = vmatpush1.bf16.msra.mxu0 0
      %1210 = vmatprep.subr.bf16.mxu0 0
      %1211 = vmatpush1.bf16.msra.mxu0 0
      %1212 = vmatprep.subr.bf16.mxu0 0
      %1213 = vmatpush1.bf16.msra.mxu0 0
      %1214 = vmatprep.mubr.bf16.mxu0 0
      %1215 = vmatmul.mubr.bf16.gmra.mrb[0].mxu0 %v1177
      %v1216 = vpop.f32.mrb[0].mxu0
      %v1217 = vadd.f32 0.0, %v1216
      %v1218 = vpop.f32.mrb[0].mxu0
      %v1219 = vpop.f32.mrb[0].mxu0
      %v1220 = vadd.f32 0.0, %v1219
      %v1221 = vpop.f32.mrb[0].mxu0
      %1222 = vmatprep.mubr.bf16.mxu0 0
      %1223 = vmatmul.mubr.bf16.gmra.mrb[0].mxu0 %v1180
      %v1224 = vpop.f32.mrb[0].mxu0
      %v1225 = vadd.f32 0.0, %v1224
      %v1226 = vpop.f32.mrb[0].mxu0
      %v1227 = vpop.f32.mrb[0].mxu0
      %v1228 = vadd.f32 0.0, %v1227
      %v1229 = vpop.f32.mrb[0].mxu0
      %1230 = vdwg.mxu0
      %v1231 = vmul.f32 %v1217, %v1164
      %v1232 = vmul.f32 %v1220, %v1165
      %v1233 = vmul.f32 %v1225, %v1166
      %v1234 = vmul.f32 %v1228, %v1167
      %1235 = vrot.lane.b32.xlu0 %v694, 104
      %v1236 = vpop.permute.xlu0 %1235
      %1237 = vrot.lane.b32.xlu0 %v695, 104
      %v1238 = vpop.permute.xlu0 %1237
      %1239 = vrot.lane.b32.xlu0 %v694, 72
      %v1240 = vpop.permute.xlu0 %1239
      %1241 = vrot.lane.b32.xlu0 %v695, 72
      %v1242 = vpop.permute.xlu0 %1241
      %v1244 = vsel %vm702, %v1236, 0
      %v1247 = vsel %vm702, %v1238, 0
      %v1250 = vsel %vm702, %v1240, 0
      %v1253 = vsel %vm702, %v1242, 0
      %1255 = vmatprep.subr.bf16.mxu0 0
      %1256 = vmatpush1.bf16.xpose.msra.mxu0 %v1250
      %1257 = vmatprep.subr.bf16.mxu0 0
      %1258 = vmatpush1.bf16.xpose.msra.mxu0 %v1253
      %1259 = vmatprep.subr.bf16.mxu0 0
      %1260 = vmatpush1.bf16.xpose.msra.mxu0 0
      %1261 = vmatprep.subr.bf16.mxu0 0
      %1262 = vmatpush1.bf16.xpose.msra.mxu0 0
      %1263 = vmatprep.subr.bf16.mxu0 0
      %1264 = vmatpush1.bf16.xpose.msra.mxu0 0
      %1265 = vmatprep.subr.bf16.mxu0 0
      %1266 = vmatpush1.bf16.xpose.msra.mxu0 0
      %1267 = vmatprep.subr.bf16.mxu0 0
      %1268 = vmatpush1.bf16.xpose.msra.mxu0 0
      %1269 = vmatprep.subr.bf16.mxu0 0
      %1270 = vmatpush1.bf16.xpose.msra.mxu0 0
      %1271 = vmatprep.subr.bf16.mxu0 0
      %1272 = vmatpush1.bf16.xpose.msra.mxu0 0
      %1273 = vmatprep.subr.bf16.mxu0 0
      %1274 = vmatpush1.bf16.xpose.msra.mxu0 0
      %1275 = vmatprep.subr.bf16.mxu0 0
      %1276 = vmatpush1.bf16.xpose.msra.mxu0 0
      %1277 = vmatprep.subr.bf16.mxu0 0
      %1278 = vmatpush1.bf16.xpose.msra.mxu0 0
      %1279 = vmatprep.subr.bf16.mxu0 0
      %1280 = vmatpush1.bf16.xpose.msra.mxu0 0
      %1281 = vmatprep.subr.bf16.mxu0 0
      %1282 = vmatpush1.bf16.xpose.msra.mxu0 0
      %1283 = vmatprep.subr.bf16.mxu0 0
      %1284 = vmatpush1.bf16.xpose.msra.mxu0 0
      %1285 = vmatprep.subr.bf16.mxu0 0
      %1286 = vmatpush1.bf16.xpose.msra.mxu0 0
      %1287 = vmatprep.mubr.bf16.mxu0 0
      %1288 = vmatmul.mubr.bf16.gmra.mrb[0].mxu0 %v1244
      %v1289 = vpop.f32.mrb[0].mxu0
      %v1290 = vadd.f32 0.0, %v1289
      %v1291 = vpop.f32.mrb[0].mxu0
      %v1292 = vpop.f32.mrb[0].mxu0
      %v1293 = vadd.f32 0.0, %v1292
      %v1294 = vpop.f32.mrb[0].mxu0
      %1295 = vmatprep.mubr.bf16.mxu0 0
      %1296 = vmatmul.mubr.bf16.gmra.mrb[0].mxu0 %v1247
      %v1297 = vpop.f32.mrb[0].mxu0
      %v1298 = vadd.f32 0.0, %v1297
      %v1299 = vpop.f32.mrb[0].mxu0
      %v1300 = vpop.f32.mrb[0].mxu0
      %v1301 = vadd.f32 0.0, %v1300
      %v1302 = vpop.f32.mrb[0].mxu0
      %1303 = vdwg.mxu0
      %v1304 = vsel %vm693, %v1290, -1e+30
      %v1305 = vsel %vm693, %v1293, -1e+30
      %v1306 = vsel %vm693, %v1298, -1e+30
      %v1307 = vsel %vm693, %v1301, -1e+30
      %v1308 = vsel %vm557, %v1304, -inf
      %1309 = vmax.xlane.f32.xlu0 %v1308
      %v1310 = vpop.xlane.xlu0 %1309
      %v1311 = vsel %vm557, %v1305, -inf
      %1312 = vmax.xlane.f32.xlu0 %v1311
      %v1313 = vpop.xlane.xlu0 %1312
      %v1314 = vsel %vm557, %v1306, -inf
      %1315 = vmax.xlane.f32.xlu0 %v1314
      %v1316 = vpop.xlane.xlu0 %1315
      %v1317 = vsel %vm557, %v1307, -inf
      %1318 = vmax.xlane.f32.xlu0 %v1317
      %v1319 = vpop.xlane.xlu0 %1318
      %v1320 = vsub.f32 %v1304, %v1310
      %v1321 = vsub.f32 %v1305, %v1313
      %v1322 = vsub.f32 %v1306, %v1316
      %v1323 = vsub.f32 %v1307, %v1319
      %v1324 = vmul.f32 %v1320, 1.442695
      %v1325 = vpow.pop %v1324
      %v1326 = vmul.f32 %v1321, 1.442695
      %v1327 = vpow.pop %v1326
      %v1328 = vmul.f32 %v1322, 1.442695
      %v1329 = vpow.pop %v1328
      %v1330 = vmul.f32 %v1323, 1.442695
      %v1331 = vpow.pop %v1330
      %v1332 = vsel %vm557, %v1325, 0.0
      %1333 = vadd.xlane.f32.xlu0 %v1332
      %v1334 = vpop.xlane.xlu0 %1333
      %v1335 = vsel %vm557, %v1327, 0.0
      %1336 = vadd.xlane.f32.xlu0 %v1335
      %v1337 = vpop.xlane.xlu0 %1336
      %v1338 = vsel %vm557, %v1329, 0.0
      %1339 = vadd.xlane.f32.xlu0 %v1338
      %v1340 = vpop.xlane.xlu0 %1339
      %v1341 = vsel %vm557, %v1331, 0.0
      %1342 = vadd.xlane.f32.xlu0 %v1341
      %v1343 = vpop.xlane.xlu0 %1342
      %v1344 = vrcp.pop %v1334
      %v1345 = vrcp.pop %v1337
      %v1346 = vrcp.pop %v1340
      %v1347 = vrcp.pop %v1343
      %v1348 = vpack.c.bf16 %v1327, %v1325
      %v1349 = vpack.c.bf16 %v1331, %v1329
      %1350 = vrot.lane.b32.xlu0 %v694, 40
      %v1351 = vpop.permute.xlu0 %1350
      %1352 = vrot.lane.b32.xlu0 %v695, 40
      %v1353 = vpop.permute.xlu0 %1352
      %v1357 = vsel %vm557, %v1348, 0
      %v1360 = vsel %vm557, %v1349, 0
      %1362 = vmatprep.subr.bf16.mxu0 0
      %1363 = vmatpush1.bf16.msra.mxu0 %v1351
      %1364 = vmatprep.subr.bf16.mxu0 0
      %1365 = vmatpush1.bf16.msra.mxu0 %v1353
      %1366 = vmatprep.subr.bf16.mxu0 0
      %1367 = vmatpush1.bf16.msra.mxu0 0
      %1368 = vmatprep.subr.bf16.mxu0 0
      %1369 = vmatpush1.bf16.msra.mxu0 0
      %1370 = vmatprep.subr.bf16.mxu0 0
      %1371 = vmatpush1.bf16.msra.mxu0 0
      %1372 = vmatprep.subr.bf16.mxu0 0
      %1373 = vmatpush1.bf16.msra.mxu0 0
      %1374 = vmatprep.subr.bf16.mxu0 0
      %1375 = vmatpush1.bf16.msra.mxu0 0
      %1376 = vmatprep.subr.bf16.mxu0 0
      %1377 = vmatpush1.bf16.msra.mxu0 0
      %1378 = vmatprep.subr.bf16.mxu0 0
      %1379 = vmatpush1.bf16.msra.mxu0 0
      %1380 = vmatprep.subr.bf16.mxu0 0
      %1381 = vmatpush1.bf16.msra.mxu0 0
      %1382 = vmatprep.subr.bf16.mxu0 0
      %1383 = vmatpush1.bf16.msra.mxu0 0
      %1384 = vmatprep.subr.bf16.mxu0 0
      %1385 = vmatpush1.bf16.msra.mxu0 0
      %1386 = vmatprep.subr.bf16.mxu0 0
      %1387 = vmatpush1.bf16.msra.mxu0 0
      %1388 = vmatprep.subr.bf16.mxu0 0
      %1389 = vmatpush1.bf16.msra.mxu0 0
      %1390 = vmatprep.subr.bf16.mxu0 0
      %1391 = vmatpush1.bf16.msra.mxu0 0
      %1392 = vmatprep.subr.bf16.mxu0 0
      %1393 = vmatpush1.bf16.msra.mxu0 0
      %1394 = vmatprep.mubr.bf16.mxu0 0
      %1395 = vmatmul.mubr.bf16.gmra.mrb[0].mxu0 %v1357
      %v1396 = vpop.f32.mrb[0].mxu0
      %v1397 = vadd.f32 0.0, %v1396
      %v1398 = vpop.f32.mrb[0].mxu0
      %v1399 = vpop.f32.mrb[0].mxu0
      %v1400 = vadd.f32 0.0, %v1399
      %v1401 = vpop.f32.mrb[0].mxu0
      %1402 = vmatprep.mubr.bf16.mxu0 0
      %1403 = vmatmul.mubr.bf16.gmra.mrb[0].mxu0 %v1360
      %v1404 = vpop.f32.mrb[0].mxu0
      %v1405 = vadd.f32 0.0, %v1404
      %v1406 = vpop.f32.mrb[0].mxu0
      %v1407 = vpop.f32.mrb[0].mxu0
      %v1408 = vadd.f32 0.0, %v1407
      %v1409 = vpop.f32.mrb[0].mxu0
      %1410 = vdwg.mxu0
      %v1411 = vmul.f32 %v1397, %v1344
      %v1412 = vmul.f32 %v1400, %v1345
      %v1413 = vmul.f32 %v1405, %v1346
      %v1414 = vmul.f32 %v1408, %v1347
      %1419 = vrot.lane.b32.xlu0 %v1051, 8
      %v1420 = vpop.permute.xlu0 %1419
      %1421 = vrot.lane.b32.xlu0 %v1052, 8
      %v1422 = vpop.permute.xlu0 %1421
      %1423 = vrot.lane.b32.xlu0 %v1053, 8
      %v1424 = vpop.permute.xlu0 %1423
      %1425 = vrot.lane.b32.xlu0 %v1054, 8
      %v1426 = vpop.permute.xlu0 %1425
      %1435 = vrot.lane.b32.xlu0 %v1231, 16
      %v1436 = vpop.permute.xlu0 %1435
      %1437 = vrot.lane.b32.xlu0 %v1232, 16
      %v1438 = vpop.permute.xlu0 %1437
      %1439 = vrot.lane.b32.xlu0 %v1233, 16
      %v1440 = vpop.permute.xlu0 %1439
      %1441 = vrot.lane.b32.xlu0 %v1234, 16
      %v1442 = vpop.permute.xlu0 %1441
      %1451 = vrot.lane.b32.xlu0 %v1411, 24
      %v1452 = vpop.permute.xlu0 %1451
      %1453 = vrot.lane.b32.xlu0 %v1412, 24
      %v1454 = vpop.permute.xlu0 %1453
      %1455 = vrot.lane.b32.xlu0 %v1413, 24
      %v1456 = vpop.permute.xlu0 %1455
      %1457 = vrot.lane.b32.xlu0 %v1414, 24
      %v1458 = vpop.permute.xlu0 %1457
      %v1463 = vsel %vm702, %v871, %v1420
      %v1464 = vsel %vm702, %v872, %v1422
      %v1465 = vsel %vm702, %v873, %v1424
      %v1466 = vsel %vm702, %v874, %v1426
      %vm1467 = vcmask 130048
      %v1468 = vsel %vm1467, %v1463, %v1436
      %v1469 = vsel %vm1467, %v1464, %v1438
      %v1470 = vsel %vm1467, %v1465, %v1440
      %v1471 = vsel %vm1467, %v1466, %v1442
      %vm1472 = vcmask 195584
      %v1473 = vsel %vm1472, %v1468, %v1452
      %v1474 = vsel %vm1472, %v1469, %v1454
      %v1475 = vsel %vm1472, %v1470, %v1456
      %v1476 = vsel %vm1472, %v1471, %v1458
      %v1477 = vpack.c.bf16 %v1474, %v1473
      %v1478 = vpack.c.bf16 %v1476, %v1475
      %v1479 = vld [vmem:[%s510] sm:$0xf]
      %v1480 = vld [vmem:[%s510 + $0x4] sm:$0xf]
      %v1481 = vld [vmem:[%s510 + $0x8] sm:$0xf]
      %v1482 = vld [vmem:[%s510 + $0xc] sm:$0xf]
      %v1483 = vld [vmem:[%s513] sm:$0x1]
      %v1485 = vlaneseq
      %v1486 = vshrl.u32 %v1485, 7
      %v1487 = vsub.s32 0, %v1486
      %v1488 = vrot.slane %v1483, %v1487
      %v1494 = vunpack.c.l.b16 %v1479
      %v1495 = vunpack.c.l.b16 %v1480
      %v1496 = vunpack.c.l.b16 %v1481
      %v1497 = vunpack.c.l.b16 %v1482
      %v1498 = vpack.c.b16 %v1495, %v1494
      %v1499 = vpack.c.b16 %v1497, %v1496
      %v1503 = vsel %vm557, %v1477, 0
      %v1506 = vsel %vm557, %v1478, 0
      %1508 = vmatprep.subr.bf16.mxu0 0
      %1509 = vmatpush1.bf16.msra.mxu0 %v1498
      %1510 = vmatprep.subr.bf16.mxu0 0
      %1511 = vmatpush1.bf16.msra.mxu0 %v1499
      %1512 = vmatprep.subr.bf16.mxu0 0
      %1513 = vmatpush1.bf16.msra.mxu0 0
      %1514 = vmatprep.subr.bf16.mxu0 0
      %1515 = vmatpush1.bf16.msra.mxu0 0
      %1516 = vmatprep.subr.bf16.mxu0 0
      %1517 = vmatpush1.bf16.msra.mxu0 0
      %1518 = vmatprep.subr.bf16.mxu0 0
      %1519 = vmatpush1.bf16.msra.mxu0 0
      %1520 = vmatprep.subr.bf16.mxu0 0
      %1521 = vmatpush1.bf16.msra.mxu0 0
      %1522 = vmatprep.subr.bf16.mxu0 0
      %1523 = vmatpush1.bf16.msra.mxu0 0
      %1524 = vmatprep.subr.bf16.mxu0 0
      %1525 = vmatpush1.bf16.msra.mxu0 0
      %1526 = vmatprep.subr.bf16.mxu0 0
      %1527 = vmatpush1.bf16.msra.mxu0 0
      %1528 = vmatprep.subr.bf16.mxu0 0
      %1529 = vmatpush1.bf16.msra.mxu0 0
      %1530 = vmatprep.subr.bf16.mxu0 0
      %1531 = vmatpush1.bf16.msra.mxu0 0
      %1532 = vmatprep.subr.bf16.mxu0 0
      %1533 = vmatpush1.bf16.msra.mxu0 0
      %1534 = vmatprep.subr.bf16.mxu0 0
      %1535 = vmatpush1.bf16.msra.mxu0 0
      %1536 = vmatprep.subr.bf16.mxu0 0
      %1537 = vmatpush1.bf16.msra.mxu0 0
      %1538 = vmatprep.subr.bf16.mxu0 0
      %1539 = vmatpush1.bf16.msra.mxu0 0
      %1540 = vmatprep.mubr.bf16.mxu0 0
      %1541 = vmatmul.mubr.bf16.gmra.mrb[0].mxu0 %v1503
      %v1542 = vpop.f32.mrb[0].mxu0
      %v1543 = vadd.f32 %v1488, %v1542
      %v1544 = vpop.f32.mrb[0].mxu0
      %v1545 = vpop.f32.mrb[0].mxu0
      %v1546 = vadd.f32 %v1488, %v1545
      %v1547 = vpop.f32.mrb[0].mxu0
      %1548 = vmatprep.mubr.bf16.mxu0 0
      %1549 = vmatmul.mubr.bf16.gmra.mrb[0].mxu0 %v1506
      %v1550 = vpop.f32.mrb[0].mxu0
      %v1551 = vadd.f32 %v1488, %v1550
      %v1552 = vpop.f32.mrb[0].mxu0
      %v1553 = vpop.f32.mrb[0].mxu0
      %v1554 = vadd.f32 %v1488, %v1553
      %v1555 = vpop.f32.mrb[0].mxu0
      %1556 = vdwg.mxu0
      %v1557 = vadd.f32 %v553, %v1543
      %v1558 = vadd.f32 %v554, %v1546
      %v1559 = vadd.f32 %v555, %v1551
      %v1560 = vadd.f32 %v556, %v1554
      %v1561 = vsel %vm557, %v1557, 0.0
      %1562 = vadd.xlane.f32.xlu0 %v1561
      %v1563 = vpop.xlane.xlu0 %1562
      %v1564 = vsel %vm557, %v1558, 0.0
      %1565 = vadd.xlane.f32.xlu0 %v1564
      %v1566 = vpop.xlane.xlu0 %1565
      %v1567 = vsel %vm557, %v1559, 0.0
      %1568 = vadd.xlane.f32.xlu0 %v1567
      %v1569 = vpop.xlane.xlu0 %1568
      %v1570 = vsel %vm557, %v1560, 0.0
      %1571 = vadd.xlane.f32.xlu0 %v1570
      %v1572 = vpop.xlane.xlu0 %1571
      %v1573 = vmul.f32 %v1563, %v570
      %v1574 = vmul.f32 %v1566, %v570
      %v1575 = vmul.f32 %v1569, %v570
      %v1576 = vmul.f32 %v1572, %v570
      %v1577 = vsub.f32 %v1557, %v1573
      %v1578 = vsub.f32 %v1558, %v1574
      %v1579 = vsub.f32 %v1559, %v1575
      %v1580 = vsub.f32 %v1560, %v1576
      %v1581 = vmul.f32 %v1577, %v1577
      %v1582 = vmul.f32 %v1578, %v1578
      %v1583 = vmul.f32 %v1579, %v1579
      %v1584 = vmul.f32 %v1580, %v1580
      %v1585 = vsel %vm557, %v1581, 0.0
      %1586 = vadd.xlane.f32.xlu0 %v1585
      %v1587 = vpop.xlane.xlu0 %1586
      %v1588 = vsel %vm557, %v1582, 0.0
      %1589 = vadd.xlane.f32.xlu0 %v1588
      %v1590 = vpop.xlane.xlu0 %1589
      %v1591 = vsel %vm557, %v1583, 0.0
      %1592 = vadd.xlane.f32.xlu0 %v1591
      %v1593 = vpop.xlane.xlu0 %1592
      %v1594 = vsel %vm557, %v1584, 0.0
      %1595 = vadd.xlane.f32.xlu0 %v1594
      %v1596 = vpop.xlane.xlu0 %1595
      %v1597 = vmul.f32 %v1587, %v570
      %v1598 = vmul.f32 %v1590, %v570
      %v1599 = vmul.f32 %v1593, %v570
      %v1600 = vmul.f32 %v1596, %v570
      %v1601 = vadd.f32 %v1597, 1e-06
      %v1602 = vadd.f32 %v1598, 1e-06
      %v1603 = vadd.f32 %v1599, 1e-06
      %v1604 = vadd.f32 %v1600, 1e-06
      %v1605 = vrsqrt.pop %v1601
      %v1606 = vrsqrt.pop %v1602
      %v1607 = vrsqrt.pop %v1603
      %v1608 = vrsqrt.pop %v1604
      %v1609 = vmul.f32 %v1577, %v1605
      %v1610 = vmul.f32 %v1578, %v1606
      %v1611 = vmul.f32 %v1579, %v1607
      %v1612 = vmul.f32 %v1580, %v1608
      %v1613 = vpack.c.bf16 %v1610, %v1609
      %v1614 = vpack.c.bf16 %v1612, %v1611
      %v1615 = vld [vmem:[%s518] sm:$0xf]
      %v1616 = vld [vmem:[%s518 + $0x4] sm:$0xf]
      %v1617 = vld [vmem:[%s518 + $0x8] sm:$0xf]
      %v1618 = vld [vmem:[%s518 + $0xc] sm:$0xf]
      %v1619 = vld [vmem:[%s521] sm:$0x1]
      %v1621 = vlaneseq
      %v1622 = vshrl.u32 %v1621, 7
      %v1623 = vsub.s32 0, %v1622
      %v1624 = vrot.slane %v1619, %v1623
      %v1630 = vunpack.c.l.b16 %v1615
      %v1631 = vunpack.c.l.b16 %v1616
      %v1632 = vunpack.c.l.b16 %v1617
      %v1633 = vunpack.c.l.b16 %v1618
      %v1634 = vpack.c.b16 %v1631, %v1630
      %v1635 = vpack.c.b16 %v1633, %v1632
      %v1639 = vsel %vm557, %v1613, 0
      %v1642 = vsel %vm557, %v1614, 0
      %1644 = vmatprep.subr.bf16.mxu0 0
      %1645 = vmatpush1.bf16.msra.mxu0 %v1634
      %1646 = vmatprep.subr.bf16.mxu0 0
      %1647 = vmatpush1.bf16.msra.mxu0 %v1635
      %1648 = vmatprep.subr.bf16.mxu0 0
      %1649 = vmatpush1.bf16.msra.mxu0 0
      %1650 = vmatprep.subr.bf16.mxu0 0
      %1651 = vmatpush1.bf16.msra.mxu0 0
      %1652 = vmatprep.subr.bf16.mxu0 0
      %1653 = vmatpush1.bf16.msra.mxu0 0
      %1654 = vmatprep.subr.bf16.mxu0 0
      %1655 = vmatpush1.bf16.msra.mxu0 0
      %1656 = vmatprep.subr.bf16.mxu0 0
      %1657 = vmatpush1.bf16.msra.mxu0 0
      %1658 = vmatprep.subr.bf16.mxu0 0
      %1659 = vmatpush1.bf16.msra.mxu0 0
      %1660 = vmatprep.subr.bf16.mxu0 0
      %1661 = vmatpush1.bf16.msra.mxu0 0
      %1662 = vmatprep.subr.bf16.mxu0 0
      %1663 = vmatpush1.bf16.msra.mxu0 0
      %1664 = vmatprep.subr.bf16.mxu0 0
      %1665 = vmatpush1.bf16.msra.mxu0 0
      %1666 = vmatprep.subr.bf16.mxu0 0
      %1667 = vmatpush1.bf16.msra.mxu0 0
      %1668 = vmatprep.subr.bf16.mxu0 0
      %1669 = vmatpush1.bf16.msra.mxu0 0
      %1670 = vmatprep.subr.bf16.mxu0 0
      %1671 = vmatpush1.bf16.msra.mxu0 0
      %1672 = vmatprep.subr.bf16.mxu0 0
      %1673 = vmatpush1.bf16.msra.mxu0 0
      %1674 = vmatprep.subr.bf16.mxu0 0
      %1675 = vmatpush1.bf16.msra.mxu0 0
      %1676 = vmatprep.mubr.bf16.mxu0 0
      %1677 = vmatmul.mubr.bf16.gmra.mrb[0].mxu0 %v1639
      %v1678 = vpop.f32.mrb[0].mxu0
      %v1679 = vadd.f32 %v1624, %v1678
      %v1680 = vpop.f32.mrb[0].mxu0
      %v1681 = vpop.f32.mrb[0].mxu0
      %v1682 = vadd.f32 %v1624, %v1681
      %v1683 = vpop.f32.mrb[0].mxu0
      %1684 = vmatprep.mubr.bf16.mxu0 0
      %1685 = vmatmul.mubr.bf16.gmra.mrb[0].mxu0 %v1642
      %v1686 = vpop.f32.mrb[0].mxu0
      %v1687 = vadd.f32 %v1624, %v1686
      %v1688 = vpop.f32.mrb[0].mxu0
      %v1689 = vpop.f32.mrb[0].mxu0
      %v1690 = vadd.f32 %v1624, %v1689
      %v1691 = vpop.f32.mrb[0].mxu0
      %1692 = vdwg.mxu0
      %v1693 = vmul.f32 %v1679, 0.5
      %v1694 = vmul.f32 %v1682, 0.5
      %v1695 = vmul.f32 %v1687, 0.5
      %v1696 = vmul.f32 %v1690, 0.5
      %v1697 = vmul.f32 %v1679, 0.70710677
      %v1698 = vmul.f32 %v1682, 0.70710677
      %v1699 = vmul.f32 %v1687, 0.70710677
      %v1700 = vmul.f32 %v1690, 0.70710677
      %v1701 = vand.u32 2147483647, %v1697
      %v1702 = vand.u32 2147483647, %v1698
      %v1703 = vand.u32 2147483647, %v1699
      %v1704 = vand.u32 2147483647, %v1700
      %v1705 = vmul.f32 %v1701, 0.3275911
      %v1706 = vmul.f32 %v1702, 0.3275911
      %v1707 = vmul.f32 %v1703, 0.3275911
      %v1708 = vmul.f32 %v1704, 0.3275911
      %v1709 = vadd.f32 %v1705, 1.0
      %v1710 = vadd.f32 %v1706, 1.0
      %v1711 = vadd.f32 %v1707, 1.0
      %v1712 = vadd.f32 %v1708, 1.0
      %v1713 = vrcp.pop %v1709
      %v1714 = vmul.f32 1.0, %v1713
      %v1715 = vrcp.pop %v1710
      %v1716 = vmul.f32 1.0, %v1715
      %v1717 = vrcp.pop %v1711
      %v1718 = vmul.f32 1.0, %v1717
      %v1719 = vrcp.pop %v1712
      %v1720 = vmul.f32 1.0, %v1719
      %v1721 = vmul.f32 %v1714, 1.0614054
      %v1722 = vmul.f32 %v1716, 1.0614054
      %v1723 = vmul.f32 %v1718, 1.0614054
      %v1724 = vmul.f32 %v1720, 1.0614054
      %v1725 = vadd.f32 %v1721, -1.4531521
      %v1726 = vadd.f32 %v1722, -1.4531521
      %v1727 = vadd.f32 %v1723, -1.4531521
      %v1728 = vadd.f32 %v1724, -1.4531521
      %v1729 = vmul.f32 %v1725, %v1714
      %v1730 = vmul.f32 %v1726, %v1716
      %v1731 = vmul.f32 %v1727, %v1718
      %v1732 = vmul.f32 %v1728, %v1720
      %v1733 = vadd.f32 %v1729, 1.4214138
      %v1734 = vadd.f32 %v1730, 1.4214138
      %v1735 = vadd.f32 %v1731, 1.4214138
      %v1736 = vadd.f32 %v1732, 1.4214138
      %v1737 = vmul.f32 %v1733, %v1714
      %v1738 = vmul.f32 %v1734, %v1716
      %v1739 = vmul.f32 %v1735, %v1718
      %v1740 = vmul.f32 %v1736, %v1720
      %v1741 = vadd.f32 %v1737, -0.28449672
      %v1742 = vadd.f32 %v1738, -0.28449672
      %v1743 = vadd.f32 %v1739, -0.28449672
      %v1744 = vadd.f32 %v1740, -0.28449672
      %v1745 = vmul.f32 %v1741, %v1714
      %v1746 = vmul.f32 %v1742, %v1716
      %v1747 = vmul.f32 %v1743, %v1718
      %v1748 = vmul.f32 %v1744, %v1720
      %v1749 = vadd.f32 %v1745, 0.2548296
      %v1750 = vadd.f32 %v1746, 0.2548296
      %v1751 = vadd.f32 %v1747, 0.2548296
      %v1752 = vadd.f32 %v1748, 0.2548296
      %v1753 = vmul.f32 %v1749, %v1714
      %v1754 = vmul.f32 %v1750, %v1716
      %v1755 = vmul.f32 %v1751, %v1718
      %v1756 = vmul.f32 %v1752, %v1720
      %v1757 = vsub.f32 0.0, %v1701
      %v1758 = vsub.f32 0.0, %v1702
      %v1759 = vsub.f32 0.0, %v1703
      %v1760 = vsub.f32 0.0, %v1704
      %v1761 = vmul.f32 %v1757, %v1701
      %v1762 = vmul.f32 %v1758, %v1702
      %v1763 = vmul.f32 %v1759, %v1703
      %v1764 = vmul.f32 %v1760, %v1704
      %v1765 = vmul.f32 %v1761, 1.442695
      %v1766 = vpow.pop %v1765
      %v1767 = vmul.f32 %v1762, 1.442695
      %v1768 = vpow.pop %v1767
      %v1769 = vmul.f32 %v1763, 1.442695
      %v1770 = vpow.pop %v1769
      %v1771 = vmul.f32 %v1764, 1.442695
      %v1772 = vpow.pop %v1771
      %v1773 = vmul.f32 %v1753, %v1766
      %v1774 = vmul.f32 %v1754, %v1768
      %v1775 = vmul.f32 %v1755, %v1770
      %v1776 = vmul.f32 %v1756, %v1772
      %v1777 = vsub.f32 1.0, %v1773
      %v1778 = vsub.f32 1.0, %v1774
      %v1779 = vsub.f32 1.0, %v1775
      %v1780 = vsub.f32 1.0, %v1776
      %vm1781 = vcmp.ge.f32.partialorder %v1697, 0.0
      %vm1782 = vcmp.ge.f32.partialorder %v1698, 0.0
      %vm1783 = vcmp.ge.f32.partialorder %v1699, 0.0
      %vm1784 = vcmp.ge.f32.partialorder %v1700, 0.0
      %v1785 = vsub.f32 0.0, %v1777
      %v1786 = vsub.f32 0.0, %v1778
      %v1787 = vsub.f32 0.0, %v1779
      %v1788 = vsub.f32 0.0, %v1780
      %v1789 = vsel %vm1781, %v1777, %v1785
      %v1790 = vsel %vm1782, %v1778, %v1786
      %v1791 = vsel %vm1783, %v1779, %v1787
      %v1792 = vsel %vm1784, %v1780, %v1788
      %v1793 = vadd.f32 %v1789, 1.0
      %v1794 = vadd.f32 %v1790, 1.0
      %v1795 = vadd.f32 %v1791, 1.0
      %v1796 = vadd.f32 %v1792, 1.0
      %v1797 = vmul.f32 %v1693, %v1793
      %v1798 = vmul.f32 %v1694, %v1794
      %v1799 = vmul.f32 %v1695, %v1795
      %v1800 = vmul.f32 %v1696, %v1796
      %v1801 = vpack.c.bf16 %v1798, %v1797
      %v1802 = vpack.c.bf16 %v1800, %v1799
      %v1803 = vld [vmem:[%s526] sm:$0xf]
      %v1804 = vld [vmem:[%s526 + $0x4] sm:$0xf]
      %v1805 = vld [vmem:[%s526 + $0x8] sm:$0xf]
      %v1806 = vld [vmem:[%s526 + $0xc] sm:$0xf]
      %v1807 = vld [vmem:[%s526 + $0x10] sm:$0xf]
      %v1808 = vld [vmem:[%s526 + $0x14] sm:$0xf]
      %v1809 = vld [vmem:[%s526 + $0x18] sm:$0xf]
      %v1810 = vld [vmem:[%s526 + $0x1c] sm:$0xf]
      %v1811 = vld [vmem:[%s529] sm:$0x1]
      %v1813 = vlaneseq
      %v1814 = vshrl.u32 %v1813, 7
      %v1815 = vsub.s32 0, %v1814
      %v1816 = vrot.slane %v1811, %v1815
      %v1826 = vunpack.c.l.b16 %v1803
      %v1827 = vunpack.c.l.b16 %v1804
      %v1828 = vunpack.c.l.b16 %v1805
      %v1829 = vunpack.c.l.b16 %v1806
      %v1830 = vunpack.c.l.b16 %v1807
      %v1831 = vunpack.c.l.b16 %v1808
      %v1832 = vunpack.c.l.b16 %v1809
      %v1833 = vunpack.c.l.b16 %v1810
      %v1834 = vpack.c.b16 %v1827, %v1826
      %v1835 = vpack.c.b16 %v1829, %v1828
      %v1836 = vpack.c.b16 %v1831, %v1830
      %v1837 = vpack.c.b16 %v1833, %v1832
      %vm1842 = vcmask 523264
      %v1844 = vsel %vm1842, %v1801, 0
      %v1847 = vsel %vm1842, %v1802, 0
      %1849 = vmatprep.subr.bf16.mxu0 0
      %1850 = vmatpush1.bf16.msra.mxu0 %v1834
      %1851 = vmatprep.subr.bf16.mxu0 0
      %1852 = vmatpush1.bf16.msra.mxu0 %v1835
      %1853 = vmatprep.subr.bf16.mxu0 0
      %1854 = vmatpush1.bf16.msra.mxu0 %v1836
      %1855 = vmatprep.subr.bf16.mxu0 0
      %1856 = vmatpush1.bf16.msra.mxu0 %v1837
      %1857 = vmatprep.subr.bf16.mxu0 0
      %1858 = vmatpush1.bf16.msra.mxu0 0
      %1859 = vmatprep.subr.bf16.mxu0 0
      %1860 = vmatpush1.bf16.msra.mxu0 0
      %1861 = vmatprep.subr.bf16.mxu0 0
      %1862 = vmatpush1.bf16.msra.mxu0 0
      %1863 = vmatprep.subr.bf16.mxu0 0
      %1864 = vmatpush1.bf16.msra.mxu0 0
      %1865 = vmatprep.subr.bf16.mxu0 0
      %1866 = vmatpush1.bf16.msra.mxu0 0
      %1867 = vmatprep.subr.bf16.mxu0 0
      %1868 = vmatpush1.bf16.msra.mxu0 0
      %1869 = vmatprep.subr.bf16.mxu0 0
      %1870 = vmatpush1.bf16.msra.mxu0 0
      %1871 = vmatprep.subr.bf16.mxu0 0
      %1872 = vmatpush1.bf16.msra.mxu0 0
      %1873 = vmatprep.subr.bf16.mxu0 0
      %1874 = vmatpush1.bf16.msra.mxu0 0
      %1875 = vmatprep.subr.bf16.mxu0 0
      %1876 = vmatpush1.bf16.msra.mxu0 0
      %1877 = vmatprep.subr.bf16.mxu0 0
      %1878 = vmatpush1.bf16.msra.mxu0 0
      %1879 = vmatprep.subr.bf16.mxu0 0
      %1880 = vmatpush1.bf16.msra.mxu0 0
      %1881 = vmatprep.mubr.bf16.mxu0 0
      %1882 = vmatmul.mubr.bf16.gmra.mrb[0].mxu0 %v1844
      %v1883 = vpop.f32.mrb[0].mxu0
      %v1884 = vadd.f32 %v1816, %v1883
      %v1885 = vpop.f32.mrb[0].mxu0
      %v1886 = vpop.f32.mrb[0].mxu0
      %v1887 = vadd.f32 %v1816, %v1886
      %v1888 = vpop.f32.mrb[0].mxu0
      %1889 = vmatprep.mubr.bf16.mxu0 0
      %1890 = vmatmul.mubr.bf16.gmra.mrb[0].mxu0 %v1847
      %v1891 = vpop.f32.mrb[0].mxu0
      %v1892 = vadd.f32 %v1816, %v1891
      %v1893 = vpop.f32.mrb[0].mxu0
      %v1894 = vpop.f32.mrb[0].mxu0
      %v1895 = vadd.f32 %v1816, %v1894
      %v1896 = vpop.f32.mrb[0].mxu0
      %1897 = vdwg.mxu0
      %v1898 = vadd.f32 %v1557, %v1884
      %v1899 = vadd.f32 %v1558, %v1887
      %v1900 = vadd.f32 %v1559, %v1892
      %v1901 = vadd.f32 %v1560, %v1895
      %1902 = vst.msk [vmem:[#allocation2] sm:$0xff] %vm557, %v1898
      %1903 = vst.msk [vmem:[#allocation2 + $0x8] sm:$0xff] %vm557, %v1899
      %1904 = vst.msk [vmem:[#allocation2 + $0x10] sm:$0xff] %vm557, %v1900
      %1905 = vst.msk [vmem:[#allocation2 + $0x18] sm:$0xff] %vm557, %v1901
      %p1906 = scmp.eq.s32.totalorder %s27, 1
      // Predicated region
      $region69: #{forward.6} parent=63 // pred_check
        %p1907 = pneg %p1906
      $region70: #{forward.6} parent=63 // pred_check_branch
        %1909 = sbr.rel (%p1907) target = $region72
      $region71: #{forward.6} parent=63 // pred_region
        %v1910 = vsel %vm557, %v1898, 0.0
        %1911 = vadd.xlane.f32.xlu0 %v1910
        %v1912 = vpop.xlane.xlu0 %1911
        %v1913 = vsel %vm557, %v1899, 0.0
        %1914 = vadd.xlane.f32.xlu0 %v1913
        %v1915 = vpop.xlane.xlu0 %1914
        %v1916 = vsel %vm557, %v1900, 0.0
        %1917 = vadd.xlane.f32.xlu0 %v1916
        %v1918 = vpop.xlane.xlu0 %1917
        %v1919 = vsel %vm557, %v1901, 0.0
        %1920 = vadd.xlane.f32.xlu0 %v1919
        %v1921 = vpop.xlane.xlu0 %1920
        %v1922 = vmul.f32 %v1912, %v570
        %v1923 = vmul.f32 %v1915, %v570
        %v1924 = vmul.f32 %v1918, %v570
        %v1925 = vmul.f32 %v1921, %v570
        %v1926 = vsub.f32 %v1898, %v1922
        %v1927 = vsub.f32 %v1899, %v1923
        %v1928 = vsub.f32 %v1900, %v1924
        %v1929 = vsub.f32 %v1901, %v1925
        %v1930 = vmul.f32 %v1926, %v1926
        %v1931 = vmul.f32 %v1927, %v1927
        %v1932 = vmul.f32 %v1928, %v1928
        %v1933 = vmul.f32 %v1929, %v1929
        %v1934 = vsel %vm557, %v1930, 0.0
        %1935 = vadd.xlane.f32.xlu0 %v1934
        %v1936 = vpop.xlane.xlu0 %1935
        %v1937 = vsel %vm557, %v1931, 0.0
        %1938 = vadd.xlane.f32.xlu0 %v1937
        %v1939 = vpop.xlane.xlu0 %1938
        %v1940 = vsel %vm557, %v1932, 0.0
        %1941 = vadd.xlane.f32.xlu0 %v1940
        %v1942 = vpop.xlane.xlu0 %1941
        %v1943 = vsel %vm557, %v1933, 0.0
        %1944 = vadd.xlane.f32.xlu0 %v1943
        %v1945 = vpop.xlane.xlu0 %1944
        %v1946 = vmul.f32 %v1936, %v570
        %v1947 = vmul.f32 %v1939, %v570
        %v1948 = vmul.f32 %v1942, %v570
        %v1949 = vmul.f32 %v1945, %v570
        %v1950 = vadd.f32 %v1946, 1e-06
        %v1951 = vadd.f32 %v1947, 1e-06
        %v1952 = vadd.f32 %v1948, 1e-06
        %v1953 = vadd.f32 %v1949, 1e-06
        %v1954 = vrsqrt.pop %v1950
        %v1955 = vrsqrt.pop %v1951
        %v1956 = vrsqrt.pop %v1952
        %v1957 = vrsqrt.pop %v1953
        %v1958 = vmul.f32 %v1926, %v1954
        %v1959 = vmul.f32 %v1927, %v1955
        %v1960 = vmul.f32 %v1928, %v1956
        %v1961 = vmul.f32 %v1929, %v1957
        %v1962 = vld [vmem:[%s9] sm:$0x1]
        %v1964 = vlaneseq
        %v1965 = vshrl.u32 %v1964, 7
        %v1966 = vsub.s32 0, %v1965
        %v1967 = vrot.slane %v1962, %v1966
        %v1969 = vmul.f32 %v1958, %v1967
        %v1970 = vmul.f32 %v1959, %v1967
        %v1971 = vmul.f32 %v1960, %v1967
        %v1972 = vmul.f32 %v1961, %v1967
        %v1973 = vld [vmem:[%s10] sm:$0x1]
        %v1975 = vlaneseq
        %v1976 = vshrl.u32 %v1975, 7
        %v1977 = vsub.s32 0, %v1976
        %v1978 = vrot.slane %v1973, %v1977
        %v1980 = vadd.f32 %v1969, %v1978
        %v1981 = vadd.f32 %v1970, %v1978
        %v1982 = vadd.f32 %v1971, %v1978
        %v1983 = vadd.f32 %v1972, %v1978
        %v1984 = vpack.c.bf16 %v1981, %v1980
        %v1985 = vpack.c.bf16 %v1983, %v1982
        %v1988 = vunpack.c.l.b16 %v1984
        %v1989 = vunpack.c.h.b16 %v1984
        %v1990 = vunpack.c.l.b16 %v1985
        %v1991 = vunpack.c.h.b16 %v1985
        %v1992 = vpack.c.b16 %v1988, %v1988
        %v1993 = vpack.c.b16 %v1989, %v1989
        %v1994 = vpack.c.b16 %v1990, %v1990
        %v1995 = vpack.c.b16 %v1991, %v1991
        %vm2000 = vcmask 257024
        %2001 = vst.msk [vmem:[%s534] sm:$0xf] %vm2000, %v1992
        %2002 = vst.msk [vmem:[%s534 + $0x4] sm:$0xf] %vm2000, %v1993
        %2003 = vst.msk [vmem:[%s534 + $0x8] sm:$0xf] %vm2000, %v1994
        %2004 = vst.msk [vmem:[%s534 + $0xc] sm:$0xf] %vm2000, %v1995
      $region72: #{forward.6} parent=63 // pred_fallthru
        _
      %p2005 = scmp.lt.s32.totalorder %s26, 1
      %s2006 = scalar_select %p2005, %s26, 1
      %s2007 = smul.addr %s2006, 4
      %s2008 = smul.addr %s2007, 4
      %s2009 = scalar_lea.vmem %s11, %s2008
      // Predicated region
      $region73: #{forward.6} parent=63 // pred_check
        %p2010 = pneg %p328
      $region74: #{forward.6} parent=63 // pred_check_branch
        %2012 = sbr.rel (%p2010) target = $region76
      $region75: #{forward.6} parent=63 // pred_region
        _
      $region76: #{forward.6} parent=63 // pred_fallthru
        _
    $region64: #{forward.6} parent=5 // pred_fallthru
      _
    %p2013 = scmp.le.s32.totalorder 2, %s17
    // Predicated region
    $region77: #{forward.6} parent=5 // pred_check
      %p2014 = pneg %p2013
    $region78: #{forward.6} parent=5 // pred_check_branch
      %2016 = sbr.rel (%p2014) target = $region80
    $region79: #{forward.6} parent=5 // pred_region
      %s2017 = ssub.s32 %s17, 2
      // Predicated region
      $region81: #{forward.6} parent=79 // pred_check
        %p2018 = pneg %p334
      $region82: #{forward.6} parent=79 // pred_check_branch
        %2020 = sbr.rel (%p2018) target = $region84
      $region83: #{forward.6} parent=79 // pred_region
        %p2021 = scmp.lt.s32.totalorder %s28, 1
        %s2022 = scalar_select %p2021, %s28, 1
        %s2023 = smul.addr %s2022, 4
        %s2024 = smul.addr %s2023, 4
        %s2025 = scalar_lea.vmem %s11, %s2024
      $region84: #{forward.6} parent=79 // pred_fallthru
        _
    $region80: #{forward.6} parent=5 // pred_fallthru
      _
  $region6: #{forward.6} parent=0 // loop_footer
    %s21 = sadd.s32 1, %s17
  $region7: #{forward.6} parent=0 // loop_footer_branch
    %16 = sbr.rel target = $region3
  $region8: #{forward.6} parent=0 // loop_exit
    _

// kernel: forward.9
$region0: #{forward.9}
  #allocation0 [shape = 'u32[]', space=smem, size = 0x4, offset = 0x4, fixed_abs, tag = 'smem constant byte address 0x4 - core index']
  #allocation1 [shape = 'u32[144,128]{1,0:T(1,128)}', space=vmem, size = 0x12000, scoped, tag = 'internal scratch']
  %s0 = inlined_call_operand.vmem [shape: bf16[128,8], index: 0, kind: input, shape index: {}]
  %s1 = inlined_call_operand.vmem [shape: bf16[8,32], index: 1, kind: input, shape index: {}]
  %s2 = inlined_call_operand.vmem [shape: f32[1,32], index: 2, kind: input, shape index: {}]
  %s3 = inlined_call_operand.vmem [shape: bf16[32,4], index: 3, kind: input, shape index: {}]
  %s4 = inlined_call_operand.vmem [shape: f32[4,1], index: 4, kind: input, shape index: {}]
  %s5 = inlined_call_operand.vmem [shape: f32[4,128], index: 5, kind: output, shape index: {}]
  %s6 = sld [smem:[#allocation0]]
  $region30: #{forward.9} parent=0
    _
  %s8 = ssub.s32 1, %s6
  %s9 = scalar_select 0, %s8, %s6
  // Predicated region
  $region2: #{forward.9} parent=0 // pred_check
    _
  $region3: #{forward.9} parent=0 // pred_check_branch
    %11 = sbr.rel (0) target = $region5
  $region4: #{forward.9} parent=0 // pred_region
    _
  $region5: #{forward.9} parent=0 // pred_fallthru
    _
  // Predicated region
  $region6: #{forward.9} parent=0 // pred_check
    _
  $region7: #{forward.9} parent=0 // pred_check_branch
    %13 = sbr.rel (0) target = $region9
  $region8: #{forward.9} parent=0 // pred_region
    _
  $region9: #{forward.9} parent=0 // pred_fallthru
    _
  // Predicated region
  $region10: #{forward.9} parent=0 // pred_check
    _
  $region11: #{forward.9} parent=0 // pred_check_branch
    %15 = sbr.rel (0) target = $region13
  $region12: #{forward.9} parent=0 // pred_region
    _
  $region13: #{forward.9} parent=0 // pred_fallthru
    _
  // Predicated region
  $region14: #{forward.9} parent=0 // pred_check
    _
  $region15: #{forward.9} parent=0 // pred_check_branch
    %17 = sbr.rel (0) target = $region17
  $region16: #{forward.9} parent=0 // pred_region
    _
  $region17: #{forward.9} parent=0 // pred_fallthru
    _
  // Predicated region
  $region18: #{forward.9} parent=0 // pred_check
    _
  $region19: #{forward.9} parent=0 // pred_check_branch
    %19 = sbr.rel (0) target = $region21
  $region20: #{forward.9} parent=0 // pred_region
    _
  $region21: #{forward.9} parent=0 // pred_fallthru
    _
  %v21 = vld [vmem:[%s0] sm:$0xf]
  %v22 = vld [vmem:[%s0 + $0x4] sm:$0xf]
  %v23 = vld [vmem:[%s0 + $0x8] sm:$0xf]
  %v24 = vld [vmem:[%s0 + $0xc] sm:$0xf]
  %v25 = vld [vmem:[%s0 + $0x10] sm:$0xf]
  %v26 = vld [vmem:[%s0 + $0x14] sm:$0xf]
  %v27 = vld [vmem:[%s0 + $0x18] sm:$0xf]
  %v28 = vld [vmem:[%s0 + $0x1c] sm:$0xf]
  %v29 = vld [vmem:[%s0 + $0x20] sm:$0xf]
  %v30 = vld [vmem:[%s0 + $0x24] sm:$0xf]
  %v31 = vld [vmem:[%s0 + $0x28] sm:$0xf]
  %v32 = vld [vmem:[%s0 + $0x2c] sm:$0xf]
  %v33 = vld [vmem:[%s0 + $0x30] sm:$0xf]
  %v34 = vld [vmem:[%s0 + $0x34] sm:$0xf]
  %v35 = vld [vmem:[%s0 + $0x38] sm:$0xf]
  %v36 = vld [vmem:[%s0 + $0x3c] sm:$0xf]
  %v37 = vld [vmem:[%s1] sm:$0xf]
  %v38 = vld [vmem:[%s2] sm:$0x1]
  %v40 = vlaneseq
  %v41 = vshrl.u32 %v40, 7
  %v42 = vsub.s32 0, %v41
  %v43 = vrot.slane %v38, %v42
  %v61 = vunpack.c.l.b16 %v21
  %v62 = vunpack.c.l.b16 %v22
  %v63 = vunpack.c.l.b16 %v23
  %v64 = vunpack.c.l.b16 %v24
  %v65 = vunpack.c.l.b16 %v25
  %v66 = vunpack.c.l.b16 %v26
  %v67 = vunpack.c.l.b16 %v27
  %v68 = vunpack.c.l.b16 %v28
  %v69 = vunpack.c.l.b16 %v29
  %v70 = vunpack.c.l.b16 %v30
  %v71 = vunpack.c.l.b16 %v31
  %v72 = vunpack.c.l.b16 %v32
  %v73 = vunpack.c.l.b16 %v33
  %v74 = vunpack.c.l.b16 %v34
  %v75 = vunpack.c.l.b16 %v35
  %v76 = vunpack.c.l.b16 %v36
  %v77 = vpack.c.b16 %v62, %v61
  %v78 = vpack.c.b16 %v64, %v63
  %v79 = vpack.c.b16 %v66, %v65
  %v80 = vpack.c.b16 %v68, %v67
  %v81 = vpack.c.b16 %v70, %v69
  %v82 = vpack.c.b16 %v72, %v71
  %v83 = vpack.c.b16 %v74, %v73
  %v84 = vpack.c.b16 %v76, %v75
  %vm85 = vcmask 64512
  %v87 = vsel %vm85, %v77, 0
  %v90 = vsel %vm85, %v78, 0
  %v93 = vsel %vm85, %v79, 0
  %v96 = vsel %vm85, %v80, 0
  %v99 = vsel %vm85, %v81, 0
  %v102 = vsel %vm85, %v82, 0
  %v105 = vsel %vm85, %v83, 0
  %v108 = vsel %vm85, %v84, 0
  %vm110 = vcmask 1043456
  %v112 = vsel %vm110, %v37, 0
  %114 = vmatprep.subr.bf16.mxu0 0
  %115 = vmatpush1.bf16.msra.mxu0 %v112
  %116 = vmatprep.subr.bf16.mxu0 0
  %117 = vmatpush1.bf16.msra.mxu0 0
  %118 = vmatprep.subr.bf16.mxu0 0
  %119 = vmatpush1.bf16.msra.mxu0 0
  %120 = vmatprep.subr.bf16.mxu0 0
  %121 = vmatpush1.bf16.msra.mxu0 0
  %122 = vmatprep.subr.bf16.mxu0 0
  %123 = vmatpush1.bf16.msra.mxu0 0
  %124 = vmatprep.subr.bf16.mxu0 0
  %125 = vmatpush1.bf16.msra.mxu0 0
  %126 = vmatprep.subr.bf16.mxu0 0
  %127 = vmatpush1.bf16.msra.mxu0 0
  %128 = vmatprep.subr.bf16.mxu0 0
  %129 = vmatpush1.bf16.msra.mxu0 0
  %130 = vmatprep.subr.bf16.mxu0 0
  %131 = vmatpush1.bf16.msra.mxu0 0
  %132 = vmatprep.subr.bf16.mxu0 0
  %133 = vmatpush1.bf16.msra.mxu0 0
  %134 = vmatprep.subr.bf16.mxu0 0
  %135 = vmatpush1.bf16.msra.mxu0 0
  %136 = vmatprep.subr.bf16.mxu0 0
  %137 = vmatpush1.bf16.msra.mxu0 0
  %138 = vmatprep.subr.bf16.mxu0 0
  %139 = vmatpush1.bf16.msra.mxu0 0
  %140 = vmatprep.subr.bf16.mxu0 0
  %141 = vmatpush1.bf16.msra.mxu0 0
  %142 = vmatprep.subr.bf16.mxu0 0
  %143 = vmatpush1.bf16.msra.mxu0 0
  %144 = vmatprep.subr.bf16.mxu0 0
  %145 = vmatpush1.bf16.msra.mxu0 0
  %146 = vmatprep.mubr.bf16.mxu0 0
  %147 = vmatmul.mubr.bf16.gmra.mrb[0].mxu0 %v87
  %v148 = vpop.f32.mrb[0].mxu0
  %v149 = vadd.f32 %v43, %v148
  %v150 = vpop.f32.mrb[0].mxu0
  %v151 = vpop.f32.mrb[0].mxu0
  %v152 = vadd.f32 %v43, %v151
  %v153 = vpop.f32.mrb[0].mxu0
  %154 = vmatprep.mubr.bf16.mxu0 0
  %155 = vmatmul.mubr.bf16.gmra.mrb[0].mxu0 %v90
  %v156 = vpop.f32.mrb[0].mxu0
  %v157 = vadd.f32 %v43, %v156
  %v158 = vpop.f32.mrb[0].mxu0
  %v159 = vpop.f32.mrb[0].mxu0
  %v160 = vadd.f32 %v43, %v159
  %v161 = vpop.f32.mrb[0].mxu0
  %162 = vmatprep.mubr.bf16.mxu0 0
  %163 = vmatmul.mubr.bf16.gmra.mrb[0].mxu0 %v93
  %v164 = vpop.f32.mrb[0].mxu0
  %v165 = vadd.f32 %v43, %v164
  %v166 = vpop.f32.mrb[0].mxu0
  %v167 = vpop.f32.mrb[0].mxu0
  %v168 = vadd.f32 %v43, %v167
  %v169 = vpop.f32.mrb[0].mxu0
  %170 = vmatprep.mubr.bf16.mxu0 0
  %171 = vmatmul.mubr.bf16.gmra.mrb[0].mxu0 %v96
  %v172 = vpop.f32.mrb[0].mxu0
  %v173 = vadd.f32 %v43, %v172
  %v174 = vpop.f32.mrb[0].mxu0
  %v175 = vpop.f32.mrb[0].mxu0
  %v176 = vadd.f32 %v43, %v175
  %v177 = vpop.f32.mrb[0].mxu0
  %178 = vmatprep.mubr.bf16.mxu0 0
  %179 = vmatmul.mubr.bf16.gmra.mrb[0].mxu0 %v99
  %v180 = vpop.f32.mrb[0].mxu0
  %v181 = vadd.f32 %v43, %v180
  %v182 = vpop.f32.mrb[0].mxu0
  %v183 = vpop.f32.mrb[0].mxu0
  %v184 = vadd.f32 %v43, %v183
  %v185 = vpop.f32.mrb[0].mxu0
  %186 = vmatprep.mubr.bf16.mxu0 0
  %187 = vmatmul.mubr.bf16.gmra.mrb[0].mxu0 %v102
  %v188 = vpop.f32.mrb[0].mxu0
  %v189 = vadd.f32 %v43, %v188
  %v190 = vpop.f32.mrb[0].mxu0
  %v191 = vpop.f32.mrb[0].mxu0
  %v192 = vadd.f32 %v43, %v191
  %v193 = vpop.f32.mrb[0].mxu0
  %194 = vmatprep.mubr.bf16.mxu0 0
  %195 = vmatmul.mubr.bf16.gmra.mrb[0].mxu0 %v105
  %v196 = vpop.f32.mrb[0].mxu0
  %v197 = vadd.f32 %v43, %v196
  %v198 = vpop.f32.mrb[0].mxu0
  %v199 = vpop.f32.mrb[0].mxu0
  %v200 = vadd.f32 %v43, %v199
  %v201 = vpop.f32.mrb[0].mxu0
  %202 = vmatprep.mubr.bf16.mxu0 0
  %203 = vmatmul.mubr.bf16.gmra.mrb[0].mxu0 %v108
  %v204 = vpop.f32.mrb[0].mxu0
  %v205 = vadd.f32 %v43, %v204
  %v206 = vpop.f32.mrb[0].mxu0
  %v207 = vpop.f32.mrb[0].mxu0
  %v208 = vadd.f32 %v43, %v207
  %v209 = vpop.f32.mrb[0].mxu0
  %210 = vdwg.mxu0
  %v211 = vmax.f32 %v149, 0.0
  %v212 = vmax.f32 %v152, 0.0
  %v213 = vmax.f32 %v157, 0.0
  %v214 = vmax.f32 %v160, 0.0
  %v215 = vmax.f32 %v165, 0.0
  %v216 = vmax.f32 %v168, 0.0
  %v217 = vmax.f32 %v173, 0.0
  %v218 = vmax.f32 %v176, 0.0
  %v219 = vmax.f32 %v181, 0.0
  %v220 = vmax.f32 %v184, 0.0
  %v221 = vmax.f32 %v189, 0.0
  %v222 = vmax.f32 %v192, 0.0
  %v223 = vmax.f32 %v197, 0.0
  %v224 = vmax.f32 %v200, 0.0
  %v225 = vmax.f32 %v205, 0.0
  %v226 = vmax.f32 %v208, 0.0
  %v227 = vld [vmem:[%s3] sm:$0xf]
  %v228 = vld [vmem:[%s3 + $0x4] sm:$0xf]
  %v229 = vld [vmem:[%s3 + $0x8] sm:$0xf]
  %v230 = vld [vmem:[%s3 + $0xc] sm:$0xf]
  %v231 = vpack.c.bf16 %v212, %v211
  %v232 = vpack.c.bf16 %v214, %v213
  %v233 = vpack.c.bf16 %v216, %v215
  %v234 = vpack.c.bf16 %v218, %v217
  %v235 = vpack.c.bf16 %v220, %v219
  %v236 = vpack.c.bf16 %v222, %v221
  %v237 = vpack.c.bf16 %v224, %v223
  %v238 = vpack.c.bf16 %v226, %v225
  %v239 = vld [vmem:[%s4] sm:$0xf]
  %241 = vset.pattern.permute.xlu0 0
  %242 = vperm.xlu0 %241, %v239
  %v243 = vpop.permute.xlu0 %242
  %v249 = vunpack.c.l.b16 %v227
  %v250 = vunpack.c.l.b16 %v228
  %v251 = vunpack.c.l.b16 %v229
  %v252 = vunpack.c.l.b16 %v230
  %v253 = vpack.c.b16 %v250, %v249
  %v254 = vpack.c.b16 %v252, %v251
  %257 = vxpose.xlu0.c.b16.start [1/8] %v253, 128
  %258 = vxpose.xlu0.c.b16.cont [2/8] %v254, 128
  %259 = vxpose.xlu0.c.b16.cont [3/8] 0, 128
  %260 = vxpose.xlu0.c.b16.cont [4/8] 0, 128
  %261 = vxpose.xlu0.c.b16.cont [5/8] 0, 128
  %262 = vxpose.xlu0.c.b16.cont [6/8] 0, 128
  %263 = vxpose.xlu0.c.b16.cont [7/8] 0, 128
  %264 = vxpose.xlu0.c.b16.end [8/8] 0, 128
  %v265 = vpop.trf.xlu0
  %v266 = vpop.trf.xlu0
  %v267 = vpop.trf.xlu0
  %v268 = vpop.trf.xlu0
  %v269 = vpop.trf.xlu0
  %v270 = vpop.trf.xlu0
  %v271 = vpop.trf.xlu0
  %v272 = vpop.trf.xlu0
  %vm273 = vcmask 261120
  %v275 = vsel %vm273, %v265, 0
  %v278 = vsel %vm273, %v231, 0
  %v281 = vsel %vm273, %v232, 0
  %v284 = vsel %vm273, %v233, 0
  %v287 = vsel %vm273, %v234, 0
  %v290 = vsel %vm273, %v235, 0
  %v293 = vsel %vm273, %v236, 0
  %v296 = vsel %vm273, %v237, 0
  %v299 = vsel %vm273, %v238, 0
  %301 = vmatprep.subr.bf16.mxu0 0
  %302 = vmatpush1.bf16.xpose.msra.mxu0 %v278
  %303 = vmatprep.subr.bf16.mxu0 0
  %304 = vmatpush1.bf16.xpose.msra.mxu0 %v281
  %305 = vmatprep.subr.bf16.mxu0 0
  %306 = vmatpush1.bf16.xpose.msra.mxu0 %v284
  %307 = vmatprep.subr.bf16.mxu0 0
  %308 = vmatpush1.bf16.xpose.msra.mxu0 %v287
  %309 = vmatprep.subr.bf16.mxu0 0
  %310 = vmatpush1.bf16.xpose.msra.mxu0 %v290
  %311 = vmatprep.subr.bf16.mxu0 0
  %312 = vmatpush1.bf16.xpose.msra.mxu0 %v293
  %313 = vmatprep.subr.bf16.mxu0 0
  %314 = vmatpush1.bf16.xpose.msra.mxu0 %v296
  %315 = vmatprep.subr.bf16.mxu0 0
  %316 = vmatpush1.bf16.xpose.msra.mxu0 %v299
  %317 = vmatprep.subr.bf16.mxu0 0
  %318 = vmatpush1.bf16.xpose.msra.mxu0 0
  %319 = vmatprep.subr.bf16.mxu0 0
  %320 = vmatpush1.bf16.xpose.msra.mxu0 0
  %321 = vmatprep.subr.bf16.mxu0 0
  %322 = vmatpush1.bf16.xpose.msra.mxu0 0
  %323 = vmatprep.subr.bf16.mxu0 0
  %324 = vmatpush1.bf16.xpose.msra.mxu0 0
  %325 = vmatprep.subr.bf16.mxu0 0
  %326 = vmatpush1.bf16.xpose.msra.mxu0 0
  %327 = vmatprep.subr.bf16.mxu0 0
  %328 = vmatpush1.bf16.xpose.msra.mxu0 0
  %329 = vmatprep.subr.bf16.mxu0 0
  %330 = vmatpush1.bf16.xpose.msra.mxu0 0
  %331 = vmatprep.subr.bf16.mxu0 0
  %332 = vmatpush1.bf16.xpose.msra.mxu0 0
  %333 = vmatprep.mubr.bf16.mxu0 0
  %334 = vmatmul.mubr.bf16.gmra.mrb[0].mxu0 %v275
  %v335 = vpop.f32.mrb[0].mxu0
  %v336 = vadd.f32 %v243, %v335
  %v337 = vpop.f32.mrb[0].mxu0
  %v338 = vpop.f32.mrb[0].mxu0
  %v339 = vpop.f32.mrb[0].mxu0
  %340 = vdwg.mxu0
  %341 = vst [vmem:[%s5] sm:$0xf] %v336
  // Predicated region
  $region22: #{forward.9} parent=0 // pred_check
    _
  $region23: #{forward.9} parent=0 // pred_check_branch
    %343 = sbr.rel (0) target = $region25
  $region24: #{forward.9} parent=0 // pred_region
    _
  $region25: #{forward.9} parent=0 // pred_fallthru
    _
  // Predicated region
  $region26: #{forward.9} parent=0 // pred_check
    _
  $region27: #{forward.9} parent=0 // pred_check_branch
    %345 = sbr.rel (0) target = $region29
  $region28: #{forward.9} parent=0 // pred_region
    _
  $region29: #{forward.9} parent=0 // pred_fallthru
    _

</llo_original>
